<compile_context>
chip_gen: v6e
topology: v6e:2x2x1
jax: 0.10.0
libtpu: 0.0.40
codegen_flags: <defaults>
</compile_context>

<pallas_src>
import jax
import jax.numpy as jnp
from jax.experimental import pallas as pl
from jax.experimental.pallas import tpu as pltpu


def make_lstm_fc_kernel(n_layers, seq_len, batch, hidden, hidden_pad, input_size, out_pad, row):
    L, T, B, H, Hp, I, Op, ROW = (n_layers, seq_len, batch, hidden, hidden_pad,
                                  input_size, out_pad, row)

    def sigmoid(z):
        # tanh-form sigmoid: a single EUP push instead of exp + reciprocal (two).
        return 0.5 * jnp.tanh(0.5 * z) + 0.5

    def kernel(x_ref, h0_ref, c0_ref, *rest):
        # rest = [w_ih, w_hh, b] * L, fc_w, fc_b, out_ref, hn_ref, cn_ref, xp_ref, sq_ref
        p = rest[:3 * L + 2]
        out_ref, hn_ref, cn_ref = rest[3 * L + 2:3 * L + 5]
        xp_ref, sq_ref = rest[3 * L + 5:]

        fc_w = p[3 * L][...]            # (Hp, Op)   hoisted, loaded once
        fc_b = p[3 * L + 1][...]        # (1, Op)

        if L > 1:
            # keep the unused pad rows (t*ROW+B ..) defined; they are never read back per-step
            sq_ref[...] = jnp.zeros_like(sq_ref)

        h_last = None
        for l in range(L):
            # --- per-layer parameter loads, hoisted out of the time loop ---
            w_ih = p[3 * l][...]        # (I, 4Hp) for l==0 else (Hp, 4Hp)
            w_hh = p[3 * l + 1][...]    # (Hp, 4Hp)
            b = p[3 * l + 2][...]       # (1, 4Hp)

            # --- layer-major: project the whole input sequence in one shot (off serial path) ---
            if l == 0:
                xin = x_ref[...]                              # (T*ROW, I), time-major rows
                if I == 1:
                    xp = xin * w_ih                           # VPU broadcast, no K=1 matmul
                else:
                    xp = jnp.dot(xin, w_ih, preferred_element_type=jnp.float32)
            else:
                xp = jnp.dot(sq_ref[...], w_ih, preferred_element_type=jnp.float32)
            xp_ref[...] = xp + b                              # bias folded in, one aligned bulk store

            # --- recurrence: only h @ W_hh + cell math on the serial chain; every per-step
            #     scratch access starts on an (8,128) tile boundary (row stride = ROW) ---
            h = h0_ref[l]                                     # (B, Hp), pad lanes are 0
            c = c0_ref[l]                                     # (B, Hp)
            for t in range(T):
                r = t * ROW
                gates = xp_ref[r:r + B, :] + jnp.dot(
                    h, w_hh, preferred_element_type=jnp.float32)      # (B, 4Hp)
                # gate blocks are 128-lane aligned -> whole-vreg slices, no lane shuffles
                i_g = sigmoid(gates[:, 0 * Hp:1 * Hp])
                f_g = sigmoid(gates[:, 1 * Hp:2 * Hp])
                g_g = jnp.tanh(gates[:, 2 * Hp:3 * Hp])
                o_g = sigmoid(gates[:, 3 * Hp:4 * Hp])
                c = f_g * c + i_g * g_g
                h = o_g * jnp.tanh(c)
                if l < L - 1:
                    sq_ref[r:r + B, :] = h                    # aligned store; bulk-read next layer
            # lane-dense padded final-state stores; sliced back to H in the wrapper
            hn_ref[l] = h
            cn_ref[l] = c
            h_last = h

        # FC head on the last layer's last-timestep hidden state (lane-dense padded output).
        out = jnp.dot(h_last, fc_w, preferred_element_type=jnp.float32) + fc_b
        out_ref[...] = out.astype(out_ref.dtype)

    return kernel


def _place_gate_blocks(w, H, Hp):
    """(K, 4H) -> (K, 4Hp): gate k's H columns land at lane offset k*Hp (128-aligned)."""
    out = jnp.zeros((w.shape[0], 4 * Hp), w.dtype)
    for k in range(4):
        out = out.at[:, k * Hp:k * Hp + H].set(w[:, k * H:(k + 1) * H])
    return out


def _pad_rows(w, Hp):
    """Zero-pad the leading (contraction) dim up to Hp rows."""
    return jnp.pad(w, ((0, Hp - w.shape[0]), (0, 0)))


def lstm_model_forward(x, h0, c0, params):
    """x: (B, T, I) batch_first; h0/c0: (L, B, H).
    params: lists 'w_ih' (in,4H), 'w_hh' (H,4H), 'b' (1,4H) per layer + 'fc_w' (H,O), 'fc_b' (1,O)."""
    B, T, I = x.shape
    L, _, H = h0.shape
    O = params["fc_w"].shape[1]
    Hp = ((H + 127) // 128) * 128          # pad each gate block to a full 128-lane vreg
    Op = ((O + 127) // 128) * 128          # lane-dense FC output, sliced back to O outside
    ROW = ((B + 7) // 8) * 8               # per-timestep row stride: a full sublane tile

    # ---- one-time parameter packing (would be done at load time in production) ----
    flat = []
    for l in range(L):
        w_ih = _place_gate_blocks(params["w_ih"][l], H, Hp)
        if l > 0:
            w_ih = _pad_rows(w_ih, Hp)     # layer input is the padded h of the layer below
        w_hh = _pad_rows(_place_gate_blocks(params["w_hh"][l], H, Hp), Hp)
        b = _place_gate_blocks(params["b"][l], H, Hp)
        flat += [w_ih, w_hh, b]
    fc_w = jnp.pad(params["fc_w"], ((0, Hp - H), (0, Op - O)))
    fc_b = jnp.pad(params["fc_b"], ((0, 0), (0, Op - O)))
    flat += [fc_w, fc_b]

    # time-major input; each timestep's B rows placed at the tile-aligned row offset t*ROW.
    x_t = jnp.transpose(x, (1, 0, 2))                                   # (T, B, I)
    x_tm = jnp.zeros((T, ROW, I), x.dtype).at[:, :B, :].set(x_t).reshape(T * ROW, I)

    # hidden states zero-padded to Hp lanes (pad lanes provably stay zero in the kernel).
    h0_p = jnp.pad(h0, ((0, 0), (0, 0), (0, Hp - H)))
    c0_p = jnp.pad(c0, ((0, 0), (0, 0), (0, Hp - H)))

    kernel = make_lstm_fc_kernel(L, T, B, H, Hp, I, Op, ROW)
    vmem = pl.BlockSpec(memory_space=pltpu.MemorySpace.VMEM)
    n_inputs = 3 + len(flat)

    out_p, hn_p, cn_p = pl.pallas_call(
        kernel,
        out_shape=(
            jax.ShapeDtypeStruct((B, Op), jnp.float32),
            jax.ShapeDtypeStruct((L, B, Hp), jnp.float32),
            jax.ShapeDtypeStruct((L, B, Hp), jnp.float32),
        ),
        in_specs=[vmem] * n_inputs,
        out_specs=(vmem, vmem, vmem),
        scratch_shapes=[
            pltpu.VMEM((T * ROW, 4 * Hp), jnp.float32),   # precomputed x-projection (+bias)
            pltpu.VMEM((T * ROW, Hp), jnp.float32),       # per-layer hidden sequence
        ],
    )(x_tm, h0_p, c0_p, *flat)

    return out_p[:, :O], (hn_p[..., :H], cn_p[..., :H])


def reference_forward(x, h0, c0, params):
    """Pure-JAX reference (same math, unpadded) for validation."""
    B, T, _ = x.shape
    L, _, H = h0.shape
    hs = [h0[l] for l in range(L)]
    cs = [c0[l] for l in range(L)]
    for t in range(T):
        inp = x[:, t, :]
        for l in range(L):
            gates = inp @ params["w_ih"][l] + hs[l] @ params["w_hh"][l] + params["b"][l]
            i_g = jax.nn.sigmoid(gates[:, 0 * H:1 * H])
            f_g = jax.nn.sigmoid(gates[:, 1 * H:2 * H])
            g_g = jnp.tanh(gates[:, 2 * H:3 * H])
            o_g = jax.nn.sigmoid(gates[:, 3 * H:4 * H])
            cs[l] = f_g * cs[l] + i_g * g_g
            hs[l] = o_g * jnp.tanh(cs[l])
            inp = hs[l]
    out = hs[-1] @ params["fc_w"] + params["fc_b"]
    return out, (jnp.stack(hs), jnp.stack(cs))


def init_params(key, input_size, hidden_size, output_size, n_layers):
    """Deterministic parameter init (uniform, like PyTorch's 1/sqrt(H) scaling)."""
    bound = 1.0 / jnp.sqrt(jnp.float32(hidden_size))
    keys = jax.random.split(key, 4 * n_layers + 2)
    w_ih, w_hh, b = [], [], []
    ki = 0
    for l in range(n_layers):
        in_dim = input_size if l == 0 else hidden_size
        # stored transposed: (in_dim, 4H), (H, 4H); combined bias (1, 4H); gate order i,f,g,o
        w_ih.append(jax.random.uniform(keys[ki], (in_dim, 4 * hidden_size),
                                       jnp.float32, -bound, bound)); ki += 1
        w_hh.append(jax.random.uniform(keys[ki], (hidden_size, 4 * hidden_size),
                                       jnp.float32, -bound, bound)); ki += 1
        b_ih = jax.random.uniform(keys[ki], (1, 4 * hidden_size),
                                  jnp.float32, -bound, bound); ki += 1
        b_hh = jax.random.uniform(keys[ki], (1, 4 * hidden_size),
                                  jnp.float32, -bound, bound); ki += 1
        b.append(b_ih + b_hh)
    fc_w = jax.random.uniform(keys[ki], (hidden_size, output_size),
                              jnp.float32, -bound, bound); ki += 1
    fc_b = jax.random.uniform(keys[ki], (1, output_size),
                              jnp.float32, -bound, bound)
    return {"w_ih": w_ih, "w_hh": w_hh, "b": b, "fc_w": fc_w, "fc_b": fc_b}


if __name__ == "__main__":
    # Model hyper-params (small, consistent with the module's forward).
    input_size, output_size, hidden_size, n_layers = 1, 1, 32, 2
    batch, seq = 2, 8

    key = jax.random.PRNGKey(0)
    k_p, k_x, k_h, k_c = jax.random.split(key, 4)

    params = init_params(k_p, input_size, hidden_size, output_size, n_layers)

    x = jax.random.normal(k_x, (batch, seq, input_size), jnp.float32)
    # init_hidden in the module draws normal(mean=-1, std=1)
    h0 = -1.0 + jax.random.normal(k_h, (n_layers, batch, hidden_size), jnp.float32)
    c0 = -1.0 + jax.random.normal(k_c, (n_layers, batch, hidden_size), jnp.float32)

    fwd = jax.jit(lstm_model_forward)
    out, (hn, cn) = fwd(x, h0, c0, params)
    out, hn, cn = jax.block_until_ready((out, hn, cn))

    # Validate against the pure-JAX reference.
    ref_out, (ref_hn, ref_cn) = reference_forward(x, h0, c0, params)
    assert jnp.allclose(out, ref_out, atol=1e-4, rtol=1e-4)
    assert jnp.allclose(hn, ref_hn, atol=1e-4, rtol=1e-4)
    assert jnp.allclose(cn, ref_cn, atol=1e-4, rtol=1e-4)

    print("KERNEL_OK")
</pallas_src>

<mosaic_0001>
module attributes {stable_mosaic.version = 11 : i64} {
  func.func @kernel(%arg0: memref<64x1xf32, #tpu.memory_space<vmem>>, %arg1: memref<2x2x128xf32, #tpu.memory_space<vmem>>, %arg2: memref<2x2x128xf32, #tpu.memory_space<vmem>>, %arg3: memref<1x512xf32, #tpu.memory_space<vmem>>, %arg4: memref<128x512xf32, #tpu.memory_space<vmem>>, %arg5: memref<1x512xf32, #tpu.memory_space<vmem>>, %arg6: memref<128x512xf32, #tpu.memory_space<vmem>>, %arg7: memref<128x512xf32, #tpu.memory_space<vmem>>, %arg8: memref<1x512xf32, #tpu.memory_space<vmem>>, %arg9: memref<128x128xf32, #tpu.memory_space<vmem>>, %arg10: memref<1x128xf32, #tpu.memory_space<vmem>>, %arg11: memref<2x128xf32, #tpu.memory_space<vmem>>, %arg12: memref<2x2x128xf32, #tpu.memory_space<vmem>>, %arg13: memref<2x2x128xf32, #tpu.memory_space<vmem>>, %arg14: memref<64x512xf32, #tpu.memory_space<vmem>>, %arg15: memref<64x128xf32, #tpu.memory_space<vmem>>) attributes {dimension_semantics = [], scalar_prefetch = 0 : i64, scratch_operands = 2 : i64, tpu.core_type = #tpu.core_type<tc>} {
    %c0 = arith.constant 0 : index
    %c0_0 = arith.constant 0 : index
    %0 = vector.load %arg9[%c0, %c0_0] : memref<128x128xf32, #tpu.memory_space<vmem>>, vector<128x128xf32>
    %c0_1 = arith.constant 0 : index
    %c0_2 = arith.constant 0 : index
    %1 = vector.load %arg10[%c0_1, %c0_2] : memref<1x128xf32, #tpu.memory_space<vmem>>, vector<1x128xf32>
    %cst = arith.constant 0.000000e+00 : f32
    %2 = vector.broadcast %cst : f32 to vector<64x128xf32>
    %c0_3 = arith.constant 0 : index
    %c0_4 = arith.constant 0 : index
    %3 = vector.load %arg15[%c0_3, %c0_4] : memref<64x128xf32, #tpu.memory_space<vmem>>, vector<64x128xf32>
    tpu.vector_store %arg15[%c0_3, %c0_4], %2 {strides = array<i32>} : memref<64x128xf32, #tpu.memory_space<vmem>>, vector<64x128xf32>,
    %c0_5 = arith.constant 0 : index
    %c0_6 = arith.constant 0 : index
    %4 = vector.load %arg3[%c0_5, %c0_6] : memref<1x512xf32, #tpu.memory_space<vmem>>, vector<1x512xf32>
    %c0_7 = arith.constant 0 : index
    %c0_8 = arith.constant 0 : index
    %5 = vector.load %arg4[%c0_7, %c0_8] : memref<128x512xf32, #tpu.memory_space<vmem>>, vector<128x512xf32>
    %c0_9 = arith.constant 0 : index
    %c0_10 = arith.constant 0 : index
    %6 = vector.load %arg5[%c0_9, %c0_10] : memref<1x512xf32, #tpu.memory_space<vmem>>, vector<1x512xf32>
    %c0_11 = arith.constant 0 : index
    %c0_12 = arith.constant 0 : index
    %7 = vector.load %arg0[%c0_11, %c0_12] : memref<64x1xf32, #tpu.memory_space<vmem>>, vector<64x1xf32>
    %8 = vector.broadcast %7 : vector<64x1xf32> to vector<64x512xf32>
    %9 = vector.broadcast %4 : vector<1x512xf32> to vector<64x512xf32>
    %10 = arith.mulf %8, %9 : vector<64x512xf32>
    %11 = vector.broadcast %6 : vector<1x512xf32> to vector<64x512xf32>
    %12 = arith.addf %10, %11 : vector<64x512xf32>
    %c0_13 = arith.constant 0 : index
    %c0_14 = arith.constant 0 : index
    %13 = vector.load %arg14[%c0_13, %c0_14] : memref<64x512xf32, #tpu.memory_space<vmem>>, vector<64x512xf32>
    tpu.vector_store %arg14[%c0_13, %c0_14], %12 {strides = array<i32>} : memref<64x512xf32, #tpu.memory_space<vmem>>, vector<64x512xf32>,
    %c0_15 = arith.constant 0 : index
    %c0_16 = arith.constant 0 : index
    %c0_17 = arith.constant 0 : index
    %14 = vector.load %arg1[%c0_15, %c0_16, %c0_17] : memref<2x2x128xf32, #tpu.memory_space<vmem>>, vector<1x2x128xf32>
    %15 = vector.shape_cast %14 : vector<1x2x128xf32> to vector<2x128xf32>
    %c0_18 = arith.constant 0 : index
    %c0_19 = arith.constant 0 : index
    %c0_20 = arith.constant 0 : index
    %16 = vector.load %arg2[%c0_18, %c0_19, %c0_20] : memref<2x2x128xf32, #tpu.memory_space<vmem>>, vector<1x2x128xf32>
    %17 = vector.shape_cast %16 : vector<1x2x128xf32> to vector<2x128xf32>
    %c0_21 = arith.constant 0 : index
    %c0_22 = arith.constant 0 : index
    %18 = vector.load %arg14[%c0_21, %c0_22] : memref<64x512xf32, #tpu.memory_space<vmem>>, vector<2x512xf32>
    %cst_23 = arith.constant dense<0.000000e+00> : vector<2x512xf32>
    %19 = tpu.matmul %15, %5, %cst_23 {dimension_numbers = #tpu.dot_dimension_numbers<[1], [0], [0], [1], [0, 0, 1, 1], [], []>} : vector<2x128xf32>, vector<128x512xf32>, vector<2x512xf32> -> vector<2x512xf32>
    %20 = arith.addf %18, %19 : vector<2x512xf32>
    %21 = vector.extract_strided_slice %20 {offsets = [0, 0], sizes = [2, 128], strides = [1, 1]} : vector<2x512xf32> to vector<2x128xf32>
    %cst_24 = arith.constant 5.000000e-01 : f32
    %22 = vector.broadcast %cst_24 : f32 to vector<2x128xf32>
    %23 = arith.mulf %22, %21 : vector<2x128xf32>
    %24 = math.tanh %23 : vector<2x128xf32>
    %cst_25 = arith.constant 5.000000e-01 : f32
    %25 = vector.broadcast %cst_25 : f32 to vector<2x128xf32>
    %26 = arith.mulf %25, %24 : vector<2x128xf32>
    %cst_26 = arith.constant 5.000000e-01 : f32
    %27 = vector.broadcast %cst_26 : f32 to vector<2x128xf32>
    %28 = arith.addf %26, %27 : vector<2x128xf32>
    %29 = vector.extract_strided_slice %20 {offsets = [0, 128], sizes = [2, 128], strides = [1, 1]} : vector<2x512xf32> to vector<2x128xf32>
    %cst_27 = arith.constant 5.000000e-01 : f32
    %30 = vector.broadcast %cst_27 : f32 to vector<2x128xf32>
    %31 = arith.mulf %30, %29 : vector<2x128xf32>
    %32 = math.tanh %31 : vector<2x128xf32>
    %cst_28 = arith.constant 5.000000e-01 : f32
    %33 = vector.broadcast %cst_28 : f32 to vector<2x128xf32>
    %34 = arith.mulf %33, %32 : vector<2x128xf32>
    %cst_29 = arith.constant 5.000000e-01 : f32
    %35 = vector.broadcast %cst_29 : f32 to vector<2x128xf32>
    %36 = arith.addf %34, %35 : vector<2x128xf32>
    %37 = vector.extract_strided_slice %20 {offsets = [0, 256], sizes = [2, 128], strides = [1, 1]} : vector<2x512xf32> to vector<2x128xf32>
    %38 = math.tanh %37 : vector<2x128xf32>
    %39 = vector.extract_strided_slice %20 {offsets = [0, 384], sizes = [2, 128], strides = [1, 1]} : vector<2x512xf32> to vector<2x128xf32>
    %cst_30 = arith.constant 5.000000e-01 : f32
    %40 = vector.broadcast %cst_30 : f32 to vector<2x128xf32>
    %41 = arith.mulf %40, %39 : vector<2x128xf32>
    %42 = math.tanh %41 : vector<2x128xf32>
    %cst_31 = arith.constant 5.000000e-01 : f32
    %43 = vector.broadcast %cst_31 : f32 to vector<2x128xf32>
    %44 = arith.mulf %43, %42 : vector<2x128xf32>
    %cst_32 = arith.constant 5.000000e-01 : f32
    %45 = vector.broadcast %cst_32 : f32 to vector<2x128xf32>
    %46 = arith.addf %44, %45 : vector<2x128xf32>
    %47 = arith.mulf %36, %17 : vector<2x128xf32>
    %48 = arith.mulf %28, %38 : vector<2x128xf32>
    %49 = arith.addf %47, %48 : vector<2x128xf32>
    %50 = math.tanh %49 : vector<2x128xf32>
    %51 = arith.mulf %46, %50 : vector<2x128xf32>
    %c0_33 = arith.constant 0 : index
    %c0_34 = arith.constant 0 : index
    %52 = vector.load %arg15[%c0_33, %c0_34] : memref<64x128xf32, #tpu.memory_space<vmem>>, vector<2x128xf32>
    tpu.vector_store %arg15[%c0_33, %c0_34], %51 {strides = array<i32>} : memref<64x128xf32, #tpu.memory_space<vmem>>, vector<2x128xf32>,
    %c8 = arith.constant 8 : index
    %c0_35 = arith.constant 0 : index
    %53 = vector.load %arg14[%c8, %c0_35] : memref<64x512xf32, #tpu.memory_space<vmem>>, vector<2x512xf32>
    %cst_36 = arith.constant dense<0.000000e+00> : vector<2x512xf32>
    %54 = tpu.matmul %51, %5, %cst_36 {dimension_numbers = #tpu.dot_dimension_numbers<[1], [0], [0], [1], [0, 0, 1, 1], [], []>} : vector<2x128xf32>, vector<128x512xf32>, vector<2x512xf32> -> vector<2x512xf32>
    %55 = arith.addf %53, %54 : vector<2x512xf32>
    %56 = vector.extract_strided_slice %55 {offsets = [0, 0], sizes = [2, 128], strides = [1, 1]} : vector<2x512xf32> to vector<2x128xf32>
    %cst_37 = arith.constant 5.000000e-01 : f32
    %57 = vector.broadcast %cst_37 : f32 to vector<2x128xf32>
    %58 = arith.mulf %57, %56 : vector<2x128xf32>
    %59 = math.tanh %58 : vector<2x128xf32>
    %cst_38 = arith.constant 5.000000e-01 : f32
    %60 = vector.broadcast %cst_38 : f32 to vector<2x128xf32>
    %61 = arith.mulf %60, %59 : vector<2x128xf32>
    %cst_39 = arith.constant 5.000000e-01 : f32
    %62 = vector.broadcast %cst_39 : f32 to vector<2x128xf32>
    %63 = arith.addf %61, %62 : vector<2x128xf32>
    %64 = vector.extract_strided_slice %55 {offsets = [0, 128], sizes = [2, 128], strides = [1, 1]} : vector<2x512xf32> to vector<2x128xf32>
    %cst_40 = arith.constant 5.000000e-01 : f32
    %65 = vector.broadcast %cst_40 : f32 to vector<2x128xf32>
    %66 = arith.mulf %65, %64 : vector<2x128xf32>
    %67 = math.tanh %66 : vector<2x128xf32>
    %cst_41 = arith.constant 5.000000e-01 : f32
    %68 = vector.broadcast %cst_41 : f32 to vector<2x128xf32>
    %69 = arith.mulf %68, %67 : vector<2x128xf32>
    %cst_42 = arith.constant 5.000000e-01 : f32
    %70 = vector.broadcast %cst_42 : f32 to vector<2x128xf32>
    %71 = arith.addf %69, %70 : vector<2x128xf32>
    %72 = vector.extract_strided_slice %55 {offsets = [0, 256], sizes = [2, 128], strides = [1, 1]} : vector<2x512xf32> to vector<2x128xf32>
    %73 = math.tanh %72 : vector<2x128xf32>
    %74 = vector.extract_strided_slice %55 {offsets = [0, 384], sizes = [2, 128], strides = [1, 1]} : vector<2x512xf32> to vector<2x128xf32>
    %cst_43 = arith.constant 5.000000e-01 : f32
    %75 = vector.broadcast %cst_43 : f32 to vector<2x128xf32>
    %76 = arith.mulf %75, %74 : vector<2x128xf32>
    %77 = math.tanh %76 : vector<2x128xf32>
    %cst_44 = arith.constant 5.000000e-01 : f32
    %78 = vector.broadcast %cst_44 : f32 to vector<2x128xf32>
    %79 = arith.mulf %78, %77 : vector<2x128xf32>
    %cst_45 = arith.constant 5.000000e-01 : f32
    %80 = vector.broadcast %cst_45 : f32 to vector<2x128xf32>
    %81 = arith.addf %79, %80 : vector<2x128xf32>
    %82 = arith.mulf %71, %49 : vector<2x128xf32>
    %83 = arith.mulf %63, %73 : vector<2x128xf32>
    %84 = arith.addf %82, %83 : vector<2x128xf32>
    %85 = math.tanh %84 : vector<2x128xf32>
    %86 = arith.mulf %81, %85 : vector<2x128xf32>
    %c8_46 = arith.constant 8 : index
    %c0_47 = arith.constant 0 : index
    %87 = vector.load %arg15[%c8_46, %c0_47] : memref<64x128xf32, #tpu.memory_space<vmem>>, vector<2x128xf32>
    tpu.vector_store %arg15[%c8_46, %c0_47], %86 {strides = array<i32>} : memref<64x128xf32, #tpu.memory_space<vmem>>, vector<2x128xf32>,
    %c16 = arith.constant 16 : index
    %c0_48 = arith.constant 0 : index
    %88 = vector.load %arg14[%c16, %c0_48] : memref<64x512xf32, #tpu.memory_space<vmem>>, vector<2x512xf32>
    %cst_49 = arith.constant dense<0.000000e+00> : vector<2x512xf32>
    %89 = tpu.matmul %86, %5, %cst_49 {dimension_numbers = #tpu.dot_dimension_numbers<[1], [0], [0], [1], [0, 0, 1, 1], [], []>} : vector<2x128xf32>, vector<128x512xf32>, vector<2x512xf32> -> vector<2x512xf32>
    %90 = arith.addf %88, %89 : vector<2x512xf32>
    %91 = vector.extract_strided_slice %90 {offsets = [0, 0], sizes = [2, 128], strides = [1, 1]} : vector<2x512xf32> to vector<2x128xf32>
    %cst_50 = arith.constant 5.000000e-01 : f32
    %92 = vector.broadcast %cst_50 : f32 to vector<2x128xf32>
    %93 = arith.mulf %92, %91 : vector<2x128xf32>
    %94 = math.tanh %93 : vector<2x128xf32>
    %cst_51 = arith.constant 5.000000e-01 : f32
    %95 = vector.broadcast %cst_51 : f32 to vector<2x128xf32>
    %96 = arith.mulf %95, %94 : vector<2x128xf32>
    %cst_52 = arith.constant 5.000000e-01 : f32
    %97 = vector.broadcast %cst_52 : f32 to vector<2x128xf32>
    %98 = arith.addf %96, %97 : vector<2x128xf32>
    %99 = vector.extract_strided_slice %90 {offsets = [0, 128], sizes = [2, 128], strides = [1, 1]} : vector<2x512xf32> to vector<2x128xf32>
    %cst_53 = arith.constant 5.000000e-01 : f32
    %100 = vector.broadcast %cst_53 : f32 to vector<2x128xf32>
    %101 = arith.mulf %100, %99 : vector<2x128xf32>
    %102 = math.tanh %101 : vector<2x128xf32>
    %cst_54 = arith.constant 5.000000e-01 : f32
    %103 = vector.broadcast %cst_54 : f32 to vector<2x128xf32>
    %104 = arith.mulf %103, %102 : vector<2x128xf32>
    %cst_55 = arith.constant 5.000000e-01 : f32
    %105 = vector.broadcast %cst_55 : f32 to vector<2x128xf32>
    %106 = arith.addf %104, %105 : vector<2x128xf32>
    %107 = vector.extract_strided_slice %90 {offsets = [0, 256], sizes = [2, 128], strides = [1, 1]} : vector<2x512xf32> to vector<2x128xf32>
    %108 = math.tanh %107 : vector<2x128xf32>
    %109 = vector.extract_strided_slice %90 {offsets = [0, 384], sizes = [2, 128], strides = [1, 1]} : vector<2x512xf32> to vector<2x128xf32>
    %cst_56 = arith.constant 5.000000e-01 : f32
    %110 = vector.broadcast %cst_56 : f32 to vector<2x128xf32>
    %111 = arith.mulf %110, %109 : vector<2x128xf32>
    %112 = math.tanh %111 : vector<2x128xf32>
    %cst_57 = arith.constant 5.000000e-01 : f32
    %113 = vector.broadcast %cst_57 : f32 to vector<2x128xf32>
    %114 = arith.mulf %113, %112 : vector<2x128xf32>
    %cst_58 = arith.constant 5.000000e-01 : f32
    %115 = vector.broadcast %cst_58 : f32 to vector<2x128xf32>
    %116 = arith.addf %114, %115 : vector<2x128xf32>
    %117 = arith.mulf %106, %84 : vector<2x128xf32>
    %118 = arith.mulf %98, %108 : vector<2x128xf32>
    %119 = arith.addf %117, %118 : vector<2x128xf32>
    %120 = math.tanh %119 : vector<2x128xf32>
    %121 = arith.mulf %116, %120 : vector<2x128xf32>
    %c16_59 = arith.constant 16 : index
    %c0_60 = arith.constant 0 : index
    %122 = vector.load %arg15[%c16_59, %c0_60] : memref<64x128xf32, #tpu.memory_space<vmem>>, vector<2x128xf32>
    tpu.vector_store %arg15[%c16_59, %c0_60], %121 {strides = array<i32>} : memref<64x128xf32, #tpu.memory_space<vmem>>, vector<2x128xf32>,
    %c24 = arith.constant 24 : index
    %c0_61 = arith.constant 0 : index
    %123 = vector.load %arg14[%c24, %c0_61] : memref<64x512xf32, #tpu.memory_space<vmem>>, vector<2x512xf32>
    %cst_62 = arith.constant dense<0.000000e+00> : vector<2x512xf32>
    %124 = tpu.matmul %121, %5, %cst_62 {dimension_numbers = #tpu.dot_dimension_numbers<[1], [0], [0], [1], [0, 0, 1, 1], [], []>} : vector<2x128xf32>, vector<128x512xf32>, vector<2x512xf32> -> vector<2x512xf32>
    %125 = arith.addf %123, %124 : vector<2x512xf32>
    %126 = vector.extract_strided_slice %125 {offsets = [0, 0], sizes = [2, 128], strides = [1, 1]} : vector<2x512xf32> to vector<2x128xf32>
    %cst_63 = arith.constant 5.000000e-01 : f32
    %127 = vector.broadcast %cst_63 : f32 to vector<2x128xf32>
    %128 = arith.mulf %127, %126 : vector<2x128xf32>
    %129 = math.tanh %128 : vector<2x128xf32>
    %cst_64 = arith.constant 5.000000e-01 : f32
    %130 = vector.broadcast %cst_64 : f32 to vector<2x128xf32>
    %131 = arith.mulf %130, %129 : vector<2x128xf32>
    %cst_65 = arith.constant 5.000000e-01 : f32
    %132 = vector.broadcast %cst_65 : f32 to vector<2x128xf32>
    %133 = arith.addf %131, %132 : vector<2x128xf32>
    %134 = vector.extract_strided_slice %125 {offsets = [0, 128], sizes = [2, 128], strides = [1, 1]} : vector<2x512xf32> to vector<2x128xf32>
    %cst_66 = arith.constant 5.000000e-01 : f32
    %135 = vector.broadcast %cst_66 : f32 to vector<2x128xf32>
    %136 = arith.mulf %135, %134 : vector<2x128xf32>
    %137 = math.tanh %136 : vector<2x128xf32>
    %cst_67 = arith.constant 5.000000e-01 : f32
    %138 = vector.broadcast %cst_67 : f32 to vector<2x128xf32>
    %139 = arith.mulf %138, %137 : vector<2x128xf32>
    %cst_68 = arith.constant 5.000000e-01 : f32
    %140 = vector.broadcast %cst_68 : f32 to vector<2x128xf32>
    %141 = arith.addf %139, %140 : vector<2x128xf32>
    %142 = vector.extract_strided_slice %125 {offsets = [0, 256], sizes = [2, 128], strides = [1, 1]} : vector<2x512xf32> to vector<2x128xf32>
    %143 = math.tanh %142 : vector<2x128xf32>
    %144 = vector.extract_strided_slice %125 {offsets = [0, 384], sizes = [2, 128], strides = [1, 1]} : vector<2x512xf32> to vector<2x128xf32>
    %cst_69 = arith.constant 5.000000e-01 : f32
    %145 = vector.broadcast %cst_69 : f32 to vector<2x128xf32>
    %146 = arith.mulf %145, %144 : vector<2x128xf32>
    %147 = math.tanh %146 : vector<2x128xf32>
    %cst_70 = arith.constant 5.000000e-01 : f32
    %148 = vector.broadcast %cst_70 : f32 to vector<2x128xf32>
    %149 = arith.mulf %148, %147 : vector<2x128xf32>
    %cst_71 = arith.constant 5.000000e-01 : f32
    %150 = vector.broadcast %cst_71 : f32 to vector<2x128xf32>
    %151 = arith.addf %149, %150 : vector<2x128xf32>
    %152 = arith.mulf %141, %119 : vector<2x128xf32>
    %153 = arith.mulf %133, %143 : vector<2x128xf32>
    %154 = arith.addf %152, %153 : vector<2x128xf32>
    %155 = math.tanh %154 : vector<2x128xf32>
    %156 = arith.mulf %151, %155 : vector<2x128xf32>
    %c24_72 = arith.constant 24 : index
    %c0_73 = arith.constant 0 : index
    %157 = vector.load %arg15[%c24_72, %c0_73] : memref<64x128xf32, #tpu.memory_space<vmem>>, vector<2x128xf32>
    tpu.vector_store %arg15[%c24_72, %c0_73], %156 {strides = array<i32>} : memref<64x128xf32, #tpu.memory_space<vmem>>, vector<2x128xf32>,
    %c32 = arith.constant 32 : index
    %c0_74 = arith.constant 0 : index
    %158 = vector.load %arg14[%c32, %c0_74] : memref<64x512xf32, #tpu.memory_space<vmem>>, vector<2x512xf32>
    %cst_75 = arith.constant dense<0.000000e+00> : vector<2x512xf32>
    %159 = tpu.matmul %156, %5, %cst_75 {dimension_numbers = #tpu.dot_dimension_numbers<[1], [0], [0], [1], [0, 0, 1, 1], [], []>} : vector<2x128xf32>, vector<128x512xf32>, vector<2x512xf32> -> vector<2x512xf32>
    %160 = arith.addf %158, %159 : vector<2x512xf32>
    %161 = vector.extract_strided_slice %160 {offsets = [0, 0], sizes = [2, 128], strides = [1, 1]} : vector<2x512xf32> to vector<2x128xf32>
    %cst_76 = arith.constant 5.000000e-01 : f32
    %162 = vector.broadcast %cst_76 : f32 to vector<2x128xf32>
    %163 = arith.mulf %162, %161 : vector<2x128xf32>
    %164 = math.tanh %163 : vector<2x128xf32>
    %cst_77 = arith.constant 5.000000e-01 : f32
    %165 = vector.broadcast %cst_77 : f32 to vector<2x128xf32>
    %166 = arith.mulf %165, %164 : vector<2x128xf32>
    %cst_78 = arith.constant 5.000000e-01 : f32
    %167 = vector.broadcast %cst_78 : f32 to vector<2x128xf32>
    %168 = arith.addf %166, %167 : vector<2x128xf32>
    %169 = vector.extract_strided_slice %160 {offsets = [0, 128], sizes = [2, 128], strides = [1, 1]} : vector<2x512xf32> to vector<2x128xf32>
    %cst_79 = arith.constant 5.000000e-01 : f32
    %170 = vector.broadcast %cst_79 : f32 to vector<2x128xf32>
    %171 = arith.mulf %170, %169 : vector<2x128xf32>
    %172 = math.tanh %171 : vector<2x128xf32>
    %cst_80 = arith.constant 5.000000e-01 : f32
    %173 = vector.broadcast %cst_80 : f32 to vector<2x128xf32>
    %174 = arith.mulf %173, %172 : vector<2x128xf32>
    %cst_81 = arith.constant 5.000000e-01 : f32
    %175 = vector.broadcast %cst_81 : f32 to vector<2x128xf32>
    %176 = arith.addf %174, %175 : vector<2x128xf32>
    %177 = vector.extract_strided_slice %160 {offsets = [0, 256], sizes = [2, 128], strides = [1, 1]} : vector<2x512xf32> to vector<2x128xf32>
    %178 = math.tanh %177 : vector<2x128xf32>
    %179 = vector.extract_strided_slice %160 {offsets = [0, 384], sizes = [2, 128], strides = [1, 1]} : vector<2x512xf32> to vector<2x128xf32>
    %cst_82 = arith.constant 5.000000e-01 : f32
    %180 = vector.broadcast %cst_82 : f32 to vector<2x128xf32>
    %181 = arith.mulf %180, %179 : vector<2x128xf32>
    %182 = math.tanh %181 : vector<2x128xf32>
    %cst_83 = arith.constant 5.000000e-01 : f32
    %183 = vector.broadcast %cst_83 : f32 to vector<2x128xf32>
    %184 = arith.mulf %183, %182 : vector<2x128xf32>
    %cst_84 = arith.constant 5.000000e-01 : f32
    %185 = vector.broadcast %cst_84 : f32 to vector<2x128xf32>
    %186 = arith.addf %184, %185 : vector<2x128xf32>
    %187 = arith.mulf %176, %154 : vector<2x128xf32>
    %188 = arith.mulf %168, %178 : vector<2x128xf32>
    %189 = arith.addf %187, %188 : vector<2x128xf32>
    %190 = math.tanh %189 : vector<2x128xf32>
    %191 = arith.mulf %186, %190 : vector<2x128xf32>
    %c32_85 = arith.constant 32 : index
    %c0_86 = arith.constant 0 : index
    %192 = vector.load %arg15[%c32_85, %c0_86] : memref<64x128xf32, #tpu.memory_space<vmem>>, vector<2x128xf32>
    tpu.vector_store %arg15[%c32_85, %c0_86], %191 {strides = array<i32>} : memref<64x128xf32, #tpu.memory_space<vmem>>, vector<2x128xf32>,
    %c40 = arith.constant 40 : index
    %c0_87 = arith.constant 0 : index
    %193 = vector.load %arg14[%c40, %c0_87] : memref<64x512xf32, #tpu.memory_space<vmem>>, vector<2x512xf32>
    %cst_88 = arith.constant dense<0.000000e+00> : vector<2x512xf32>
    %194 = tpu.matmul %191, %5, %cst_88 {dimension_numbers = #tpu.dot_dimension_numbers<[1], [0], [0], [1], [0, 0, 1, 1], [], []>} : vector<2x128xf32>, vector<128x512xf32>, vector<2x512xf32> -> vector<2x512xf32>
    %195 = arith.addf %193, %194 : vector<2x512xf32>
    %196 = vector.extract_strided_slice %195 {offsets = [0, 0], sizes = [2, 128], strides = [1, 1]} : vector<2x512xf32> to vector<2x128xf32>
    %cst_89 = arith.constant 5.000000e-01 : f32
    %197 = vector.broadcast %cst_89 : f32 to vector<2x128xf32>
    %198 = arith.mulf %197, %196 : vector<2x128xf32>
    %199 = math.tanh %198 : vector<2x128xf32>
    %cst_90 = arith.constant 5.000000e-01 : f32
    %200 = vector.broadcast %cst_90 : f32 to vector<2x128xf32>
    %201 = arith.mulf %200, %199 : vector<2x128xf32>
    %cst_91 = arith.constant 5.000000e-01 : f32
    %202 = vector.broadcast %cst_91 : f32 to vector<2x128xf32>
    %203 = arith.addf %201, %202 : vector<2x128xf32>
    %204 = vector.extract_strided_slice %195 {offsets = [0, 128], sizes = [2, 128], strides = [1, 1]} : vector<2x512xf32> to vector<2x128xf32>
    %cst_92 = arith.constant 5.000000e-01 : f32
    %205 = vector.broadcast %cst_92 : f32 to vector<2x128xf32>
    %206 = arith.mulf %205, %204 : vector<2x128xf32>
    %207 = math.tanh %206 : vector<2x128xf32>
    %cst_93 = arith.constant 5.000000e-01 : f32
    %208 = vector.broadcast %cst_93 : f32 to vector<2x128xf32>
    %209 = arith.mulf %208, %207 : vector<2x128xf32>
    %cst_94 = arith.constant 5.000000e-01 : f32
    %210 = vector.broadcast %cst_94 : f32 to vector<2x128xf32>
    %211 = arith.addf %209, %210 : vector<2x128xf32>
    %212 = vector.extract_strided_slice %195 {offsets = [0, 256], sizes = [2, 128], strides = [1, 1]} : vector<2x512xf32> to vector<2x128xf32>
    %213 = math.tanh %212 : vector<2x128xf32>
    %214 = vector.extract_strided_slice %195 {offsets = [0, 384], sizes = [2, 128], strides = [1, 1]} : vector<2x512xf32> to vector<2x128xf32>
    %cst_95 = arith.constant 5.000000e-01 : f32
    %215 = vector.broadcast %cst_95 : f32 to vector<2x128xf32>
    %216 = arith.mulf %215, %214 : vector<2x128xf32>
    %217 = math.tanh %216 : vector<2x128xf32>
    %cst_96 = arith.constant 5.000000e-01 : f32
    %218 = vector.broadcast %cst_96 : f32 to vector<2x128xf32>
    %219 = arith.mulf %218, %217 : vector<2x128xf32>
    %cst_97 = arith.constant 5.000000e-01 : f32
    %220 = vector.broadcast %cst_97 : f32 to vector<2x128xf32>
    %221 = arith.addf %219, %220 : vector<2x128xf32>
    %222 = arith.mulf %211, %189 : vector<2x128xf32>
    %223 = arith.mulf %203, %213 : vector<2x128xf32>
    %224 = arith.addf %222, %223 : vector<2x128xf32>
    %225 = math.tanh %224 : vector<2x128xf32>
    %226 = arith.mulf %221, %225 : vector<2x128xf32>
    %c40_98 = arith.constant 40 : index
    %c0_99 = arith.constant 0 : index
    %227 = vector.load %arg15[%c40_98, %c0_99] : memref<64x128xf32, #tpu.memory_space<vmem>>, vector<2x128xf32>
    tpu.vector_store %arg15[%c40_98, %c0_99], %226 {strides = array<i32>} : memref<64x128xf32, #tpu.memory_space<vmem>>, vector<2x128xf32>,
    %c48 = arith.constant 48 : index
    %c0_100 = arith.constant 0 : index
    %228 = vector.load %arg14[%c48, %c0_100] : memref<64x512xf32, #tpu.memory_space<vmem>>, vector<2x512xf32>
    %cst_101 = arith.constant dense<0.000000e+00> : vector<2x512xf32>
    %229 = tpu.matmul %226, %5, %cst_101 {dimension_numbers = #tpu.dot_dimension_numbers<[1], [0], [0], [1], [0, 0, 1, 1], [], []>} : vector<2x128xf32>, vector<128x512xf32>, vector<2x512xf32> -> vector<2x512xf32>
    %230 = arith.addf %228, %229 : vector<2x512xf32>
    %231 = vector.extract_strided_slice %230 {offsets = [0, 0], sizes = [2, 128], strides = [1, 1]} : vector<2x512xf32> to vector<2x128xf32>
    %cst_102 = arith.constant 5.000000e-01 : f32
    %232 = vector.broadcast %cst_102 : f32 to vector<2x128xf32>
    %233 = arith.mulf %232, %231 : vector<2x128xf32>
    %234 = math.tanh %233 : vector<2x128xf32>
    %cst_103 = arith.constant 5.000000e-01 : f32
    %235 = vector.broadcast %cst_103 : f32 to vector<2x128xf32>
    %236 = arith.mulf %235, %234 : vector<2x128xf32>
    %cst_104 = arith.constant 5.000000e-01 : f32
    %237 = vector.broadcast %cst_104 : f32 to vector<2x128xf32>
    %238 = arith.addf %236, %237 : vector<2x128xf32>
    %239 = vector.extract_strided_slice %230 {offsets = [0, 128], sizes = [2, 128], strides = [1, 1]} : vector<2x512xf32> to vector<2x128xf32>
    %cst_105 = arith.constant 5.000000e-01 : f32
    %240 = vector.broadcast %cst_105 : f32 to vector<2x128xf32>
    %241 = arith.mulf %240, %239 : vector<2x128xf32>
    %242 = math.tanh %241 : vector<2x128xf32>
    %cst_106 = arith.constant 5.000000e-01 : f32
    %243 = vector.broadcast %cst_106 : f32 to vector<2x128xf32>
    %244 = arith.mulf %243, %242 : vector<2x128xf32>
    %cst_107 = arith.constant 5.000000e-01 : f32
    %245 = vector.broadcast %cst_107 : f32 to vector<2x128xf32>
    %246 = arith.addf %244, %245 : vector<2x128xf32>
    %247 = vector.extract_strided_slice %230 {offsets = [0, 256], sizes = [2, 128], strides = [1, 1]} : vector<2x512xf32> to vector<2x128xf32>
    %248 = math.tanh %247 : vector<2x128xf32>
    %249 = vector.extract_strided_slice %230 {offsets = [0, 384], sizes = [2, 128], strides = [1, 1]} : vector<2x512xf32> to vector<2x128xf32>
    %cst_108 = arith.constant 5.000000e-01 : f32
    %250 = vector.broadcast %cst_108 : f32 to vector<2x128xf32>
    %251 = arith.mulf %250, %249 : vector<2x128xf32>
    %252 = math.tanh %251 : vector<2x128xf32>
    %cst_109 = arith.constant 5.000000e-01 : f32
    %253 = vector.broadcast %cst_109 : f32 to vector<2x128xf32>
    %254 = arith.mulf %253, %252 : vector<2x128xf32>
    %cst_110 = arith.constant 5.000000e-01 : f32
    %255 = vector.broadcast %cst_110 : f32 to vector<2x128xf32>
    %256 = arith.addf %254, %255 : vector<2x128xf32>
    %257 = arith.mulf %246, %224 : vector<2x128xf32>
    %258 = arith.mulf %238, %248 : vector<2x128xf32>
    %259 = arith.addf %257, %258 : vector<2x128xf32>
    %260 = math.tanh %259 : vector<2x128xf32>
    %261 = arith.mulf %256, %260 : vector<2x128xf32>
    %c48_111 = arith.constant 48 : index
    %c0_112 = arith.constant 0 : index
    %262 = vector.load %arg15[%c48_111, %c0_112] : memref<64x128xf32, #tpu.memory_space<vmem>>, vector<2x128xf32>
    tpu.vector_store %arg15[%c48_111, %c0_112], %261 {strides = array<i32>} : memref<64x128xf32, #tpu.memory_space<vmem>>, vector<2x128xf32>,
    %c56 = arith.constant 56 : index
    %c0_113 = arith.constant 0 : index
    %263 = vector.load %arg14[%c56, %c0_113] : memref<64x512xf32, #tpu.memory_space<vmem>>, vector<2x512xf32>
    %cst_114 = arith.constant dense<0.000000e+00> : vector<2x512xf32>
    %264 = tpu.matmul %261, %5, %cst_114 {dimension_numbers = #tpu.dot_dimension_numbers<[1], [0], [0], [1], [0, 0, 1, 1], [], []>} : vector<2x128xf32>, vector<128x512xf32>, vector<2x512xf32> -> vector<2x512xf32>
    %265 = arith.addf %263, %264 : vector<2x512xf32>
    %266 = vector.extract_strided_slice %265 {offsets = [0, 0], sizes = [2, 128], strides = [1, 1]} : vector<2x512xf32> to vector<2x128xf32>
    %cst_115 = arith.constant 5.000000e-01 : f32
    %267 = vector.broadcast %cst_115 : f32 to vector<2x128xf32>
    %268 = arith.mulf %267, %266 : vector<2x128xf32>
    %269 = math.tanh %268 : vector<2x128xf32>
    %cst_116 = arith.constant 5.000000e-01 : f32
    %270 = vector.broadcast %cst_116 : f32 to vector<2x128xf32>
    %271 = arith.mulf %270, %269 : vector<2x128xf32>
    %cst_117 = arith.constant 5.000000e-01 : f32
    %272 = vector.broadcast %cst_117 : f32 to vector<2x128xf32>
    %273 = arith.addf %271, %272 : vector<2x128xf32>
    %274 = vector.extract_strided_slice %265 {offsets = [0, 128], sizes = [2, 128], strides = [1, 1]} : vector<2x512xf32> to vector<2x128xf32>
    %cst_118 = arith.constant 5.000000e-01 : f32
    %275 = vector.broadcast %cst_118 : f32 to vector<2x128xf32>
    %276 = arith.mulf %275, %274 : vector<2x128xf32>
    %277 = math.tanh %276 : vector<2x128xf32>
    %cst_119 = arith.constant 5.000000e-01 : f32
    %278 = vector.broadcast %cst_119 : f32 to vector<2x128xf32>
    %279 = arith.mulf %278, %277 : vector<2x128xf32>
    %cst_120 = arith.constant 5.000000e-01 : f32
    %280 = vector.broadcast %cst_120 : f32 to vector<2x128xf32>
    %281 = arith.addf %279, %280 : vector<2x128xf32>
    %282 = vector.extract_strided_slice %265 {offsets = [0, 256], sizes = [2, 128], strides = [1, 1]} : vector<2x512xf32> to vector<2x128xf32>
    %283 = math.tanh %282 : vector<2x128xf32>
    %284 = vector.extract_strided_slice %265 {offsets = [0, 384], sizes = [2, 128], strides = [1, 1]} : vector<2x512xf32> to vector<2x128xf32>
    %cst_121 = arith.constant 5.000000e-01 : f32
    %285 = vector.broadcast %cst_121 : f32 to vector<2x128xf32>
    %286 = arith.mulf %285, %284 : vector<2x128xf32>
    %287 = math.tanh %286 : vector<2x128xf32>
    %cst_122 = arith.constant 5.000000e-01 : f32
    %288 = vector.broadcast %cst_122 : f32 to vector<2x128xf32>
    %289 = arith.mulf %288, %287 : vector<2x128xf32>
    %cst_123 = arith.constant 5.000000e-01 : f32
    %290 = vector.broadcast %cst_123 : f32 to vector<2x128xf32>
    %291 = arith.addf %289, %290 : vector<2x128xf32>
    %292 = arith.mulf %281, %259 : vector<2x128xf32>
    %293 = arith.mulf %273, %283 : vector<2x128xf32>
    %294 = arith.addf %292, %293 : vector<2x128xf32>
    %295 = math.tanh %294 : vector<2x128xf32>
    %296 = arith.mulf %291, %295 : vector<2x128xf32>
    %c56_124 = arith.constant 56 : index
    %c0_125 = arith.constant 0 : index
    %297 = vector.load %arg15[%c56_124, %c0_125] : memref<64x128xf32, #tpu.memory_space<vmem>>, vector<2x128xf32>
    tpu.vector_store %arg15[%c56_124, %c0_125], %296 {strides = array<i32>} : memref<64x128xf32, #tpu.memory_space<vmem>>, vector<2x128xf32>,
    %c0_126 = arith.constant 0 : index
    %c0_127 = arith.constant 0 : index
    %c0_128 = arith.constant 0 : index
    %298 = vector.load %arg12[%c0_126, %c0_127, %c0_128] : memref<2x2x128xf32, #tpu.memory_space<vmem>>, vector<1x2x128xf32>
    %299 = vector.shape_cast %298 : vector<1x2x128xf32> to vector<2x128xf32>
    %300 = vector.shape_cast %296 : vector<2x128xf32> to vector<1x2x128xf32>
    tpu.vector_store %arg12[%c0_126, %c0_127, %c0_128], %300 {strides = array<i32>} : memref<2x2x128xf32, #tpu.memory_space<vmem>>, vector<1x2x128xf32>,
    %c0_129 = arith.constant 0 : index
    %c0_130 = arith.constant 0 : index
    %c0_131 = arith.constant 0 : index
    %301 = vector.load %arg13[%c0_129, %c0_130, %c0_131] : memref<2x2x128xf32, #tpu.memory_space<vmem>>, vector<1x2x128xf32>
    %302 = vector.shape_cast %301 : vector<1x2x128xf32> to vector<2x128xf32>
    %303 = vector.shape_cast %294 : vector<2x128xf32> to vector<1x2x128xf32>
    tpu.vector_store %arg13[%c0_129, %c0_130, %c0_131], %303 {strides = array<i32>} : memref<2x2x128xf32, #tpu.memory_space<vmem>>, vector<1x2x128xf32>,
    %c0_132 = arith.constant 0 : index
    %c0_133 = arith.constant 0 : index
    %304 = vector.load %arg6[%c0_132, %c0_133] : memref<128x512xf32, #tpu.memory_space<vmem>>, vector<128x512xf32>
    %c0_134 = arith.constant 0 : index
    %c0_135 = arith.constant 0 : index
    %305 = vector.load %arg7[%c0_134, %c0_135] : memref<128x512xf32, #tpu.memory_space<vmem>>, vector<128x512xf32>
    %c0_136 = arith.constant 0 : index
    %c0_137 = arith.constant 0 : index
    %306 = vector.load %arg8[%c0_136, %c0_137] : memref<1x512xf32, #tpu.memory_space<vmem>>, vector<1x512xf32>
    %c0_138 = arith.constant 0 : index
    %c0_139 = arith.constant 0 : index
    %307 = vector.load %arg15[%c0_138, %c0_139] : memref<64x128xf32, #tpu.memory_space<vmem>>, vector<64x128xf32>
    %cst_140 = arith.constant dense<0.000000e+00> : vector<64x512xf32>
    %308 = tpu.matmul %307, %304, %cst_140 {dimension_numbers = #tpu.dot_dimension_numbers<[1], [0], [0], [1], [0, 0, 1, 1], [], []>} : vector<64x128xf32>, vector<128x512xf32>, vector<64x512xf32> -> vector<64x512xf32>
    %309 = vector.broadcast %306 : vector<1x512xf32> to vector<64x512xf32>
    %310 = arith.addf %308, %309 : vector<64x512xf32>
    %c0_141 = arith.constant 0 : index
    %c0_142 = arith.constant 0 : index
    %311 = vector.load %arg14[%c0_141, %c0_142] : memref<64x512xf32, #tpu.memory_space<vmem>>, vector<64x512xf32>
    tpu.vector_store %arg14[%c0_141, %c0_142], %310 {strides = array<i32>} : memref<64x512xf32, #tpu.memory_space<vmem>>, vector<64x512xf32>,
    %c1 = arith.constant 1 : index
    %c0_143 = arith.constant 0 : index
    %c0_144 = arith.constant 0 : index
    %312 = vector.load %arg1[%c1, %c0_143, %c0_144] : memref<2x2x128xf32, #tpu.memory_space<vmem>>, vector<1x2x128xf32>
    %313 = vector.shape_cast %312 : vector<1x2x128xf32> to vector<2x128xf32>
    %c1_145 = arith.constant 1 : index
    %c0_146 = arith.constant 0 : index
    %c0_147 = arith.constant 0 : index
    %314 = vector.load %arg2[%c1_145, %c0_146, %c0_147] : memref<2x2x128xf32, #tpu.memory_space<vmem>>, vector<1x2x128xf32>
    %315 = vector.shape_cast %314 : vector<1x2x128xf32> to vector<2x128xf32>
    %c0_148 = arith.constant 0 : index
    %c0_149 = arith.constant 0 : index
    %316 = vector.load %arg14[%c0_148, %c0_149] : memref<64x512xf32, #tpu.memory_space<vmem>>, vector<2x512xf32>
    %cst_150 = arith.constant dense<0.000000e+00> : vector<2x512xf32>
    %317 = tpu.matmul %313, %305, %cst_150 {dimension_numbers = #tpu.dot_dimension_numbers<[1], [0], [0], [1], [0, 0, 1, 1], [], []>} : vector<2x128xf32>, vector<128x512xf32>, vector<2x512xf32> -> vector<2x512xf32>
    %318 = arith.addf %316, %317 : vector<2x512xf32>
    %319 = vector.extract_strided_slice %318 {offsets = [0, 0], sizes = [2, 128], strides = [1, 1]} : vector<2x512xf32> to vector<2x128xf32>
    %cst_151 = arith.constant 5.000000e-01 : f32
    %320 = vector.broadcast %cst_151 : f32 to vector<2x128xf32>
    %321 = arith.mulf %320, %319 : vector<2x128xf32>
    %322 = math.tanh %321 : vector<2x128xf32>
    %cst_152 = arith.constant 5.000000e-01 : f32
    %323 = vector.broadcast %cst_152 : f32 to vector<2x128xf32>
    %324 = arith.mulf %323, %322 : vector<2x128xf32>
    %cst_153 = arith.constant 5.000000e-01 : f32
    %325 = vector.broadcast %cst_153 : f32 to vector<2x128xf32>
    %326 = arith.addf %324, %325 : vector<2x128xf32>
    %327 = vector.extract_strided_slice %318 {offsets = [0, 128], sizes = [2, 128], strides = [1, 1]} : vector<2x512xf32> to vector<2x128xf32>
    %cst_154 = arith.constant 5.000000e-01 : f32
    %328 = vector.broadcast %cst_154 : f32 to vector<2x128xf32>
    %329 = arith.mulf %328, %327 : vector<2x128xf32>
    %330 = math.tanh %329 : vector<2x128xf32>
    %cst_155 = arith.constant 5.000000e-01 : f32
    %331 = vector.broadcast %cst_155 : f32 to vector<2x128xf32>
    %332 = arith.mulf %331, %330 : vector<2x128xf32>
    %cst_156 = arith.constant 5.000000e-01 : f32
    %333 = vector.broadcast %cst_156 : f32 to vector<2x128xf32>
    %334 = arith.addf %332, %333 : vector<2x128xf32>
    %335 = vector.extract_strided_slice %318 {offsets = [0, 256], sizes = [2, 128], strides = [1, 1]} : vector<2x512xf32> to vector<2x128xf32>
    %336 = math.tanh %335 : vector<2x128xf32>
    %337 = vector.extract_strided_slice %318 {offsets = [0, 384], sizes = [2, 128], strides = [1, 1]} : vector<2x512xf32> to vector<2x128xf32>
    %cst_157 = arith.constant 5.000000e-01 : f32
    %338 = vector.broadcast %cst_157 : f32 to vector<2x128xf32>
    %339 = arith.mulf %338, %337 : vector<2x128xf32>
    %340 = math.tanh %339 : vector<2x128xf32>
    %cst_158 = arith.constant 5.000000e-01 : f32
    %341 = vector.broadcast %cst_158 : f32 to vector<2x128xf32>
    %342 = arith.mulf %341, %340 : vector<2x128xf32>
    %cst_159 = arith.constant 5.000000e-01 : f32
    %343 = vector.broadcast %cst_159 : f32 to vector<2x128xf32>
    %344 = arith.addf %342, %343 : vector<2x128xf32>
    %345 = arith.mulf %334, %315 : vector<2x128xf32>
    %346 = arith.mulf %326, %336 : vector<2x128xf32>
    %347 = arith.addf %345, %346 : vector<2x128xf32>
    %348 = math.tanh %347 : vector<2x128xf32>
    %349 = arith.mulf %344, %348 : vector<2x128xf32>
    %c8_160 = arith.constant 8 : index
    %c0_161 = arith.constant 0 : index
    %350 = vector.load %arg14[%c8_160, %c0_161] : memref<64x512xf32, #tpu.memory_space<vmem>>, vector<2x512xf32>
    %cst_162 = arith.constant dense<0.000000e+00> : vector<2x512xf32>
    %351 = tpu.matmul %349, %305, %cst_162 {dimension_numbers = #tpu.dot_dimension_numbers<[1], [0], [0], [1], [0, 0, 1, 1], [], []>} : vector<2x128xf32>, vector<128x512xf32>, vector<2x512xf32> -> vector<2x512xf32>
    %352 = arith.addf %350, %351 : vector<2x512xf32>
    %353 = vector.extract_strided_slice %352 {offsets = [0, 0], sizes = [2, 128], strides = [1, 1]} : vector<2x512xf32> to vector<2x128xf32>
    %cst_163 = arith.constant 5.000000e-01 : f32
    %354 = vector.broadcast %cst_163 : f32 to vector<2x128xf32>
    %355 = arith.mulf %354, %353 : vector<2x128xf32>
    %356 = math.tanh %355 : vector<2x128xf32>
    %cst_164 = arith.constant 5.000000e-01 : f32
    %357 = vector.broadcast %cst_164 : f32 to vector<2x128xf32>
    %358 = arith.mulf %357, %356 : vector<2x128xf32>
    %cst_165 = arith.constant 5.000000e-01 : f32
    %359 = vector.broadcast %cst_165 : f32 to vector<2x128xf32>
    %360 = arith.addf %358, %359 : vector<2x128xf32>
    %361 = vector.extract_strided_slice %352 {offsets = [0, 128], sizes = [2, 128], strides = [1, 1]} : vector<2x512xf32> to vector<2x128xf32>
    %cst_166 = arith.constant 5.000000e-01 : f32
    %362 = vector.broadcast %cst_166 : f32 to vector<2x128xf32>
    %363 = arith.mulf %362, %361 : vector<2x128xf32>
    %364 = math.tanh %363 : vector<2x128xf32>
    %cst_167 = arith.constant 5.000000e-01 : f32
    %365 = vector.broadcast %cst_167 : f32 to vector<2x128xf32>
    %366 = arith.mulf %365, %364 : vector<2x128xf32>
    %cst_168 = arith.constant 5.000000e-01 : f32
    %367 = vector.broadcast %cst_168 : f32 to vector<2x128xf32>
    %368 = arith.addf %366, %367 : vector<2x128xf32>
    %369 = vector.extract_strided_slice %352 {offsets = [0, 256], sizes = [2, 128], strides = [1, 1]} : vector<2x512xf32> to vector<2x128xf32>
    %370 = math.tanh %369 : vector<2x128xf32>
    %371 = vector.extract_strided_slice %352 {offsets = [0, 384], sizes = [2, 128], strides = [1, 1]} : vector<2x512xf32> to vector<2x128xf32>
    %cst_169 = arith.constant 5.000000e-01 : f32
    %372 = vector.broadcast %cst_169 : f32 to vector<2x128xf32>
    %373 = arith.mulf %372, %371 : vector<2x128xf32>
    %374 = math.tanh %373 : vector<2x128xf32>
    %cst_170 = arith.constant 5.000000e-01 : f32
    %375 = vector.broadcast %cst_170 : f32 to vector<2x128xf32>
    %376 = arith.mulf %375, %374 : vector<2x128xf32>
    %cst_171 = arith.constant 5.000000e-01 : f32
    %377 = vector.broadcast %cst_171 : f32 to vector<2x128xf32>
    %378 = arith.addf %376, %377 : vector<2x128xf32>
    %379 = arith.mulf %368, %347 : vector<2x128xf32>
    %380 = arith.mulf %360, %370 : vector<2x128xf32>
    %381 = arith.addf %379, %380 : vector<2x128xf32>
    %382 = math.tanh %381 : vector<2x128xf32>
    %383 = arith.mulf %378, %382 : vector<2x128xf32>
    %c16_172 = arith.constant 16 : index
    %c0_173 = arith.constant 0 : index
    %384 = vector.load %arg14[%c16_172, %c0_173] : memref<64x512xf32, #tpu.memory_space<vmem>>, vector<2x512xf32>
    %cst_174 = arith.constant dense<0.000000e+00> : vector<2x512xf32>
    %385 = tpu.matmul %383, %305, %cst_174 {dimension_numbers = #tpu.dot_dimension_numbers<[1], [0], [0], [1], [0, 0, 1, 1], [], []>} : vector<2x128xf32>, vector<128x512xf32>, vector<2x512xf32> -> vector<2x512xf32>
    %386 = arith.addf %384, %385 : vector<2x512xf32>
    %387 = vector.extract_strided_slice %386 {offsets = [0, 0], sizes = [2, 128], strides = [1, 1]} : vector<2x512xf32> to vector<2x128xf32>
    %cst_175 = arith.constant 5.000000e-01 : f32
    %388 = vector.broadcast %cst_175 : f32 to vector<2x128xf32>
    %389 = arith.mulf %388, %387 : vector<2x128xf32>
    %390 = math.tanh %389 : vector<2x128xf32>
    %cst_176 = arith.constant 5.000000e-01 : f32
    %391 = vector.broadcast %cst_176 : f32 to vector<2x128xf32>
    %392 = arith.mulf %391, %390 : vector<2x128xf32>
    %cst_177 = arith.constant 5.000000e-01 : f32
    %393 = vector.broadcast %cst_177 : f32 to vector<2x128xf32>
    %394 = arith.addf %392, %393 : vector<2x128xf32>
    %395 = vector.extract_strided_slice %386 {offsets = [0, 128], sizes = [2, 128], strides = [1, 1]} : vector<2x512xf32> to vector<2x128xf32>
    %cst_178 = arith.constant 5.000000e-01 : f32
    %396 = vector.broadcast %cst_178 : f32 to vector<2x128xf32>
    %397 = arith.mulf %396, %395 : vector<2x128xf32>
    %398 = math.tanh %397 : vector<2x128xf32>
    %cst_179 = arith.constant 5.000000e-01 : f32
    %399 = vector.broadcast %cst_179 : f32 to vector<2x128xf32>
    %400 = arith.mulf %399, %398 : vector<2x128xf32>
    %cst_180 = arith.constant 5.000000e-01 : f32
    %401 = vector.broadcast %cst_180 : f32 to vector<2x128xf32>
    %402 = arith.addf %400, %401 : vector<2x128xf32>
    %403 = vector.extract_strided_slice %386 {offsets = [0, 256], sizes = [2, 128], strides = [1, 1]} : vector<2x512xf32> to vector<2x128xf32>
    %404 = math.tanh %403 : vector<2x128xf32>
    %405 = vector.extract_strided_slice %386 {offsets = [0, 384], sizes = [2, 128], strides = [1, 1]} : vector<2x512xf32> to vector<2x128xf32>
    %cst_181 = arith.constant 5.000000e-01 : f32
    %406 = vector.broadcast %cst_181 : f32 to vector<2x128xf32>
    %407 = arith.mulf %406, %405 : vector<2x128xf32>
    %408 = math.tanh %407 : vector<2x128xf32>
    %cst_182 = arith.constant 5.000000e-01 : f32
    %409 = vector.broadcast %cst_182 : f32 to vector<2x128xf32>
    %410 = arith.mulf %409, %408 : vector<2x128xf32>
    %cst_183 = arith.constant 5.000000e-01 : f32
    %411 = vector.broadcast %cst_183 : f32 to vector<2x128xf32>
    %412 = arith.addf %410, %411 : vector<2x128xf32>
    %413 = arith.mulf %402, %381 : vector<2x128xf32>
    %414 = arith.mulf %394, %404 : vector<2x128xf32>
    %415 = arith.addf %413, %414 : vector<2x128xf32>
    %416 = math.tanh %415 : vector<2x128xf32>
    %417 = arith.mulf %412, %416 : vector<2x128xf32>
    %c24_184 = arith.constant 24 : index
    %c0_185 = arith.constant 0 : index
    %418 = vector.load %arg14[%c24_184, %c0_185] : memref<64x512xf32, #tpu.memory_space<vmem>>, vector<2x512xf32>
    %cst_186 = arith.constant dense<0.000000e+00> : vector<2x512xf32>
    %419 = tpu.matmul %417, %305, %cst_186 {dimension_numbers = #tpu.dot_dimension_numbers<[1], [0], [0], [1], [0, 0, 1, 1], [], []>} : vector<2x128xf32>, vector<128x512xf32>, vector<2x512xf32> -> vector<2x512xf32>
    %420 = arith.addf %418, %419 : vector<2x512xf32>
    %421 = vector.extract_strided_slice %420 {offsets = [0, 0], sizes = [2, 128], strides = [1, 1]} : vector<2x512xf32> to vector<2x128xf32>
    %cst_187 = arith.constant 5.000000e-01 : f32
    %422 = vector.broadcast %cst_187 : f32 to vector<2x128xf32>
    %423 = arith.mulf %422, %421 : vector<2x128xf32>
    %424 = math.tanh %423 : vector<2x128xf32>
    %cst_188 = arith.constant 5.000000e-01 : f32
    %425 = vector.broadcast %cst_188 : f32 to vector<2x128xf32>
    %426 = arith.mulf %425, %424 : vector<2x128xf32>
    %cst_189 = arith.constant 5.000000e-01 : f32
    %427 = vector.broadcast %cst_189 : f32 to vector<2x128xf32>
    %428 = arith.addf %426, %427 : vector<2x128xf32>
    %429 = vector.extract_strided_slice %420 {offsets = [0, 128], sizes = [2, 128], strides = [1, 1]} : vector<2x512xf32> to vector<2x128xf32>
    %cst_190 = arith.constant 5.000000e-01 : f32
    %430 = vector.broadcast %cst_190 : f32 to vector<2x128xf32>
    %431 = arith.mulf %430, %429 : vector<2x128xf32>
    %432 = math.tanh %431 : vector<2x128xf32>
    %cst_191 = arith.constant 5.000000e-01 : f32
    %433 = vector.broadcast %cst_191 : f32 to vector<2x128xf32>
    %434 = arith.mulf %433, %432 : vector<2x128xf32>
    %cst_192 = arith.constant 5.000000e-01 : f32
    %435 = vector.broadcast %cst_192 : f32 to vector<2x128xf32>
    %436 = arith.addf %434, %435 : vector<2x128xf32>
    %437 = vector.extract_strided_slice %420 {offsets = [0, 256], sizes = [2, 128], strides = [1, 1]} : vector<2x512xf32> to vector<2x128xf32>
    %438 = math.tanh %437 : vector<2x128xf32>
    %439 = vector.extract_strided_slice %420 {offsets = [0, 384], sizes = [2, 128], strides = [1, 1]} : vector<2x512xf32> to vector<2x128xf32>
    %cst_193 = arith.constant 5.000000e-01 : f32
    %440 = vector.broadcast %cst_193 : f32 to vector<2x128xf32>
    %441 = arith.mulf %440, %439 : vector<2x128xf32>
    %442 = math.tanh %441 : vector<2x128xf32>
    %cst_194 = arith.constant 5.000000e-01 : f32
    %443 = vector.broadcast %cst_194 : f32 to vector<2x128xf32>
    %444 = arith.mulf %443, %442 : vector<2x128xf32>
    %cst_195 = arith.constant 5.000000e-01 : f32
    %445 = vector.broadcast %cst_195 : f32 to vector<2x128xf32>
    %446 = arith.addf %444, %445 : vector<2x128xf32>
    %447 = arith.mulf %436, %415 : vector<2x128xf32>
    %448 = arith.mulf %428, %438 : vector<2x128xf32>
    %449 = arith.addf %447, %448 : vector<2x128xf32>
    %450 = math.tanh %449 : vector<2x128xf32>
    %451 = arith.mulf %446, %450 : vector<2x128xf32>
    %c32_196 = arith.constant 32 : index
    %c0_197 = arith.constant 0 : index
    %452 = vector.load %arg14[%c32_196, %c0_197] : memref<64x512xf32, #tpu.memory_space<vmem>>, vector<2x512xf32>
    %cst_198 = arith.constant dense<0.000000e+00> : vector<2x512xf32>
    %453 = tpu.matmul %451, %305, %cst_198 {dimension_numbers = #tpu.dot_dimension_numbers<[1], [0], [0], [1], [0, 0, 1, 1], [], []>} : vector<2x128xf32>, vector<128x512xf32>, vector<2x512xf32> -> vector<2x512xf32>
    %454 = arith.addf %452, %453 : vector<2x512xf32>
    %455 = vector.extract_strided_slice %454 {offsets = [0, 0], sizes = [2, 128], strides = [1, 1]} : vector<2x512xf32> to vector<2x128xf32>
    %cst_199 = arith.constant 5.000000e-01 : f32
    %456 = vector.broadcast %cst_199 : f32 to vector<2x128xf32>
    %457 = arith.mulf %456, %455 : vector<2x128xf32>
    %458 = math.tanh %457 : vector<2x128xf32>
    %cst_200 = arith.constant 5.000000e-01 : f32
    %459 = vector.broadcast %cst_200 : f32 to vector<2x128xf32>
    %460 = arith.mulf %459, %458 : vector<2x128xf32>
    %cst_201 = arith.constant 5.000000e-01 : f32
    %461 = vector.broadcast %cst_201 : f32 to vector<2x128xf32>
    %462 = arith.addf %460, %461 : vector<2x128xf32>
    %463 = vector.extract_strided_slice %454 {offsets = [0, 128], sizes = [2, 128], strides = [1, 1]} : vector<2x512xf32> to vector<2x128xf32>
    %cst_202 = arith.constant 5.000000e-01 : f32
    %464 = vector.broadcast %cst_202 : f32 to vector<2x128xf32>
    %465 = arith.mulf %464, %463 : vector<2x128xf32>
    %466 = math.tanh %465 : vector<2x128xf32>
    %cst_203 = arith.constant 5.000000e-01 : f32
    %467 = vector.broadcast %cst_203 : f32 to vector<2x128xf32>
    %468 = arith.mulf %467, %466 : vector<2x128xf32>
    %cst_204 = arith.constant 5.000000e-01 : f32
    %469 = vector.broadcast %cst_204 : f32 to vector<2x128xf32>
    %470 = arith.addf %468, %469 : vector<2x128xf32>
    %471 = vector.extract_strided_slice %454 {offsets = [0, 256], sizes = [2, 128], strides = [1, 1]} : vector<2x512xf32> to vector<2x128xf32>
    %472 = math.tanh %471 : vector<2x128xf32>
    %473 = vector.extract_strided_slice %454 {offsets = [0, 384], sizes = [2, 128], strides = [1, 1]} : vector<2x512xf32> to vector<2x128xf32>
    %cst_205 = arith.constant 5.000000e-01 : f32
    %474 = vector.broadcast %cst_205 : f32 to vector<2x128xf32>
    %475 = arith.mulf %474, %473 : vector<2x128xf32>
    %476 = math.tanh %475 : vector<2x128xf32>
    %cst_206 = arith.constant 5.000000e-01 : f32
    %477 = vector.broadcast %cst_206 : f32 to vector<2x128xf32>
    %478 = arith.mulf %477, %476 : vector<2x128xf32>
    %cst_207 = arith.constant 5.000000e-01 : f32
    %479 = vector.broadcast %cst_207 : f32 to vector<2x128xf32>
    %480 = arith.addf %478, %479 : vector<2x128xf32>
    %481 = arith.mulf %470, %449 : vector<2x128xf32>
    %482 = arith.mulf %462, %472 : vector<2x128xf32>
    %483 = arith.addf %481, %482 : vector<2x128xf32>
    %484 = math.tanh %483 : vector<2x128xf32>
    %485 = arith.mulf %480, %484 : vector<2x128xf32>
    %c40_208 = arith.constant 40 : index
    %c0_209 = arith.constant 0 : index
    %486 = vector.load %arg14[%c40_208, %c0_209] : memref<64x512xf32, #tpu.memory_space<vmem>>, vector<2x512xf32>
    %cst_210 = arith.constant dense<0.000000e+00> : vector<2x512xf32>
    %487 = tpu.matmul %485, %305, %cst_210 {dimension_numbers = #tpu.dot_dimension_numbers<[1], [0], [0], [1], [0, 0, 1, 1], [], []>} : vector<2x128xf32>, vector<128x512xf32>, vector<2x512xf32> -> vector<2x512xf32>
    %488 = arith.addf %486, %487 : vector<2x512xf32>
    %489 = vector.extract_strided_slice %488 {offsets = [0, 0], sizes = [2, 128], strides = [1, 1]} : vector<2x512xf32> to vector<2x128xf32>
    %cst_211 = arith.constant 5.000000e-01 : f32
    %490 = vector.broadcast %cst_211 : f32 to vector<2x128xf32>
    %491 = arith.mulf %490, %489 : vector<2x128xf32>
    %492 = math.tanh %491 : vector<2x128xf32>
    %cst_212 = arith.constant 5.000000e-01 : f32
    %493 = vector.broadcast %cst_212 : f32 to vector<2x128xf32>
    %494 = arith.mulf %493, %492 : vector<2x128xf32>
    %cst_213 = arith.constant 5.000000e-01 : f32
    %495 = vector.broadcast %cst_213 : f32 to vector<2x128xf32>
    %496 = arith.addf %494, %495 : vector<2x128xf32>
    %497 = vector.extract_strided_slice %488 {offsets = [0, 128], sizes = [2, 128], strides = [1, 1]} : vector<2x512xf32> to vector<2x128xf32>
    %cst_214 = arith.constant 5.000000e-01 : f32
    %498 = vector.broadcast %cst_214 : f32 to vector<2x128xf32>
    %499 = arith.mulf %498, %497 : vector<2x128xf32>
    %500 = math.tanh %499 : vector<2x128xf32>
    %cst_215 = arith.constant 5.000000e-01 : f32
    %501 = vector.broadcast %cst_215 : f32 to vector<2x128xf32>
    %502 = arith.mulf %501, %500 : vector<2x128xf32>
    %cst_216 = arith.constant 5.000000e-01 : f32
    %503 = vector.broadcast %cst_216 : f32 to vector<2x128xf32>
    %504 = arith.addf %502, %503 : vector<2x128xf32>
    %505 = vector.extract_strided_slice %488 {offsets = [0, 256], sizes = [2, 128], strides = [1, 1]} : vector<2x512xf32> to vector<2x128xf32>
    %506 = math.tanh %505 : vector<2x128xf32>
    %507 = vector.extract_strided_slice %488 {offsets = [0, 384], sizes = [2, 128], strides = [1, 1]} : vector<2x512xf32> to vector<2x128xf32>
    %cst_217 = arith.constant 5.000000e-01 : f32
    %508 = vector.broadcast %cst_217 : f32 to vector<2x128xf32>
    %509 = arith.mulf %508, %507 : vector<2x128xf32>
    %510 = math.tanh %509 : vector<2x128xf32>
    %cst_218 = arith.constant 5.000000e-01 : f32
    %511 = vector.broadcast %cst_218 : f32 to vector<2x128xf32>
    %512 = arith.mulf %511, %510 : vector<2x128xf32>
    %cst_219 = arith.constant 5.000000e-01 : f32
    %513 = vector.broadcast %cst_219 : f32 to vector<2x128xf32>
    %514 = arith.addf %512, %513 : vector<2x128xf32>
    %515 = arith.mulf %504, %483 : vector<2x128xf32>
    %516 = arith.mulf %496, %506 : vector<2x128xf32>
    %517 = arith.addf %515, %516 : vector<2x128xf32>
    %518 = math.tanh %517 : vector<2x128xf32>
    %519 = arith.mulf %514, %518 : vector<2x128xf32>
    %c48_220 = arith.constant 48 : index
    %c0_221 = arith.constant 0 : index
    %520 = vector.load %arg14[%c48_220, %c0_221] : memref<64x512xf32, #tpu.memory_space<vmem>>, vector<2x512xf32>
    %cst_222 = arith.constant dense<0.000000e+00> : vector<2x512xf32>
    %521 = tpu.matmul %519, %305, %cst_222 {dimension_numbers = #tpu.dot_dimension_numbers<[1], [0], [0], [1], [0, 0, 1, 1], [], []>} : vector<2x128xf32>, vector<128x512xf32>, vector<2x512xf32> -> vector<2x512xf32>
    %522 = arith.addf %520, %521 : vector<2x512xf32>
    %523 = vector.extract_strided_slice %522 {offsets = [0, 0], sizes = [2, 128], strides = [1, 1]} : vector<2x512xf32> to vector<2x128xf32>
    %cst_223 = arith.constant 5.000000e-01 : f32
    %524 = vector.broadcast %cst_223 : f32 to vector<2x128xf32>
    %525 = arith.mulf %524, %523 : vector<2x128xf32>
    %526 = math.tanh %525 : vector<2x128xf32>
    %cst_224 = arith.constant 5.000000e-01 : f32
    %527 = vector.broadcast %cst_224 : f32 to vector<2x128xf32>
    %528 = arith.mulf %527, %526 : vector<2x128xf32>
    %cst_225 = arith.constant 5.000000e-01 : f32
    %529 = vector.broadcast %cst_225 : f32 to vector<2x128xf32>
    %530 = arith.addf %528, %529 : vector<2x128xf32>
    %531 = vector.extract_strided_slice %522 {offsets = [0, 128], sizes = [2, 128], strides = [1, 1]} : vector<2x512xf32> to vector<2x128xf32>
    %cst_226 = arith.constant 5.000000e-01 : f32
    %532 = vector.broadcast %cst_226 : f32 to vector<2x128xf32>
    %533 = arith.mulf %532, %531 : vector<2x128xf32>
    %534 = math.tanh %533 : vector<2x128xf32>
    %cst_227 = arith.constant 5.000000e-01 : f32
    %535 = vector.broadcast %cst_227 : f32 to vector<2x128xf32>
    %536 = arith.mulf %535, %534 : vector<2x128xf32>
    %cst_228 = arith.constant 5.000000e-01 : f32
    %537 = vector.broadcast %cst_228 : f32 to vector<2x128xf32>
    %538 = arith.addf %536, %537 : vector<2x128xf32>
    %539 = vector.extract_strided_slice %522 {offsets = [0, 256], sizes = [2, 128], strides = [1, 1]} : vector<2x512xf32> to vector<2x128xf32>
    %540 = math.tanh %539 : vector<2x128xf32>
    %541 = vector.extract_strided_slice %522 {offsets = [0, 384], sizes = [2, 128], strides = [1, 1]} : vector<2x512xf32> to vector<2x128xf32>
    %cst_229 = arith.constant 5.000000e-01 : f32
    %542 = vector.broadcast %cst_229 : f32 to vector<2x128xf32>
    %543 = arith.mulf %542, %541 : vector<2x128xf32>
    %544 = math.tanh %543 : vector<2x128xf32>
    %cst_230 = arith.constant 5.000000e-01 : f32
    %545 = vector.broadcast %cst_230 : f32 to vector<2x128xf32>
    %546 = arith.mulf %545, %544 : vector<2x128xf32>
    %cst_231 = arith.constant 5.000000e-01 : f32
    %547 = vector.broadcast %cst_231 : f32 to vector<2x128xf32>
    %548 = arith.addf %546, %547 : vector<2x128xf32>
    %549 = arith.mulf %538, %517 : vector<2x128xf32>
    %550 = arith.mulf %530, %540 : vector<2x128xf32>
    %551 = arith.addf %549, %550 : vector<2x128xf32>
    %552 = math.tanh %551 : vector<2x128xf32>
    %553 = arith.mulf %548, %552 : vector<2x128xf32>
    %c56_232 = arith.constant 56 : index
    %c0_233 = arith.constant 0 : index
    %554 = vector.load %arg14[%c56_232, %c0_233] : memref<64x512xf32, #tpu.memory_space<vmem>>, vector<2x512xf32>
    %cst_234 = arith.constant dense<0.000000e+00> : vector<2x512xf32>
    %555 = tpu.matmul %553, %305, %cst_234 {dimension_numbers = #tpu.dot_dimension_numbers<[1], [0], [0], [1], [0, 0, 1, 1], [], []>} : vector<2x128xf32>, vector<128x512xf32>, vector<2x512xf32> -> vector<2x512xf32>
    %556 = arith.addf %554, %555 : vector<2x512xf32>
    %557 = vector.extract_strided_slice %556 {offsets = [0, 0], sizes = [2, 128], strides = [1, 1]} : vector<2x512xf32> to vector<2x128xf32>
    %cst_235 = arith.constant 5.000000e-01 : f32
    %558 = vector.broadcast %cst_235 : f32 to vector<2x128xf32>
    %559 = arith.mulf %558, %557 : vector<2x128xf32>
    %560 = math.tanh %559 : vector<2x128xf32>
    %cst_236 = arith.constant 5.000000e-01 : f32
    %561 = vector.broadcast %cst_236 : f32 to vector<2x128xf32>
    %562 = arith.mulf %561, %560 : vector<2x128xf32>
    %cst_237 = arith.constant 5.000000e-01 : f32
    %563 = vector.broadcast %cst_237 : f32 to vector<2x128xf32>
    %564 = arith.addf %562, %563 : vector<2x128xf32>
    %565 = vector.extract_strided_slice %556 {offsets = [0, 128], sizes = [2, 128], strides = [1, 1]} : vector<2x512xf32> to vector<2x128xf32>
    %cst_238 = arith.constant 5.000000e-01 : f32
    %566 = vector.broadcast %cst_238 : f32 to vector<2x128xf32>
    %567 = arith.mulf %566, %565 : vector<2x128xf32>
    %568 = math.tanh %567 : vector<2x128xf32>
    %cst_239 = arith.constant 5.000000e-01 : f32
    %569 = vector.broadcast %cst_239 : f32 to vector<2x128xf32>
    %570 = arith.mulf %569, %568 : vector<2x128xf32>
    %cst_240 = arith.constant 5.000000e-01 : f32
    %571 = vector.broadcast %cst_240 : f32 to vector<2x128xf32>
    %572 = arith.addf %570, %571 : vector<2x128xf32>
    %573 = vector.extract_strided_slice %556 {offsets = [0, 256], sizes = [2, 128], strides = [1, 1]} : vector<2x512xf32> to vector<2x128xf32>
    %574 = math.tanh %573 : vector<2x128xf32>
    %575 = vector.extract_strided_slice %556 {offsets = [0, 384], sizes = [2, 128], strides = [1, 1]} : vector<2x512xf32> to vector<2x128xf32>
    %cst_241 = arith.constant 5.000000e-01 : f32
    %576 = vector.broadcast %cst_241 : f32 to vector<2x128xf32>
    %577 = arith.mulf %576, %575 : vector<2x128xf32>
    %578 = math.tanh %577 : vector<2x128xf32>
    %cst_242 = arith.constant 5.000000e-01 : f32
    %579 = vector.broadcast %cst_242 : f32 to vector<2x128xf32>
    %580 = arith.mulf %579, %578 : vector<2x128xf32>
    %cst_243 = arith.constant 5.000000e-01 : f32
    %581 = vector.broadcast %cst_243 : f32 to vector<2x128xf32>
    %582 = arith.addf %580, %581 : vector<2x128xf32>
    %583 = arith.mulf %572, %551 : vector<2x128xf32>
    %584 = arith.mulf %564, %574 : vector<2x128xf32>
    %585 = arith.addf %583, %584 : vector<2x128xf32>
    %586 = math.tanh %585 : vector<2x128xf32>
    %587 = arith.mulf %582, %586 : vector<2x128xf32>
    %c1_244 = arith.constant 1 : index
    %c0_245 = arith.constant 0 : index
    %c0_246 = arith.constant 0 : index
    %588 = vector.load %arg12[%c1_244, %c0_245, %c0_246] : memref<2x2x128xf32, #tpu.memory_space<vmem>>, vector<1x2x128xf32>
    %589 = vector.shape_cast %588 : vector<1x2x128xf32> to vector<2x128xf32>
    %590 = vector.shape_cast %587 : vector<2x128xf32> to vector<1x2x128xf32>
    tpu.vector_store %arg12[%c1_244, %c0_245, %c0_246], %590 {strides = array<i32>} : memref<2x2x128xf32, #tpu.memory_space<vmem>>, vector<1x2x128xf32>,
    %c1_247 = arith.constant 1 : index
    %c0_248 = arith.constant 0 : index
    %c0_249 = arith.constant 0 : index
    %591 = vector.load %arg13[%c1_247, %c0_248, %c0_249] : memref<2x2x128xf32, #tpu.memory_space<vmem>>, vector<1x2x128xf32>
    %592 = vector.shape_cast %591 : vector<1x2x128xf32> to vector<2x128xf32>
    %593 = vector.shape_cast %585 : vector<2x128xf32> to vector<1x2x128xf32>
    tpu.vector_store %arg13[%c1_247, %c0_248, %c0_249], %593 {strides = array<i32>} : memref<2x2x128xf32, #tpu.memory_space<vmem>>, vector<1x2x128xf32>,
    %cst_250 = arith.constant dense<0.000000e+00> : vector<2x128xf32>
    %594 = tpu.matmul %587, %0, %cst_250 {dimension_numbers = #tpu.dot_dimension_numbers<[1], [0], [0], [1], [0, 0, 1, 1], [], []>} : vector<2x128xf32>, vector<128x128xf32>, vector<2x128xf32> -> vector<2x128xf32>
    %595 = vector.broadcast %1 : vector<1x128xf32> to vector<2x128xf32>
    %596 = arith.addf %594, %595 : vector<2x128xf32>
    %c0_251 = arith.constant 0 : index
    %c0_252 = arith.constant 0 : index
    %597 = vector.load %arg11[%c0_251, %c0_252] : memref<2x128xf32, #tpu.memory_space<vmem>>, vector<2x128xf32>
    tpu.vector_store %arg11[%c0_251, %c0_252], %596 {strides = array<i32>} : memref<2x128xf32, #tpu.memory_space<vmem>>, vector<2x128xf32>,
    return
  }
}

</mosaic_0001>

<llo_original>
// kernel: lstm_model_forward.1
$region0: #{lstm_model_forward.1}
  #allocation0 [shape = 'u32[]', space=smem, size = 0x4, offset = 0x4, fixed_abs, tag = 'smem constant byte address 0x4 - core index']
  #allocation1 [shape = 'u32[144,128]{1,0:T(1,128)}', space=vmem, size = 0x12000, scoped, tag = 'internal scratch']
  #allocation2 [shape = 'f32[64,512]{1,0:T(8,128)}', space=vmem, size = 0x20000, scoped, tag = 'scratch operand']
  #allocation3 [shape = 'f32[64,128]{1,0:T(8,128)}', space=vmem, size = 0x8000, scoped, tag = 'scratch operand']
  %s0 = inlined_call_operand.vmem [shape: f32[64,1], index: 0, kind: input, shape index: {}]
  %s1 = inlined_call_operand.vmem [shape: f32[2,2,128], index: 1, kind: input, shape index: {}]
  %s2 = inlined_call_operand.vmem [shape: f32[2,2,128], index: 2, kind: input, shape index: {}]
  %s3 = inlined_call_operand.vmem [shape: f32[1,512], index: 3, kind: input, shape index: {}]
  %s4 = inlined_call_operand.vmem [shape: f32[128,512], index: 4, kind: input, shape index: {}]
  %s5 = inlined_call_operand.vmem [shape: f32[1,512], index: 5, kind: input, shape index: {}]
  %s6 = inlined_call_operand.vmem [shape: f32[128,512], index: 6, kind: input, shape index: {}]
  %s7 = inlined_call_operand.vmem [shape: f32[128,512], index: 7, kind: input, shape index: {}]
  %s8 = inlined_call_operand.vmem [shape: f32[1,512], index: 8, kind: input, shape index: {}]
  %s9 = inlined_call_operand.vmem [shape: f32[128,128], index: 9, kind: input, shape index: {}]
  %s10 = inlined_call_operand.vmem [shape: f32[1,128], index: 10, kind: input, shape index: {}]
  %s11 = inlined_call_operand.vmem [shape: f32[2,128], index: 11, kind: output, shape index: {0}]
  %s12 = inlined_call_operand.hbm [shape: f32[2,2,128], index: 12, kind: output, shape index: {1}]
  %s13 = inlined_call_operand.hbm [shape: f32[2,2,128], index: 13, kind: output, shape index: {2}]
  %14 = xla_tuple %s11, %s12, %s13
  %s15 = sld [smem:[#allocation0]]
  $region70: #{lstm_model_forward.1} parent=0
    _
  %s17 = ssub.s32 1, %s15
  %s18 = scalar_select 0, %s17, %s15
  $region1: #{lstm_model_forward.1} parent=0
    #allocation4 [shape = 'u8[2048]{0}', space=vmem, size = 0x800, scoped, tag = 'output window, operand 1, single buffered']
    #allocation5 [shape = 's32[1]{0}', space=sflag, size = 0x4, scoped, tag = 'scoped memory for lstm_model_forward.1']
    #allocation6 [shape = 'u8[2048]{0}', space=vmem, size = 0x800, scoped, tag = 'output window, operand 2, single buffered']
    #allocation7 [shape = 's32[1]{0}', space=sflag, size = 0x4, scoped, tag = 'scoped memory for lstm_model_forward.1']
    %19 = vsyncpa [#allocation5], 0
    %20 = vsyncpa [#allocation7], 0
    // Predicated region
    $region2: #{lstm_model_forward.1} parent=1 // pred_check
      _
    $region3: #{lstm_model_forward.1} parent=1 // pred_check_branch
      %22 = sbr.rel (0) target = $region5
    $region4: #{lstm_model_forward.1} parent=1 // pred_region
      _
    $region5: #{lstm_model_forward.1} parent=1 // pred_fallthru
      _
    // Predicated region
    $region6: #{lstm_model_forward.1} parent=1 // pred_check
      _
    $region7: #{lstm_model_forward.1} parent=1 // pred_check_branch
      %24 = sbr.rel (0) target = $region9
    $region8: #{lstm_model_forward.1} parent=1 // pred_region
      _
    $region9: #{lstm_model_forward.1} parent=1 // pred_fallthru
      _
    // Predicated region
    $region10: #{lstm_model_forward.1} parent=1 // pred_check
      _
    $region11: #{lstm_model_forward.1} parent=1 // pred_check_branch
      %26 = sbr.rel (0) target = $region13
    $region12: #{lstm_model_forward.1} parent=1 // pred_region
      _
    $region13: #{lstm_model_forward.1} parent=1 // pred_fallthru
      _
    // Predicated region
    $region14: #{lstm_model_forward.1} parent=1 // pred_check
      _
    $region15: #{lstm_model_forward.1} parent=1 // pred_check_branch
      %28 = sbr.rel (0) target = $region17
    $region16: #{lstm_model_forward.1} parent=1 // pred_region
      _
    $region17: #{lstm_model_forward.1} parent=1 // pred_fallthru
      _
    // Predicated region
    $region18: #{lstm_model_forward.1} parent=1 // pred_check
      _
    $region19: #{lstm_model_forward.1} parent=1 // pred_check_branch
      %30 = sbr.rel (0) target = $region21
    $region20: #{lstm_model_forward.1} parent=1 // pred_region
      _
    $region21: #{lstm_model_forward.1} parent=1 // pred_fallthru
      _
    // Predicated region
    $region22: #{lstm_model_forward.1} parent=1 // pred_check
      _
    $region23: #{lstm_model_forward.1} parent=1 // pred_check_branch
      %32 = sbr.rel (0) target = $region25
    $region24: #{lstm_model_forward.1} parent=1 // pred_region
      _
    $region25: #{lstm_model_forward.1} parent=1 // pred_fallthru
      _
    // Predicated region
    $region26: #{lstm_model_forward.1} parent=1 // pred_check
      _
    $region27: #{lstm_model_forward.1} parent=1 // pred_check_branch
      %34 = sbr.rel (0) target = $region29
    $region28: #{lstm_model_forward.1} parent=1 // pred_region
      _
    $region29: #{lstm_model_forward.1} parent=1 // pred_fallthru
      _
    // Predicated region
    $region30: #{lstm_model_forward.1} parent=1 // pred_check
      _
    $region31: #{lstm_model_forward.1} parent=1 // pred_check_branch
      %36 = sbr.rel (0) target = $region33
    $region32: #{lstm_model_forward.1} parent=1 // pred_region
      _
    $region33: #{lstm_model_forward.1} parent=1 // pred_fallthru
      _
    // Predicated region
    $region34: #{lstm_model_forward.1} parent=1 // pred_check
      _
    $region35: #{lstm_model_forward.1} parent=1 // pred_check_branch
      %38 = sbr.rel (0) target = $region37
    $region36: #{lstm_model_forward.1} parent=1 // pred_region
      _
    $region37: #{lstm_model_forward.1} parent=1 // pred_fallthru
      _
    // Predicated region
    $region38: #{lstm_model_forward.1} parent=1 // pred_check
      _
    $region39: #{lstm_model_forward.1} parent=1 // pred_check_branch
      %40 = sbr.rel (0) target = $region41
    $region40: #{lstm_model_forward.1} parent=1 // pred_region
      _
    $region41: #{lstm_model_forward.1} parent=1 // pred_fallthru
      _
    // Predicated region
    $region42: #{lstm_model_forward.1} parent=1 // pred_check
      _
    $region43: #{lstm_model_forward.1} parent=1 // pred_check_branch
      %42 = sbr.rel (0) target = $region45
    $region44: #{lstm_model_forward.1} parent=1 // pred_region
      _
    $region45: #{lstm_model_forward.1} parent=1 // pred_fallthru
      _
    %v43 = vld [vmem:[%s9] sm:$0xff]
    %v44 = vld [vmem:[%s9 + $0x8] sm:$0xff]
    %v45 = vld [vmem:[%s9 + $0x10] sm:$0xff]
    %v46 = vld [vmem:[%s9 + $0x18] sm:$0xff]
    %v47 = vld [vmem:[%s9 + $0x20] sm:$0xff]
    %v48 = vld [vmem:[%s9 + $0x28] sm:$0xff]
    %v49 = vld [vmem:[%s9 + $0x30] sm:$0xff]
    %v50 = vld [vmem:[%s9 + $0x38] sm:$0xff]
    %v51 = vld [vmem:[%s9 + $0x40] sm:$0xff]
    %v52 = vld [vmem:[%s9 + $0x48] sm:$0xff]
    %v53 = vld [vmem:[%s9 + $0x50] sm:$0xff]
    %v54 = vld [vmem:[%s9 + $0x58] sm:$0xff]
    %v55 = vld [vmem:[%s9 + $0x60] sm:$0xff]
    %v56 = vld [vmem:[%s9 + $0x68] sm:$0xff]
    %v57 = vld [vmem:[%s9 + $0x70] sm:$0xff]
    %v58 = vld [vmem:[%s9 + $0x78] sm:$0xff]
    %v59 = vld [vmem:[%s10] sm:$0x1]
    %60 = vst [vmem:[#allocation3] sm:$0xff] 0.0
    %61 = vst [vmem:[#allocation3 + $0x8] sm:$0xff] 0.0
    %62 = vst [vmem:[#allocation3 + $0x10] sm:$0xff] 0.0
    %63 = vst [vmem:[#allocation3 + $0x18] sm:$0xff] 0.0
    %64 = vst [vmem:[#allocation3 + $0x20] sm:$0xff] 0.0
    %65 = vst [vmem:[#allocation3 + $0x28] sm:$0xff] 0.0
    %66 = vst [vmem:[#allocation3 + $0x30] sm:$0xff] 0.0
    %67 = vst [vmem:[#allocation3 + $0x38] sm:$0xff] 0.0
    %v68 = vld [vmem:[%s3] sm:$0xf]
    %v69 = vld [vmem:[%s4] sm:$0xff]
    %v70 = vld [vmem:[%s4 + $0x8] sm:$0xff]
    %v71 = vld [vmem:[%s4 + $0x10] sm:$0xff]
    %v72 = vld [vmem:[%s4 + $0x18] sm:$0xff]
    %v73 = vld [vmem:[%s4 + $0x20] sm:$0xff]
    %v74 = vld [vmem:[%s4 + $0x28] sm:$0xff]
    %v75 = vld [vmem:[%s4 + $0x30] sm:$0xff]
    %v76 = vld [vmem:[%s4 + $0x38] sm:$0xff]
    %v77 = vld [vmem:[%s4 + $0x40] sm:$0xff]
    %v78 = vld [vmem:[%s4 + $0x48] sm:$0xff]
    %v79 = vld [vmem:[%s4 + $0x50] sm:$0xff]
    %v80 = vld [vmem:[%s4 + $0x58] sm:$0xff]
    %v81 = vld [vmem:[%s4 + $0x60] sm:$0xff]
    %v82 = vld [vmem:[%s4 + $0x68] sm:$0xff]
    %v83 = vld [vmem:[%s4 + $0x70] sm:$0xff]
    %v84 = vld [vmem:[%s4 + $0x78] sm:$0xff]
    %v85 = vld [vmem:[%s4 + $0x80] sm:$0xff]
    %v86 = vld [vmem:[%s4 + $0x88] sm:$0xff]
    %v87 = vld [vmem:[%s4 + $0x90] sm:$0xff]
    %v88 = vld [vmem:[%s4 + $0x98] sm:$0xff]
    %v89 = vld [vmem:[%s4 + $0xa0] sm:$0xff]
    %v90 = vld [vmem:[%s4 + $0xa8] sm:$0xff]
    %v91 = vld [vmem:[%s4 + $0xb0] sm:$0xff]
    %v92 = vld [vmem:[%s4 + $0xb8] sm:$0xff]
    %v93 = vld [vmem:[%s4 + $0xc0] sm:$0xff]
    %v94 = vld [vmem:[%s4 + $0xc8] sm:$0xff]
    %v95 = vld [vmem:[%s4 + $0xd0] sm:$0xff]
    %v96 = vld [vmem:[%s4 + $0xd8] sm:$0xff]
    %v97 = vld [vmem:[%s4 + $0xe0] sm:$0xff]
    %v98 = vld [vmem:[%s4 + $0xe8] sm:$0xff]
    %v99 = vld [vmem:[%s4 + $0xf0] sm:$0xff]
    %v100 = vld [vmem:[%s4 + $0xf8] sm:$0xff]
    %v101 = vld [vmem:[%s4 + $0x100] sm:$0xff]
    %v102 = vld [vmem:[%s4 + $0x108] sm:$0xff]
    %v103 = vld [vmem:[%s4 + $0x110] sm:$0xff]
    %v104 = vld [vmem:[%s4 + $0x118] sm:$0xff]
    %v105 = vld [vmem:[%s4 + $0x120] sm:$0xff]
    %v106 = vld [vmem:[%s4 + $0x128] sm:$0xff]
    %v107 = vld [vmem:[%s4 + $0x130] sm:$0xff]
    %v108 = vld [vmem:[%s4 + $0x138] sm:$0xff]
    %v109 = vld [vmem:[%s4 + $0x140] sm:$0xff]
    %v110 = vld [vmem:[%s4 + $0x148] sm:$0xff]
    %v111 = vld [vmem:[%s4 + $0x150] sm:$0xff]
    %v112 = vld [vmem:[%s4 + $0x158] sm:$0xff]
    %v113 = vld [vmem:[%s4 + $0x160] sm:$0xff]
    %v114 = vld [vmem:[%s4 + $0x168] sm:$0xff]
    %v115 = vld [vmem:[%s4 + $0x170] sm:$0xff]
    %v116 = vld [vmem:[%s4 + $0x178] sm:$0xff]
    %v117 = vld [vmem:[%s4 + $0x180] sm:$0xff]
    %v118 = vld [vmem:[%s4 + $0x188] sm:$0xff]
    %v119 = vld [vmem:[%s4 + $0x190] sm:$0xff]
    %v120 = vld [vmem:[%s4 + $0x198] sm:$0xff]
    %v121 = vld [vmem:[%s4 + $0x1a0] sm:$0xff]
    %v122 = vld [vmem:[%s4 + $0x1a8] sm:$0xff]
    %v123 = vld [vmem:[%s4 + $0x1b0] sm:$0xff]
    %v124 = vld [vmem:[%s4 + $0x1b8] sm:$0xff]
    %v125 = vld [vmem:[%s4 + $0x1c0] sm:$0xff]
    %v126 = vld [vmem:[%s4 + $0x1c8] sm:$0xff]
    %v127 = vld [vmem:[%s4 + $0x1d0] sm:$0xff]
    %v128 = vld [vmem:[%s4 + $0x1d8] sm:$0xff]
    %v129 = vld [vmem:[%s4 + $0x1e0] sm:$0xff]
    %v130 = vld [vmem:[%s4 + $0x1e8] sm:$0xff]
    %v131 = vld [vmem:[%s4 + $0x1f0] sm:$0xff]
    %v132 = vld [vmem:[%s4 + $0x1f8] sm:$0xff]
    %v133 = vld [vmem:[%s5] sm:$0xf]
    %v134 = vld [vmem:[%s0] sm:$0xff]
    %v135 = vld [vmem:[%s0 + $0x8] sm:$0xff]
    %v136 = vld [vmem:[%s0 + $0x10] sm:$0xff]
    %v137 = vld [vmem:[%s0 + $0x18] sm:$0xff]
    %v138 = vld [vmem:[%s0 + $0x20] sm:$0xff]
    %v139 = vld [vmem:[%s0 + $0x28] sm:$0xff]
    %v140 = vld [vmem:[%s0 + $0x30] sm:$0xff]
    %v141 = vld [vmem:[%s0 + $0x38] sm:$0xff]
    %143 = vset.pattern.permute.xlu0 0
    %144 = vperm.xlu0 %143, %v134
    %v145 = vpop.permute.xlu0 %144
    %148 = vset.pattern.permute.xlu0 0
    %149 = vperm.xlu0 %148, %v135
    %v150 = vpop.permute.xlu0 %149
    %153 = vset.pattern.permute.xlu0 0
    %154 = vperm.xlu0 %153, %v136
    %v155 = vpop.permute.xlu0 %154
    %158 = vset.pattern.permute.xlu0 0
    %159 = vperm.xlu0 %158, %v137
    %v160 = vpop.permute.xlu0 %159
    %163 = vset.pattern.permute.xlu0 0
    %164 = vperm.xlu0 %163, %v138
    %v165 = vpop.permute.xlu0 %164
    %168 = vset.pattern.permute.xlu0 0
    %169 = vperm.xlu0 %168, %v139
    %v170 = vpop.permute.xlu0 %169
    %173 = vset.pattern.permute.xlu0 0
    %174 = vperm.xlu0 %173, %v140
    %v175 = vpop.permute.xlu0 %174
    %178 = vset.pattern.permute.xlu0 0
    %179 = vperm.xlu0 %178, %v141
    %v180 = vpop.permute.xlu0 %179
    %v183 = vlaneseq
    %v184 = vshrl.u32 %v183, 7
    %v185 = vsub.s32 0, %v184
    %v186 = vrot.slane %v68, %v185
    %v187 = vlaneseq
    %v188 = vshrl.u32 %v187, 7
    %v189 = vsub.s32 1, %v188
    %v190 = vrot.slane %v68, %v189
    %v191 = vlaneseq
    %v192 = vshrl.u32 %v191, 7
    %v193 = vsub.s32 2, %v192
    %v194 = vrot.slane %v68, %v193
    %v195 = vlaneseq
    %v196 = vshrl.u32 %v195, 7
    %v197 = vsub.s32 3, %v196
    %v198 = vrot.slane %v68, %v197
    %v203 = vmul.f32 %v145, %v186
    %v204 = vmul.f32 %v145, %v190
    %v205 = vmul.f32 %v145, %v194
    %v206 = vmul.f32 %v145, %v198
    %v207 = vmul.f32 %v150, %v186
    %v208 = vmul.f32 %v150, %v190
    %v209 = vmul.f32 %v150, %v194
    %v210 = vmul.f32 %v150, %v198
    %v211 = vmul.f32 %v155, %v186
    %v212 = vmul.f32 %v155, %v190
    %v213 = vmul.f32 %v155, %v194
    %v214 = vmul.f32 %v155, %v198
    %v215 = vmul.f32 %v160, %v186
    %v216 = vmul.f32 %v160, %v190
    %v217 = vmul.f32 %v160, %v194
    %v218 = vmul.f32 %v160, %v198
    %v219 = vmul.f32 %v165, %v186
    %v220 = vmul.f32 %v165, %v190
    %v221 = vmul.f32 %v165, %v194
    %v222 = vmul.f32 %v165, %v198
    %v223 = vmul.f32 %v170, %v186
    %v224 = vmul.f32 %v170, %v190
    %v225 = vmul.f32 %v170, %v194
    %v226 = vmul.f32 %v170, %v198
    %v227 = vmul.f32 %v175, %v186
    %v228 = vmul.f32 %v175, %v190
    %v229 = vmul.f32 %v175, %v194
    %v230 = vmul.f32 %v175, %v198
    %v231 = vmul.f32 %v180, %v186
    %v232 = vmul.f32 %v180, %v190
    %v233 = vmul.f32 %v180, %v194
    %v234 = vmul.f32 %v180, %v198
    %v236 = vlaneseq
    %v237 = vshrl.u32 %v236, 7
    %v238 = vsub.s32 0, %v237
    %v239 = vrot.slane %v133, %v238
    %v240 = vlaneseq
    %v241 = vshrl.u32 %v240, 7
    %v242 = vsub.s32 1, %v241
    %v243 = vrot.slane %v133, %v242
    %v244 = vlaneseq
    %v245 = vshrl.u32 %v244, 7
    %v246 = vsub.s32 2, %v245
    %v247 = vrot.slane %v133, %v246
    %v248 = vlaneseq
    %v249 = vshrl.u32 %v248, 7
    %v250 = vsub.s32 3, %v249
    %v251 = vrot.slane %v133, %v250
    %v256 = vadd.f32 %v203, %v239
    %v257 = vadd.f32 %v204, %v243
    %v258 = vadd.f32 %v205, %v247
    %v259 = vadd.f32 %v206, %v251
    %v260 = vadd.f32 %v207, %v239
    %v261 = vadd.f32 %v208, %v243
    %v262 = vadd.f32 %v209, %v247
    %v263 = vadd.f32 %v210, %v251
    %v264 = vadd.f32 %v211, %v239
    %v265 = vadd.f32 %v212, %v243
    %v266 = vadd.f32 %v213, %v247
    %v267 = vadd.f32 %v214, %v251
    %v268 = vadd.f32 %v215, %v239
    %v269 = vadd.f32 %v216, %v243
    %v270 = vadd.f32 %v217, %v247
    %v271 = vadd.f32 %v218, %v251
    %v272 = vadd.f32 %v219, %v239
    %v273 = vadd.f32 %v220, %v243
    %v274 = vadd.f32 %v221, %v247
    %v275 = vadd.f32 %v222, %v251
    %v276 = vadd.f32 %v223, %v239
    %v277 = vadd.f32 %v224, %v243
    %v278 = vadd.f32 %v225, %v247
    %v279 = vadd.f32 %v226, %v251
    %v280 = vadd.f32 %v227, %v239
    %v281 = vadd.f32 %v228, %v243
    %v282 = vadd.f32 %v229, %v247
    %v283 = vadd.f32 %v230, %v251
    %v284 = vadd.f32 %v231, %v239
    %v285 = vadd.f32 %v232, %v243
    %v286 = vadd.f32 %v233, %v247
    %v287 = vadd.f32 %v234, %v251
    %288 = vst [vmem:[#allocation2] sm:$0xff] %v256
    %289 = vst [vmem:[#allocation2 + $0x8] sm:$0xff] %v257
    %290 = vst [vmem:[#allocation2 + $0x10] sm:$0xff] %v258
    %291 = vst [vmem:[#allocation2 + $0x18] sm:$0xff] %v259
    %292 = vst [vmem:[#allocation2 + $0x20] sm:$0xff] %v260
    %293 = vst [vmem:[#allocation2 + $0x28] sm:$0xff] %v261
    %294 = vst [vmem:[#allocation2 + $0x30] sm:$0xff] %v262
    %295 = vst [vmem:[#allocation2 + $0x38] sm:$0xff] %v263
    %296 = vst [vmem:[#allocation2 + $0x40] sm:$0xff] %v264
    %297 = vst [vmem:[#allocation2 + $0x48] sm:$0xff] %v265
    %298 = vst [vmem:[#allocation2 + $0x50] sm:$0xff] %v266
    %299 = vst [vmem:[#allocation2 + $0x58] sm:$0xff] %v267
    %300 = vst [vmem:[#allocation2 + $0x60] sm:$0xff] %v268
    %301 = vst [vmem:[#allocation2 + $0x68] sm:$0xff] %v269
    %302 = vst [vmem:[#allocation2 + $0x70] sm:$0xff] %v270
    %303 = vst [vmem:[#allocation2 + $0x78] sm:$0xff] %v271
    %304 = vst [vmem:[#allocation2 + $0x80] sm:$0xff] %v272
    %305 = vst [vmem:[#allocation2 + $0x88] sm:$0xff] %v273
    %306 = vst [vmem:[#allocation2 + $0x90] sm:$0xff] %v274
    %307 = vst [vmem:[#allocation2 + $0x98] sm:$0xff] %v275
    %308 = vst [vmem:[#allocation2 + $0xa0] sm:$0xff] %v276
    %309 = vst [vmem:[#allocation2 + $0xa8] sm:$0xff] %v277
    %310 = vst [vmem:[#allocation2 + $0xb0] sm:$0xff] %v278
    %311 = vst [vmem:[#allocation2 + $0xb8] sm:$0xff] %v279
    %312 = vst [vmem:[#allocation2 + $0xc0] sm:$0xff] %v280
    %313 = vst [vmem:[#allocation2 + $0xc8] sm:$0xff] %v281
    %314 = vst [vmem:[#allocation2 + $0xd0] sm:$0xff] %v282
    %315 = vst [vmem:[#allocation2 + $0xd8] sm:$0xff] %v283
    %316 = vst [vmem:[#allocation2 + $0xe0] sm:$0xff] %v284
    %317 = vst [vmem:[#allocation2 + $0xe8] sm:$0xff] %v285
    %318 = vst [vmem:[#allocation2 + $0xf0] sm:$0xff] %v286
    %319 = vst [vmem:[#allocation2 + $0xf8] sm:$0xff] %v287
    %v320 = vld [vmem:[%s1] sm:$0x3]
    %v321 = vld [vmem:[%s2] sm:$0x3]
    %v322 = vld [vmem:[#allocation2] sm:$0x3]
    %v323 = vld [vmem:[#allocation2 + $0x8] sm:$0x3]
    %v324 = vld [vmem:[#allocation2 + $0x10] sm:$0x3]
    %v325 = vld [vmem:[#allocation2 + $0x18] sm:$0x3]
    %326 = vmatprep.subr.mxu0 %v130
    %327 = vmatpush1.msra.mxu0 %v129
    %328 = vmatprep.subr.mxu0 %v126
    %329 = vmatpush1.msra.mxu0 %v125
    %330 = vmatprep.subr.mxu0 %v122
    %331 = vmatpush1.msra.mxu0 %v121
    %332 = vmatprep.subr.mxu0 %v118
    %333 = vmatpush1.msra.mxu0 %v117
    %334 = vmatprep.subr.mxu0 %v114
    %335 = vmatpush1.msra.mxu0 %v113
    %336 = vmatprep.subr.mxu0 %v110
    %337 = vmatpush1.msra.mxu0 %v109
    %338 = vmatprep.subr.mxu0 %v106
    %339 = vmatpush1.msra.mxu0 %v105
    %340 = vmatprep.subr.mxu0 %v102
    %341 = vmatpush1.msra.mxu0 %v101
    %342 = vmatprep.subr.mxu0 %v98
    %343 = vmatpush1.msra.mxu0 %v97
    %344 = vmatprep.subr.mxu0 %v94
    %345 = vmatpush1.msra.mxu0 %v93
    %346 = vmatprep.subr.mxu0 %v90
    %347 = vmatpush1.msra.mxu0 %v89
    %348 = vmatprep.subr.mxu0 %v86
    %349 = vmatpush1.msra.mxu0 %v85
    %350 = vmatprep.subr.mxu0 %v82
    %351 = vmatpush1.msra.mxu0 %v81
    %352 = vmatprep.subr.mxu0 %v78
    %353 = vmatpush1.msra.mxu0 %v77
    %354 = vmatprep.subr.mxu0 %v74
    %355 = vmatpush1.msra.mxu0 %v73
    %356 = vmatprep.subr.mxu0 %v70
    %357 = vmatpush1.msra.mxu0 %v69
    %358 = vmatprep.subr.mxu0 0.0
    %359 = vmatpush2.msra.mxu0 0.0
    %360 = vmatprep.subr.mxu0 0.0
    %361 = vmatpush2.msra.mxu0 0.0
    %362 = vmatprep.subr.mxu0 0.0
    %363 = vmatpush2.msra.mxu0 0.0
    %364 = vmatprep.subr.mxu0 0.0
    %365 = vmatpush2.msra.mxu0 0.0
    %366 = vmatprep.subr.mxu0 0.0
    %367 = vmatpush2.msra.mxu0 0.0
    %368 = vmatprep.subr.mxu0 0.0
    %369 = vmatpush2.msra.mxu0 0.0
    %370 = vmatprep.subr.mxu0 0.0
    %371 = vmatpush2.msra.mxu0 0.0
    %372 = vmatprep.subr.mxu0 0.0
    %373 = vmatpush2.msra.mxu0 0.0
    %374 = vmatprep.subr.mxu0 0.0
    %375 = vmatpush2.msra.mxu0 0.0
    %376 = vmatprep.subr.mxu0 0.0
    %377 = vmatpush2.msra.mxu0 0.0
    %378 = vmatprep.subr.mxu0 0.0
    %379 = vmatpush2.msra.mxu0 0.0
    %380 = vmatprep.subr.mxu0 0.0
    %381 = vmatpush2.msra.mxu0 0.0
    %382 = vmatprep.subr.mxu0 0.0
    %383 = vmatpush2.msra.mxu0 0.0
    %384 = vmatprep.subr.mxu0 0.0
    %385 = vmatpush2.msra.mxu0 0.0
    %386 = vmatprep.subr.mxu0 0.0
    %387 = vmatpush2.msra.mxu0 0.0
    %388 = vmatprep.subr.mxu0 0.0
    %389 = vmatpush2.msra.mxu0 0.0
    %390 = vmatprep.mubr.f32.mxu0 0.0
    %391 = vmatmul.mubr.f32.gmra.mxu0 %v320
    %v392 = vpop.f32.mrf.mxu0
    %v393 = vadd.f32 0.0, %v392
    %v394 = vpop.f32.mrf.mxu0
    %v395 = vadd.f32 0.0, %v394
    %396 = vdwg.mxu0
    %397 = vmatprep.subr.mxu0 %v132
    %398 = vmatpush1.msra.mxu0 %v131
    %399 = vmatprep.subr.mxu0 %v128
    %400 = vmatpush1.msra.mxu0 %v127
    %401 = vmatprep.subr.mxu0 %v124
    %402 = vmatpush1.msra.mxu0 %v123
    %403 = vmatprep.subr.mxu0 %v120
    %404 = vmatpush1.msra.mxu0 %v119
    %405 = vmatprep.subr.mxu0 %v116
    %406 = vmatpush1.msra.mxu0 %v115
    %407 = vmatprep.subr.mxu0 %v112
    %408 = vmatpush1.msra.mxu0 %v111
    %409 = vmatprep.subr.mxu0 %v108
    %410 = vmatpush1.msra.mxu0 %v107
    %411 = vmatprep.subr.mxu0 %v104
    %412 = vmatpush1.msra.mxu0 %v103
    %413 = vmatprep.subr.mxu0 %v100
    %414 = vmatpush1.msra.mxu0 %v99
    %415 = vmatprep.subr.mxu0 %v96
    %416 = vmatpush1.msra.mxu0 %v95
    %417 = vmatprep.subr.mxu0 %v92
    %418 = vmatpush1.msra.mxu0 %v91
    %419 = vmatprep.subr.mxu0 %v88
    %420 = vmatpush1.msra.mxu0 %v87
    %421 = vmatprep.subr.mxu0 %v84
    %422 = vmatpush1.msra.mxu0 %v83
    %423 = vmatprep.subr.mxu0 %v80
    %424 = vmatpush1.msra.mxu0 %v79
    %425 = vmatprep.subr.mxu0 %v76
    %426 = vmatpush1.msra.mxu0 %v75
    %427 = vmatprep.subr.mxu0 %v72
    %428 = vmatpush1.msra.mxu0 %v71
    %429 = vmatprep.subr.mxu0 0.0
    %430 = vmatpush2.msra.mxu0 0.0
    %431 = vmatprep.subr.mxu0 0.0
    %432 = vmatpush2.msra.mxu0 0.0
    %433 = vmatprep.subr.mxu0 0.0
    %434 = vmatpush2.msra.mxu0 0.0
    %435 = vmatprep.subr.mxu0 0.0
    %436 = vmatpush2.msra.mxu0 0.0
    %437 = vmatprep.subr.mxu0 0.0
    %438 = vmatpush2.msra.mxu0 0.0
    %439 = vmatprep.subr.mxu0 0.0
    %440 = vmatpush2.msra.mxu0 0.0
    %441 = vmatprep.subr.mxu0 0.0
    %442 = vmatpush2.msra.mxu0 0.0
    %443 = vmatprep.subr.mxu0 0.0
    %444 = vmatpush2.msra.mxu0 0.0
    %445 = vmatprep.subr.mxu0 0.0
    %446 = vmatpush2.msra.mxu0 0.0
    %447 = vmatprep.subr.mxu0 0.0
    %448 = vmatpush2.msra.mxu0 0.0
    %449 = vmatprep.subr.mxu0 0.0
    %450 = vmatpush2.msra.mxu0 0.0
    %451 = vmatprep.subr.mxu0 0.0
    %452 = vmatpush2.msra.mxu0 0.0
    %453 = vmatprep.subr.mxu0 0.0
    %454 = vmatpush2.msra.mxu0 0.0
    %455 = vmatprep.subr.mxu0 0.0
    %456 = vmatpush2.msra.mxu0 0.0
    %457 = vmatprep.subr.mxu0 0.0
    %458 = vmatpush2.msra.mxu0 0.0
    %459 = vmatprep.subr.mxu0 0.0
    %460 = vmatpush2.msra.mxu0 0.0
    %461 = vmatprep.mubr.f32.mxu0 0.0
    %462 = vmatmul.mubr.f32.gmra.mxu0 %v320
    %v463 = vpop.f32.mrf.mxu0
    %v464 = vadd.f32 0.0, %v463
    %v465 = vpop.f32.mrf.mxu0
    %v466 = vadd.f32 0.0, %v465
    %467 = vdwg.mxu0
    %v468 = vadd.f32 %v322, %v393
    %v469 = vadd.f32 %v323, %v395
    %v470 = vadd.f32 %v324, %v464
    %v471 = vadd.f32 %v325, %v466
    %v472 = vmul.f32 %v468, 0.5
    %v473 = vtanh.pop %v472
    %v474 = vmul.f32 %v473, 0.5
    %v475 = vadd.f32 %v474, 0.5
    %v476 = vmul.f32 %v469, 0.5
    %v477 = vtanh.pop %v476
    %v478 = vmul.f32 %v477, 0.5
    %v479 = vadd.f32 %v478, 0.5
    %v480 = vtanh.pop %v470
    %v481 = vmul.f32 %v471, 0.5
    %v482 = vtanh.pop %v481
    %v483 = vmul.f32 %v482, 0.5
    %v484 = vadd.f32 %v483, 0.5
    %v485 = vmul.f32 %v479, %v321
    %v486 = vmul.f32 %v475, %v480
    %v487 = vadd.f32 %v485, %v486
    %v488 = vtanh.pop %v487
    %v489 = vmul.f32 %v484, %v488
    %490 = vst [vmem:[#allocation3] sm:$0x3] %v489
    %v491 = vld [vmem:[#allocation2 + $0x20] sm:$0x3]
    %v492 = vld [vmem:[#allocation2 + $0x28] sm:$0x3]
    %v493 = vld [vmem:[#allocation2 + $0x30] sm:$0x3]
    %v494 = vld [vmem:[#allocation2 + $0x38] sm:$0x3]
    %495 = vmatprep.subr.mxu0 %v130
    %496 = vmatpush1.msra.mxu0 %v129
    %497 = vmatprep.subr.mxu0 %v126
    %498 = vmatpush1.msra.mxu0 %v125
    %499 = vmatprep.subr.mxu0 %v122
    %500 = vmatpush1.msra.mxu0 %v121
    %501 = vmatprep.subr.mxu0 %v118
    %502 = vmatpush1.msra.mxu0 %v117
    %503 = vmatprep.subr.mxu0 %v114
    %504 = vmatpush1.msra.mxu0 %v113
    %505 = vmatprep.subr.mxu0 %v110
    %506 = vmatpush1.msra.mxu0 %v109
    %507 = vmatprep.subr.mxu0 %v106
    %508 = vmatpush1.msra.mxu0 %v105
    %509 = vmatprep.subr.mxu0 %v102
    %510 = vmatpush1.msra.mxu0 %v101
    %511 = vmatprep.subr.mxu0 %v98
    %512 = vmatpush1.msra.mxu0 %v97
    %513 = vmatprep.subr.mxu0 %v94
    %514 = vmatpush1.msra.mxu0 %v93
    %515 = vmatprep.subr.mxu0 %v90
    %516 = vmatpush1.msra.mxu0 %v89
    %517 = vmatprep.subr.mxu0 %v86
    %518 = vmatpush1.msra.mxu0 %v85
    %519 = vmatprep.subr.mxu0 %v82
    %520 = vmatpush1.msra.mxu0 %v81
    %521 = vmatprep.subr.mxu0 %v78
    %522 = vmatpush1.msra.mxu0 %v77
    %523 = vmatprep.subr.mxu0 %v74
    %524 = vmatpush1.msra.mxu0 %v73
    %525 = vmatprep.subr.mxu0 %v70
    %526 = vmatpush1.msra.mxu0 %v69
    %527 = vmatprep.subr.mxu0 0.0
    %528 = vmatpush2.msra.mxu0 0.0
    %529 = vmatprep.subr.mxu0 0.0
    %530 = vmatpush2.msra.mxu0 0.0
    %531 = vmatprep.subr.mxu0 0.0
    %532 = vmatpush2.msra.mxu0 0.0
    %533 = vmatprep.subr.mxu0 0.0
    %534 = vmatpush2.msra.mxu0 0.0
    %535 = vmatprep.subr.mxu0 0.0
    %536 = vmatpush2.msra.mxu0 0.0
    %537 = vmatprep.subr.mxu0 0.0
    %538 = vmatpush2.msra.mxu0 0.0
    %539 = vmatprep.subr.mxu0 0.0
    %540 = vmatpush2.msra.mxu0 0.0
    %541 = vmatprep.subr.mxu0 0.0
    %542 = vmatpush2.msra.mxu0 0.0
    %543 = vmatprep.subr.mxu0 0.0
    %544 = vmatpush2.msra.mxu0 0.0
    %545 = vmatprep.subr.mxu0 0.0
    %546 = vmatpush2.msra.mxu0 0.0
    %547 = vmatprep.subr.mxu0 0.0
    %548 = vmatpush2.msra.mxu0 0.0
    %549 = vmatprep.subr.mxu0 0.0
    %550 = vmatpush2.msra.mxu0 0.0
    %551 = vmatprep.subr.mxu0 0.0
    %552 = vmatpush2.msra.mxu0 0.0
    %553 = vmatprep.subr.mxu0 0.0
    %554 = vmatpush2.msra.mxu0 0.0
    %555 = vmatprep.subr.mxu0 0.0
    %556 = vmatpush2.msra.mxu0 0.0
    %557 = vmatprep.subr.mxu0 0.0
    %558 = vmatpush2.msra.mxu0 0.0
    %559 = vmatprep.mubr.f32.mxu0 0.0
    %560 = vmatmul.mubr.f32.gmra.mxu0 %v489
    %v561 = vpop.f32.mrf.mxu0
    %v562 = vadd.f32 0.0, %v561
    %v563 = vpop.f32.mrf.mxu0
    %v564 = vadd.f32 0.0, %v563
    %565 = vdwg.mxu0
    %566 = vmatprep.subr.mxu0 %v132
    %567 = vmatpush1.msra.mxu0 %v131
    %568 = vmatprep.subr.mxu0 %v128
    %569 = vmatpush1.msra.mxu0 %v127
    %570 = vmatprep.subr.mxu0 %v124
    %571 = vmatpush1.msra.mxu0 %v123
    %572 = vmatprep.subr.mxu0 %v120
    %573 = vmatpush1.msra.mxu0 %v119
    %574 = vmatprep.subr.mxu0 %v116
    %575 = vmatpush1.msra.mxu0 %v115
    %576 = vmatprep.subr.mxu0 %v112
    %577 = vmatpush1.msra.mxu0 %v111
    %578 = vmatprep.subr.mxu0 %v108
    %579 = vmatpush1.msra.mxu0 %v107
    %580 = vmatprep.subr.mxu0 %v104
    %581 = vmatpush1.msra.mxu0 %v103
    %582 = vmatprep.subr.mxu0 %v100
    %583 = vmatpush1.msra.mxu0 %v99
    %584 = vmatprep.subr.mxu0 %v96
    %585 = vmatpush1.msra.mxu0 %v95
    %586 = vmatprep.subr.mxu0 %v92
    %587 = vmatpush1.msra.mxu0 %v91
    %588 = vmatprep.subr.mxu0 %v88
    %589 = vmatpush1.msra.mxu0 %v87
    %590 = vmatprep.subr.mxu0 %v84
    %591 = vmatpush1.msra.mxu0 %v83
    %592 = vmatprep.subr.mxu0 %v80
    %593 = vmatpush1.msra.mxu0 %v79
    %594 = vmatprep.subr.mxu0 %v76
    %595 = vmatpush1.msra.mxu0 %v75
    %596 = vmatprep.subr.mxu0 %v72
    %597 = vmatpush1.msra.mxu0 %v71
    %598 = vmatprep.subr.mxu0 0.0
    %599 = vmatpush2.msra.mxu0 0.0
    %600 = vmatprep.subr.mxu0 0.0
    %601 = vmatpush2.msra.mxu0 0.0
    %602 = vmatprep.subr.mxu0 0.0
    %603 = vmatpush2.msra.mxu0 0.0
    %604 = vmatprep.subr.mxu0 0.0
    %605 = vmatpush2.msra.mxu0 0.0
    %606 = vmatprep.subr.mxu0 0.0
    %607 = vmatpush2.msra.mxu0 0.0
    %608 = vmatprep.subr.mxu0 0.0
    %609 = vmatpush2.msra.mxu0 0.0
    %610 = vmatprep.subr.mxu0 0.0
    %611 = vmatpush2.msra.mxu0 0.0
    %612 = vmatprep.subr.mxu0 0.0
    %613 = vmatpush2.msra.mxu0 0.0
    %614 = vmatprep.subr.mxu0 0.0
    %615 = vmatpush2.msra.mxu0 0.0
    %616 = vmatprep.subr.mxu0 0.0
    %617 = vmatpush2.msra.mxu0 0.0
    %618 = vmatprep.subr.mxu0 0.0
    %619 = vmatpush2.msra.mxu0 0.0
    %620 = vmatprep.subr.mxu0 0.0
    %621 = vmatpush2.msra.mxu0 0.0
    %622 = vmatprep.subr.mxu0 0.0
    %623 = vmatpush2.msra.mxu0 0.0
    %624 = vmatprep.subr.mxu0 0.0
    %625 = vmatpush2.msra.mxu0 0.0
    %626 = vmatprep.subr.mxu0 0.0
    %627 = vmatpush2.msra.mxu0 0.0
    %628 = vmatprep.subr.mxu0 0.0
    %629 = vmatpush2.msra.mxu0 0.0
    %630 = vmatprep.mubr.f32.mxu0 0.0
    %631 = vmatmul.mubr.f32.gmra.mxu0 %v489
    %v632 = vpop.f32.mrf.mxu0
    %v633 = vadd.f32 0.0, %v632
    %v634 = vpop.f32.mrf.mxu0
    %v635 = vadd.f32 0.0, %v634
    %636 = vdwg.mxu0
    %v637 = vadd.f32 %v491, %v562
    %v638 = vadd.f32 %v492, %v564
    %v639 = vadd.f32 %v493, %v633
    %v640 = vadd.f32 %v494, %v635
    %v641 = vmul.f32 %v637, 0.5
    %v642 = vtanh.pop %v641
    %v643 = vmul.f32 %v642, 0.5
    %v644 = vadd.f32 %v643, 0.5
    %v645 = vmul.f32 %v638, 0.5
    %v646 = vtanh.pop %v645
    %v647 = vmul.f32 %v646, 0.5
    %v648 = vadd.f32 %v647, 0.5
    %v649 = vtanh.pop %v639
    %v650 = vmul.f32 %v640, 0.5
    %v651 = vtanh.pop %v650
    %v652 = vmul.f32 %v651, 0.5
    %v653 = vadd.f32 %v652, 0.5
    %v654 = vmul.f32 %v648, %v487
    %v655 = vmul.f32 %v644, %v649
    %v656 = vadd.f32 %v654, %v655
    %v657 = vtanh.pop %v656
    %v658 = vmul.f32 %v653, %v657
    %659 = vst [vmem:[#allocation3 + $0x8] sm:$0x3] %v658
    %v660 = vld [vmem:[#allocation2 + $0x40] sm:$0x3]
    %v661 = vld [vmem:[#allocation2 + $0x48] sm:$0x3]
    %v662 = vld [vmem:[#allocation2 + $0x50] sm:$0x3]
    %v663 = vld [vmem:[#allocation2 + $0x58] sm:$0x3]
    %664 = vmatprep.subr.mxu0 %v130
    %665 = vmatpush1.msra.mxu0 %v129
    %666 = vmatprep.subr.mxu0 %v126
    %667 = vmatpush1.msra.mxu0 %v125
    %668 = vmatprep.subr.mxu0 %v122
    %669 = vmatpush1.msra.mxu0 %v121
    %670 = vmatprep.subr.mxu0 %v118
    %671 = vmatpush1.msra.mxu0 %v117
    %672 = vmatprep.subr.mxu0 %v114
    %673 = vmatpush1.msra.mxu0 %v113
    %674 = vmatprep.subr.mxu0 %v110
    %675 = vmatpush1.msra.mxu0 %v109
    %676 = vmatprep.subr.mxu0 %v106
    %677 = vmatpush1.msra.mxu0 %v105
    %678 = vmatprep.subr.mxu0 %v102
    %679 = vmatpush1.msra.mxu0 %v101
    %680 = vmatprep.subr.mxu0 %v98
    %681 = vmatpush1.msra.mxu0 %v97
    %682 = vmatprep.subr.mxu0 %v94
    %683 = vmatpush1.msra.mxu0 %v93
    %684 = vmatprep.subr.mxu0 %v90
    %685 = vmatpush1.msra.mxu0 %v89
    %686 = vmatprep.subr.mxu0 %v86
    %687 = vmatpush1.msra.mxu0 %v85
    %688 = vmatprep.subr.mxu0 %v82
    %689 = vmatpush1.msra.mxu0 %v81
    %690 = vmatprep.subr.mxu0 %v78
    %691 = vmatpush1.msra.mxu0 %v77
    %692 = vmatprep.subr.mxu0 %v74
    %693 = vmatpush1.msra.mxu0 %v73
    %694 = vmatprep.subr.mxu0 %v70
    %695 = vmatpush1.msra.mxu0 %v69
    %696 = vmatprep.subr.mxu0 0.0
    %697 = vmatpush2.msra.mxu0 0.0
    %698 = vmatprep.subr.mxu0 0.0
    %699 = vmatpush2.msra.mxu0 0.0
    %700 = vmatprep.subr.mxu0 0.0
    %701 = vmatpush2.msra.mxu0 0.0
    %702 = vmatprep.subr.mxu0 0.0
    %703 = vmatpush2.msra.mxu0 0.0
    %704 = vmatprep.subr.mxu0 0.0
    %705 = vmatpush2.msra.mxu0 0.0
    %706 = vmatprep.subr.mxu0 0.0
    %707 = vmatpush2.msra.mxu0 0.0
    %708 = vmatprep.subr.mxu0 0.0
    %709 = vmatpush2.msra.mxu0 0.0
    %710 = vmatprep.subr.mxu0 0.0
    %711 = vmatpush2.msra.mxu0 0.0
    %712 = vmatprep.subr.mxu0 0.0
    %713 = vmatpush2.msra.mxu0 0.0
    %714 = vmatprep.subr.mxu0 0.0
    %715 = vmatpush2.msra.mxu0 0.0
    %716 = vmatprep.subr.mxu0 0.0
    %717 = vmatpush2.msra.mxu0 0.0
    %718 = vmatprep.subr.mxu0 0.0
    %719 = vmatpush2.msra.mxu0 0.0
    %720 = vmatprep.subr.mxu0 0.0
    %721 = vmatpush2.msra.mxu0 0.0
    %722 = vmatprep.subr.mxu0 0.0
    %723 = vmatpush2.msra.mxu0 0.0
    %724 = vmatprep.subr.mxu0 0.0
    %725 = vmatpush2.msra.mxu0 0.0
    %726 = vmatprep.subr.mxu0 0.0
    %727 = vmatpush2.msra.mxu0 0.0
    %728 = vmatprep.mubr.f32.mxu0 0.0
    %729 = vmatmul.mubr.f32.gmra.mxu0 %v658
    %v730 = vpop.f32.mrf.mxu0
    %v731 = vadd.f32 0.0, %v730
    %v732 = vpop.f32.mrf.mxu0
    %v733 = vadd.f32 0.0, %v732
    %734 = vdwg.mxu0
    %735 = vmatprep.subr.mxu0 %v132
    %736 = vmatpush1.msra.mxu0 %v131
    %737 = vmatprep.subr.mxu0 %v128
    %738 = vmatpush1.msra.mxu0 %v127
    %739 = vmatprep.subr.mxu0 %v124
    %740 = vmatpush1.msra.mxu0 %v123
    %741 = vmatprep.subr.mxu0 %v120
    %742 = vmatpush1.msra.mxu0 %v119
    %743 = vmatprep.subr.mxu0 %v116
    %744 = vmatpush1.msra.mxu0 %v115
    %745 = vmatprep.subr.mxu0 %v112
    %746 = vmatpush1.msra.mxu0 %v111
    %747 = vmatprep.subr.mxu0 %v108
    %748 = vmatpush1.msra.mxu0 %v107
    %749 = vmatprep.subr.mxu0 %v104
    %750 = vmatpush1.msra.mxu0 %v103
    %751 = vmatprep.subr.mxu0 %v100
    %752 = vmatpush1.msra.mxu0 %v99
    %753 = vmatprep.subr.mxu0 %v96
    %754 = vmatpush1.msra.mxu0 %v95
    %755 = vmatprep.subr.mxu0 %v92
    %756 = vmatpush1.msra.mxu0 %v91
    %757 = vmatprep.subr.mxu0 %v88
    %758 = vmatpush1.msra.mxu0 %v87
    %759 = vmatprep.subr.mxu0 %v84
    %760 = vmatpush1.msra.mxu0 %v83
    %761 = vmatprep.subr.mxu0 %v80
    %762 = vmatpush1.msra.mxu0 %v79
    %763 = vmatprep.subr.mxu0 %v76
    %764 = vmatpush1.msra.mxu0 %v75
    %765 = vmatprep.subr.mxu0 %v72
    %766 = vmatpush1.msra.mxu0 %v71
    %767 = vmatprep.subr.mxu0 0.0
    %768 = vmatpush2.msra.mxu0 0.0
    %769 = vmatprep.subr.mxu0 0.0
    %770 = vmatpush2.msra.mxu0 0.0
    %771 = vmatprep.subr.mxu0 0.0
    %772 = vmatpush2.msra.mxu0 0.0
    %773 = vmatprep.subr.mxu0 0.0
    %774 = vmatpush2.msra.mxu0 0.0
    %775 = vmatprep.subr.mxu0 0.0
    %776 = vmatpush2.msra.mxu0 0.0
    %777 = vmatprep.subr.mxu0 0.0
    %778 = vmatpush2.msra.mxu0 0.0
    %779 = vmatprep.subr.mxu0 0.0
    %780 = vmatpush2.msra.mxu0 0.0
    %781 = vmatprep.subr.mxu0 0.0
    %782 = vmatpush2.msra.mxu0 0.0
    %783 = vmatprep.subr.mxu0 0.0
    %784 = vmatpush2.msra.mxu0 0.0
    %785 = vmatprep.subr.mxu0 0.0
    %786 = vmatpush2.msra.mxu0 0.0
    %787 = vmatprep.subr.mxu0 0.0
    %788 = vmatpush2.msra.mxu0 0.0
    %789 = vmatprep.subr.mxu0 0.0
    %790 = vmatpush2.msra.mxu0 0.0
    %791 = vmatprep.subr.mxu0 0.0
    %792 = vmatpush2.msra.mxu0 0.0
    %793 = vmatprep.subr.mxu0 0.0
    %794 = vmatpush2.msra.mxu0 0.0
    %795 = vmatprep.subr.mxu0 0.0
    %796 = vmatpush2.msra.mxu0 0.0
    %797 = vmatprep.subr.mxu0 0.0
    %798 = vmatpush2.msra.mxu0 0.0
    %799 = vmatprep.mubr.f32.mxu0 0.0
    %800 = vmatmul.mubr.f32.gmra.mxu0 %v658
    %v801 = vpop.f32.mrf.mxu0
    %v802 = vadd.f32 0.0, %v801
    %v803 = vpop.f32.mrf.mxu0
    %v804 = vadd.f32 0.0, %v803
    %805 = vdwg.mxu0
    %v806 = vadd.f32 %v660, %v731
    %v807 = vadd.f32 %v661, %v733
    %v808 = vadd.f32 %v662, %v802
    %v809 = vadd.f32 %v663, %v804
    %v810 = vmul.f32 %v806, 0.5
    %v811 = vtanh.pop %v810
    %v812 = vmul.f32 %v811, 0.5
    %v813 = vadd.f32 %v812, 0.5
    %v814 = vmul.f32 %v807, 0.5
    %v815 = vtanh.pop %v814
    %v816 = vmul.f32 %v815, 0.5
    %v817 = vadd.f32 %v816, 0.5
    %v818 = vtanh.pop %v808
    %v819 = vmul.f32 %v809, 0.5
    %v820 = vtanh.pop %v819
    %v821 = vmul.f32 %v820, 0.5
    %v822 = vadd.f32 %v821, 0.5
    %v823 = vmul.f32 %v817, %v656
    %v824 = vmul.f32 %v813, %v818
    %v825 = vadd.f32 %v823, %v824
    %v826 = vtanh.pop %v825
    %v827 = vmul.f32 %v822, %v826
    %828 = vst [vmem:[#allocation3 + $0x10] sm:$0x3] %v827
    %v829 = vld [vmem:[#allocation2 + $0x60] sm:$0x3]
    %v830 = vld [vmem:[#allocation2 + $0x68] sm:$0x3]
    %v831 = vld [vmem:[#allocation2 + $0x70] sm:$0x3]
    %v832 = vld [vmem:[#allocation2 + $0x78] sm:$0x3]
    %833 = vmatprep.subr.mxu0 %v130
    %834 = vmatpush1.msra.mxu0 %v129
    %835 = vmatprep.subr.mxu0 %v126
    %836 = vmatpush1.msra.mxu0 %v125
    %837 = vmatprep.subr.mxu0 %v122
    %838 = vmatpush1.msra.mxu0 %v121
    %839 = vmatprep.subr.mxu0 %v118
    %840 = vmatpush1.msra.mxu0 %v117
    %841 = vmatprep.subr.mxu0 %v114
    %842 = vmatpush1.msra.mxu0 %v113
    %843 = vmatprep.subr.mxu0 %v110
    %844 = vmatpush1.msra.mxu0 %v109
    %845 = vmatprep.subr.mxu0 %v106
    %846 = vmatpush1.msra.mxu0 %v105
    %847 = vmatprep.subr.mxu0 %v102
    %848 = vmatpush1.msra.mxu0 %v101
    %849 = vmatprep.subr.mxu0 %v98
    %850 = vmatpush1.msra.mxu0 %v97
    %851 = vmatprep.subr.mxu0 %v94
    %852 = vmatpush1.msra.mxu0 %v93
    %853 = vmatprep.subr.mxu0 %v90
    %854 = vmatpush1.msra.mxu0 %v89
    %855 = vmatprep.subr.mxu0 %v86
    %856 = vmatpush1.msra.mxu0 %v85
    %857 = vmatprep.subr.mxu0 %v82
    %858 = vmatpush1.msra.mxu0 %v81
    %859 = vmatprep.subr.mxu0 %v78
    %860 = vmatpush1.msra.mxu0 %v77
    %861 = vmatprep.subr.mxu0 %v74
    %862 = vmatpush1.msra.mxu0 %v73
    %863 = vmatprep.subr.mxu0 %v70
    %864 = vmatpush1.msra.mxu0 %v69
    %865 = vmatprep.subr.mxu0 0.0
    %866 = vmatpush2.msra.mxu0 0.0
    %867 = vmatprep.subr.mxu0 0.0
    %868 = vmatpush2.msra.mxu0 0.0
    %869 = vmatprep.subr.mxu0 0.0
    %870 = vmatpush2.msra.mxu0 0.0
    %871 = vmatprep.subr.mxu0 0.0
    %872 = vmatpush2.msra.mxu0 0.0
    %873 = vmatprep.subr.mxu0 0.0
    %874 = vmatpush2.msra.mxu0 0.0
    %875 = vmatprep.subr.mxu0 0.0
    %876 = vmatpush2.msra.mxu0 0.0
    %877 = vmatprep.subr.mxu0 0.0
    %878 = vmatpush2.msra.mxu0 0.0
    %879 = vmatprep.subr.mxu0 0.0
    %880 = vmatpush2.msra.mxu0 0.0
    %881 = vmatprep.subr.mxu0 0.0
    %882 = vmatpush2.msra.mxu0 0.0
    %883 = vmatprep.subr.mxu0 0.0
    %884 = vmatpush2.msra.mxu0 0.0
    %885 = vmatprep.subr.mxu0 0.0
    %886 = vmatpush2.msra.mxu0 0.0
    %887 = vmatprep.subr.mxu0 0.0
    %888 = vmatpush2.msra.mxu0 0.0
    %889 = vmatprep.subr.mxu0 0.0
    %890 = vmatpush2.msra.mxu0 0.0
    %891 = vmatprep.subr.mxu0 0.0
    %892 = vmatpush2.msra.mxu0 0.0
    %893 = vmatprep.subr.mxu0 0.0
    %894 = vmatpush2.msra.mxu0 0.0
    %895 = vmatprep.subr.mxu0 0.0
    %896 = vmatpush2.msra.mxu0 0.0
    %897 = vmatprep.mubr.f32.mxu0 0.0
    %898 = vmatmul.mubr.f32.gmra.mxu0 %v827
    %v899 = vpop.f32.mrf.mxu0
    %v900 = vadd.f32 0.0, %v899
    %v901 = vpop.f32.mrf.mxu0
    %v902 = vadd.f32 0.0, %v901
    %903 = vdwg.mxu0
    %904 = vmatprep.subr.mxu0 %v132
    %905 = vmatpush1.msra.mxu0 %v131
    %906 = vmatprep.subr.mxu0 %v128
    %907 = vmatpush1.msra.mxu0 %v127
    %908 = vmatprep.subr.mxu0 %v124
    %909 = vmatpush1.msra.mxu0 %v123
    %910 = vmatprep.subr.mxu0 %v120
    %911 = vmatpush1.msra.mxu0 %v119
    %912 = vmatprep.subr.mxu0 %v116
    %913 = vmatpush1.msra.mxu0 %v115
    %914 = vmatprep.subr.mxu0 %v112
    %915 = vmatpush1.msra.mxu0 %v111
    %916 = vmatprep.subr.mxu0 %v108
    %917 = vmatpush1.msra.mxu0 %v107
    %918 = vmatprep.subr.mxu0 %v104
    %919 = vmatpush1.msra.mxu0 %v103
    %920 = vmatprep.subr.mxu0 %v100
    %921 = vmatpush1.msra.mxu0 %v99
    %922 = vmatprep.subr.mxu0 %v96
    %923 = vmatpush1.msra.mxu0 %v95
    %924 = vmatprep.subr.mxu0 %v92
    %925 = vmatpush1.msra.mxu0 %v91
    %926 = vmatprep.subr.mxu0 %v88
    %927 = vmatpush1.msra.mxu0 %v87
    %928 = vmatprep.subr.mxu0 %v84
    %929 = vmatpush1.msra.mxu0 %v83
    %930 = vmatprep.subr.mxu0 %v80
    %931 = vmatpush1.msra.mxu0 %v79
    %932 = vmatprep.subr.mxu0 %v76
    %933 = vmatpush1.msra.mxu0 %v75
    %934 = vmatprep.subr.mxu0 %v72
    %935 = vmatpush1.msra.mxu0 %v71
    %936 = vmatprep.subr.mxu0 0.0
    %937 = vmatpush2.msra.mxu0 0.0
    %938 = vmatprep.subr.mxu0 0.0
    %939 = vmatpush2.msra.mxu0 0.0
    %940 = vmatprep.subr.mxu0 0.0
    %941 = vmatpush2.msra.mxu0 0.0
    %942 = vmatprep.subr.mxu0 0.0
    %943 = vmatpush2.msra.mxu0 0.0
    %944 = vmatprep.subr.mxu0 0.0
    %945 = vmatpush2.msra.mxu0 0.0
    %946 = vmatprep.subr.mxu0 0.0
    %947 = vmatpush2.msra.mxu0 0.0
    %948 = vmatprep.subr.mxu0 0.0
    %949 = vmatpush2.msra.mxu0 0.0
    %950 = vmatprep.subr.mxu0 0.0
    %951 = vmatpush2.msra.mxu0 0.0
    %952 = vmatprep.subr.mxu0 0.0
    %953 = vmatpush2.msra.mxu0 0.0
    %954 = vmatprep.subr.mxu0 0.0
    %955 = vmatpush2.msra.mxu0 0.0
    %956 = vmatprep.subr.mxu0 0.0
    %957 = vmatpush2.msra.mxu0 0.0
    %958 = vmatprep.subr.mxu0 0.0
    %959 = vmatpush2.msra.mxu0 0.0
    %960 = vmatprep.subr.mxu0 0.0
    %961 = vmatpush2.msra.mxu0 0.0
    %962 = vmatprep.subr.mxu0 0.0
    %963 = vmatpush2.msra.mxu0 0.0
    %964 = vmatprep.subr.mxu0 0.0
    %965 = vmatpush2.msra.mxu0 0.0
    %966 = vmatprep.subr.mxu0 0.0
    %967 = vmatpush2.msra.mxu0 0.0
    %968 = vmatprep.mubr.f32.mxu0 0.0
    %969 = vmatmul.mubr.f32.gmra.mxu0 %v827
    %v970 = vpop.f32.mrf.mxu0
    %v971 = vadd.f32 0.0, %v970
    %v972 = vpop.f32.mrf.mxu0
    %v973 = vadd.f32 0.0, %v972
    %974 = vdwg.mxu0
    %v975 = vadd.f32 %v829, %v900
    %v976 = vadd.f32 %v830, %v902
    %v977 = vadd.f32 %v831, %v971
    %v978 = vadd.f32 %v832, %v973
    %v979 = vmul.f32 %v975, 0.5
    %v980 = vtanh.pop %v979
    %v981 = vmul.f32 %v980, 0.5
    %v982 = vadd.f32 %v981, 0.5
    %v983 = vmul.f32 %v976, 0.5
    %v984 = vtanh.pop %v983
    %v985 = vmul.f32 %v984, 0.5
    %v986 = vadd.f32 %v985, 0.5
    %v987 = vtanh.pop %v977
    %v988 = vmul.f32 %v978, 0.5
    %v989 = vtanh.pop %v988
    %v990 = vmul.f32 %v989, 0.5
    %v991 = vadd.f32 %v990, 0.5
    %v992 = vmul.f32 %v986, %v825
    %v993 = vmul.f32 %v982, %v987
    %v994 = vadd.f32 %v992, %v993
    %v995 = vtanh.pop %v994
    %v996 = vmul.f32 %v991, %v995
    %997 = vst [vmem:[#allocation3 + $0x18] sm:$0x3] %v996
    %v998 = vld [vmem:[#allocation2 + $0x80] sm:$0x3]
    %v999 = vld [vmem:[#allocation2 + $0x88] sm:$0x3]
    %v1000 = vld [vmem:[#allocation2 + $0x90] sm:$0x3]
    %v1001 = vld [vmem:[#allocation2 + $0x98] sm:$0x3]
    %1002 = vmatprep.subr.mxu0 %v130
    %1003 = vmatpush1.msra.mxu0 %v129
    %1004 = vmatprep.subr.mxu0 %v126
    %1005 = vmatpush1.msra.mxu0 %v125
    %1006 = vmatprep.subr.mxu0 %v122
    %1007 = vmatpush1.msra.mxu0 %v121
    %1008 = vmatprep.subr.mxu0 %v118
    %1009 = vmatpush1.msra.mxu0 %v117
    %1010 = vmatprep.subr.mxu0 %v114
    %1011 = vmatpush1.msra.mxu0 %v113
    %1012 = vmatprep.subr.mxu0 %v110
    %1013 = vmatpush1.msra.mxu0 %v109
    %1014 = vmatprep.subr.mxu0 %v106
    %1015 = vmatpush1.msra.mxu0 %v105
    %1016 = vmatprep.subr.mxu0 %v102
    %1017 = vmatpush1.msra.mxu0 %v101
    %1018 = vmatprep.subr.mxu0 %v98
    %1019 = vmatpush1.msra.mxu0 %v97
    %1020 = vmatprep.subr.mxu0 %v94
    %1021 = vmatpush1.msra.mxu0 %v93
    %1022 = vmatprep.subr.mxu0 %v90
    %1023 = vmatpush1.msra.mxu0 %v89
    %1024 = vmatprep.subr.mxu0 %v86
    %1025 = vmatpush1.msra.mxu0 %v85
    %1026 = vmatprep.subr.mxu0 %v82
    %1027 = vmatpush1.msra.mxu0 %v81
    %1028 = vmatprep.subr.mxu0 %v78
    %1029 = vmatpush1.msra.mxu0 %v77
    %1030 = vmatprep.subr.mxu0 %v74
    %1031 = vmatpush1.msra.mxu0 %v73
    %1032 = vmatprep.subr.mxu0 %v70
    %1033 = vmatpush1.msra.mxu0 %v69
    %1034 = vmatprep.subr.mxu0 0.0
    %1035 = vmatpush2.msra.mxu0 0.0
    %1036 = vmatprep.subr.mxu0 0.0
    %1037 = vmatpush2.msra.mxu0 0.0
    %1038 = vmatprep.subr.mxu0 0.0
    %1039 = vmatpush2.msra.mxu0 0.0
    %1040 = vmatprep.subr.mxu0 0.0
    %1041 = vmatpush2.msra.mxu0 0.0
    %1042 = vmatprep.subr.mxu0 0.0
    %1043 = vmatpush2.msra.mxu0 0.0
    %1044 = vmatprep.subr.mxu0 0.0
    %1045 = vmatpush2.msra.mxu0 0.0
    %1046 = vmatprep.subr.mxu0 0.0
    %1047 = vmatpush2.msra.mxu0 0.0
    %1048 = vmatprep.subr.mxu0 0.0
    %1049 = vmatpush2.msra.mxu0 0.0
    %1050 = vmatprep.subr.mxu0 0.0
    %1051 = vmatpush2.msra.mxu0 0.0
    %1052 = vmatprep.subr.mxu0 0.0
    %1053 = vmatpush2.msra.mxu0 0.0
    %1054 = vmatprep.subr.mxu0 0.0
    %1055 = vmatpush2.msra.mxu0 0.0
    %1056 = vmatprep.subr.mxu0 0.0
    %1057 = vmatpush2.msra.mxu0 0.0
    %1058 = vmatprep.subr.mxu0 0.0
    %1059 = vmatpush2.msra.mxu0 0.0
    %1060 = vmatprep.subr.mxu0 0.0
    %1061 = vmatpush2.msra.mxu0 0.0
    %1062 = vmatprep.subr.mxu0 0.0
    %1063 = vmatpush2.msra.mxu0 0.0
    %1064 = vmatprep.subr.mxu0 0.0
    %1065 = vmatpush2.msra.mxu0 0.0
    %1066 = vmatprep.mubr.f32.mxu0 0.0
    %1067 = vmatmul.mubr.f32.gmra.mxu0 %v996
    %v1068 = vpop.f32.mrf.mxu0
    %v1069 = vadd.f32 0.0, %v1068
    %v1070 = vpop.f32.mrf.mxu0
    %v1071 = vadd.f32 0.0, %v1070
    %1072 = vdwg.mxu0
    %1073 = vmatprep.subr.mxu0 %v132
    %1074 = vmatpush1.msra.mxu0 %v131
    %1075 = vmatprep.subr.mxu0 %v128
    %1076 = vmatpush1.msra.mxu0 %v127
    %1077 = vmatprep.subr.mxu0 %v124
    %1078 = vmatpush1.msra.mxu0 %v123
    %1079 = vmatprep.subr.mxu0 %v120
    %1080 = vmatpush1.msra.mxu0 %v119
    %1081 = vmatprep.subr.mxu0 %v116
    %1082 = vmatpush1.msra.mxu0 %v115
    %1083 = vmatprep.subr.mxu0 %v112
    %1084 = vmatpush1.msra.mxu0 %v111
    %1085 = vmatprep.subr.mxu0 %v108
    %1086 = vmatpush1.msra.mxu0 %v107
    %1087 = vmatprep.subr.mxu0 %v104
    %1088 = vmatpush1.msra.mxu0 %v103
    %1089 = vmatprep.subr.mxu0 %v100
    %1090 = vmatpush1.msra.mxu0 %v99
    %1091 = vmatprep.subr.mxu0 %v96
    %1092 = vmatpush1.msra.mxu0 %v95
    %1093 = vmatprep.subr.mxu0 %v92
    %1094 = vmatpush1.msra.mxu0 %v91
    %1095 = vmatprep.subr.mxu0 %v88
    %1096 = vmatpush1.msra.mxu0 %v87
    %1097 = vmatprep.subr.mxu0 %v84
    %1098 = vmatpush1.msra.mxu0 %v83
    %1099 = vmatprep.subr.mxu0 %v80
    %1100 = vmatpush1.msra.mxu0 %v79
    %1101 = vmatprep.subr.mxu0 %v76
    %1102 = vmatpush1.msra.mxu0 %v75
    %1103 = vmatprep.subr.mxu0 %v72
    %1104 = vmatpush1.msra.mxu0 %v71
    %1105 = vmatprep.subr.mxu0 0.0
    %1106 = vmatpush2.msra.mxu0 0.0
    %1107 = vmatprep.subr.mxu0 0.0
    %1108 = vmatpush2.msra.mxu0 0.0
    %1109 = vmatprep.subr.mxu0 0.0
    %1110 = vmatpush2.msra.mxu0 0.0
    %1111 = vmatprep.subr.mxu0 0.0
    %1112 = vmatpush2.msra.mxu0 0.0
    %1113 = vmatprep.subr.mxu0 0.0
    %1114 = vmatpush2.msra.mxu0 0.0
    %1115 = vmatprep.subr.mxu0 0.0
    %1116 = vmatpush2.msra.mxu0 0.0
    %1117 = vmatprep.subr.mxu0 0.0
    %1118 = vmatpush2.msra.mxu0 0.0
    %1119 = vmatprep.subr.mxu0 0.0
    %1120 = vmatpush2.msra.mxu0 0.0
    %1121 = vmatprep.subr.mxu0 0.0
    %1122 = vmatpush2.msra.mxu0 0.0
    %1123 = vmatprep.subr.mxu0 0.0
    %1124 = vmatpush2.msra.mxu0 0.0
    %1125 = vmatprep.subr.mxu0 0.0
    %1126 = vmatpush2.msra.mxu0 0.0
    %1127 = vmatprep.subr.mxu0 0.0
    %1128 = vmatpush2.msra.mxu0 0.0
    %1129 = vmatprep.subr.mxu0 0.0
    %1130 = vmatpush2.msra.mxu0 0.0
    %1131 = vmatprep.subr.mxu0 0.0
    %1132 = vmatpush2.msra.mxu0 0.0
    %1133 = vmatprep.subr.mxu0 0.0
    %1134 = vmatpush2.msra.mxu0 0.0
    %1135 = vmatprep.subr.mxu0 0.0
    %1136 = vmatpush2.msra.mxu0 0.0
    %1137 = vmatprep.mubr.f32.mxu0 0.0
    %1138 = vmatmul.mubr.f32.gmra.mxu0 %v996
    %v1139 = vpop.f32.mrf.mxu0
    %v1140 = vadd.f32 0.0, %v1139
    %v1141 = vpop.f32.mrf.mxu0
    %v1142 = vadd.f32 0.0, %v1141
    %1143 = vdwg.mxu0
    %v1144 = vadd.f32 %v998, %v1069
    %v1145 = vadd.f32 %v999, %v1071
    %v1146 = vadd.f32 %v1000, %v1140
    %v1147 = vadd.f32 %v1001, %v1142
    %v1148 = vmul.f32 %v1144, 0.5
    %v1149 = vtanh.pop %v1148
    %v1150 = vmul.f32 %v1149, 0.5
    %v1151 = vadd.f32 %v1150, 0.5
    %v1152 = vmul.f32 %v1145, 0.5
    %v1153 = vtanh.pop %v1152
    %v1154 = vmul.f32 %v1153, 0.5
    %v1155 = vadd.f32 %v1154, 0.5
    %v1156 = vtanh.pop %v1146
    %v1157 = vmul.f32 %v1147, 0.5
    %v1158 = vtanh.pop %v1157
    %v1159 = vmul.f32 %v1158, 0.5
    %v1160 = vadd.f32 %v1159, 0.5
    %v1161 = vmul.f32 %v1155, %v994
    %v1162 = vmul.f32 %v1151, %v1156
    %v1163 = vadd.f32 %v1161, %v1162
    %v1164 = vtanh.pop %v1163
    %v1165 = vmul.f32 %v1160, %v1164
    %1166 = vst [vmem:[#allocation3 + $0x20] sm:$0x3] %v1165
    %v1167 = vld [vmem:[#allocation2 + $0xa0] sm:$0x3]
    %v1168 = vld [vmem:[#allocation2 + $0xa8] sm:$0x3]
    %v1169 = vld [vmem:[#allocation2 + $0xb0] sm:$0x3]
    %v1170 = vld [vmem:[#allocation2 + $0xb8] sm:$0x3]
    %1171 = vmatprep.subr.mxu0 %v130
    %1172 = vmatpush1.msra.mxu0 %v129
    %1173 = vmatprep.subr.mxu0 %v126
    %1174 = vmatpush1.msra.mxu0 %v125
    %1175 = vmatprep.subr.mxu0 %v122
    %1176 = vmatpush1.msra.mxu0 %v121
    %1177 = vmatprep.subr.mxu0 %v118
    %1178 = vmatpush1.msra.mxu0 %v117
    %1179 = vmatprep.subr.mxu0 %v114
    %1180 = vmatpush1.msra.mxu0 %v113
    %1181 = vmatprep.subr.mxu0 %v110
    %1182 = vmatpush1.msra.mxu0 %v109
    %1183 = vmatprep.subr.mxu0 %v106
    %1184 = vmatpush1.msra.mxu0 %v105
    %1185 = vmatprep.subr.mxu0 %v102
    %1186 = vmatpush1.msra.mxu0 %v101
    %1187 = vmatprep.subr.mxu0 %v98
    %1188 = vmatpush1.msra.mxu0 %v97
    %1189 = vmatprep.subr.mxu0 %v94
    %1190 = vmatpush1.msra.mxu0 %v93
    %1191 = vmatprep.subr.mxu0 %v90
    %1192 = vmatpush1.msra.mxu0 %v89
    %1193 = vmatprep.subr.mxu0 %v86
    %1194 = vmatpush1.msra.mxu0 %v85
    %1195 = vmatprep.subr.mxu0 %v82
    %1196 = vmatpush1.msra.mxu0 %v81
    %1197 = vmatprep.subr.mxu0 %v78
    %1198 = vmatpush1.msra.mxu0 %v77
    %1199 = vmatprep.subr.mxu0 %v74
    %1200 = vmatpush1.msra.mxu0 %v73
    %1201 = vmatprep.subr.mxu0 %v70
    %1202 = vmatpush1.msra.mxu0 %v69
    %1203 = vmatprep.subr.mxu0 0.0
    %1204 = vmatpush2.msra.mxu0 0.0
    %1205 = vmatprep.subr.mxu0 0.0
    %1206 = vmatpush2.msra.mxu0 0.0
    %1207 = vmatprep.subr.mxu0 0.0
    %1208 = vmatpush2.msra.mxu0 0.0
    %1209 = vmatprep.subr.mxu0 0.0
    %1210 = vmatpush2.msra.mxu0 0.0
    %1211 = vmatprep.subr.mxu0 0.0
    %1212 = vmatpush2.msra.mxu0 0.0
    %1213 = vmatprep.subr.mxu0 0.0
    %1214 = vmatpush2.msra.mxu0 0.0
    %1215 = vmatprep.subr.mxu0 0.0
    %1216 = vmatpush2.msra.mxu0 0.0
    %1217 = vmatprep.subr.mxu0 0.0
    %1218 = vmatpush2.msra.mxu0 0.0
    %1219 = vmatprep.subr.mxu0 0.0
    %1220 = vmatpush2.msra.mxu0 0.0
    %1221 = vmatprep.subr.mxu0 0.0
    %1222 = vmatpush2.msra.mxu0 0.0
    %1223 = vmatprep.subr.mxu0 0.0
    %1224 = vmatpush2.msra.mxu0 0.0
    %1225 = vmatprep.subr.mxu0 0.0
    %1226 = vmatpush2.msra.mxu0 0.0
    %1227 = vmatprep.subr.mxu0 0.0
    %1228 = vmatpush2.msra.mxu0 0.0
    %1229 = vmatprep.subr.mxu0 0.0
    %1230 = vmatpush2.msra.mxu0 0.0
    %1231 = vmatprep.subr.mxu0 0.0
    %1232 = vmatpush2.msra.mxu0 0.0
    %1233 = vmatprep.subr.mxu0 0.0
    %1234 = vmatpush2.msra.mxu0 0.0
    %1235 = vmatprep.mubr.f32.mxu0 0.0
    %1236 = vmatmul.mubr.f32.gmra.mxu0 %v1165
    %v1237 = vpop.f32.mrf.mxu0
    %v1238 = vadd.f32 0.0, %v1237
    %v1239 = vpop.f32.mrf.mxu0
    %v1240 = vadd.f32 0.0, %v1239
    %1241 = vdwg.mxu0
    %1242 = vmatprep.subr.mxu0 %v132
    %1243 = vmatpush1.msra.mxu0 %v131
    %1244 = vmatprep.subr.mxu0 %v128
    %1245 = vmatpush1.msra.mxu0 %v127
    %1246 = vmatprep.subr.mxu0 %v124
    %1247 = vmatpush1.msra.mxu0 %v123
    %1248 = vmatprep.subr.mxu0 %v120
    %1249 = vmatpush1.msra.mxu0 %v119
    %1250 = vmatprep.subr.mxu0 %v116
    %1251 = vmatpush1.msra.mxu0 %v115
    %1252 = vmatprep.subr.mxu0 %v112
    %1253 = vmatpush1.msra.mxu0 %v111
    %1254 = vmatprep.subr.mxu0 %v108
    %1255 = vmatpush1.msra.mxu0 %v107
    %1256 = vmatprep.subr.mxu0 %v104
    %1257 = vmatpush1.msra.mxu0 %v103
    %1258 = vmatprep.subr.mxu0 %v100
    %1259 = vmatpush1.msra.mxu0 %v99
    %1260 = vmatprep.subr.mxu0 %v96
    %1261 = vmatpush1.msra.mxu0 %v95
    %1262 = vmatprep.subr.mxu0 %v92
    %1263 = vmatpush1.msra.mxu0 %v91
    %1264 = vmatprep.subr.mxu0 %v88
    %1265 = vmatpush1.msra.mxu0 %v87
    %1266 = vmatprep.subr.mxu0 %v84
    %1267 = vmatpush1.msra.mxu0 %v83
    %1268 = vmatprep.subr.mxu0 %v80
    %1269 = vmatpush1.msra.mxu0 %v79
    %1270 = vmatprep.subr.mxu0 %v76
    %1271 = vmatpush1.msra.mxu0 %v75
    %1272 = vmatprep.subr.mxu0 %v72
    %1273 = vmatpush1.msra.mxu0 %v71
    %1274 = vmatprep.subr.mxu0 0.0
    %1275 = vmatpush2.msra.mxu0 0.0
    %1276 = vmatprep.subr.mxu0 0.0
    %1277 = vmatpush2.msra.mxu0 0.0
    %1278 = vmatprep.subr.mxu0 0.0
    %1279 = vmatpush2.msra.mxu0 0.0
    %1280 = vmatprep.subr.mxu0 0.0
    %1281 = vmatpush2.msra.mxu0 0.0
    %1282 = vmatprep.subr.mxu0 0.0
    %1283 = vmatpush2.msra.mxu0 0.0
    %1284 = vmatprep.subr.mxu0 0.0
    %1285 = vmatpush2.msra.mxu0 0.0
    %1286 = vmatprep.subr.mxu0 0.0
    %1287 = vmatpush2.msra.mxu0 0.0
    %1288 = vmatprep.subr.mxu0 0.0
    %1289 = vmatpush2.msra.mxu0 0.0
    %1290 = vmatprep.subr.mxu0 0.0
    %1291 = vmatpush2.msra.mxu0 0.0
    %1292 = vmatprep.subr.mxu0 0.0
    %1293 = vmatpush2.msra.mxu0 0.0
    %1294 = vmatprep.subr.mxu0 0.0
    %1295 = vmatpush2.msra.mxu0 0.0
    %1296 = vmatprep.subr.mxu0 0.0
    %1297 = vmatpush2.msra.mxu0 0.0
    %1298 = vmatprep.subr.mxu0 0.0
    %1299 = vmatpush2.msra.mxu0 0.0
    %1300 = vmatprep.subr.mxu0 0.0
    %1301 = vmatpush2.msra.mxu0 0.0
    %1302 = vmatprep.subr.mxu0 0.0
    %1303 = vmatpush2.msra.mxu0 0.0
    %1304 = vmatprep.subr.mxu0 0.0
    %1305 = vmatpush2.msra.mxu0 0.0
    %1306 = vmatprep.mubr.f32.mxu0 0.0
    %1307 = vmatmul.mubr.f32.gmra.mxu0 %v1165
    %v1308 = vpop.f32.mrf.mxu0
    %v1309 = vadd.f32 0.0, %v1308
    %v1310 = vpop.f32.mrf.mxu0
    %v1311 = vadd.f32 0.0, %v1310
    %1312 = vdwg.mxu0
    %v1313 = vadd.f32 %v1167, %v1238
    %v1314 = vadd.f32 %v1168, %v1240
    %v1315 = vadd.f32 %v1169, %v1309
    %v1316 = vadd.f32 %v1170, %v1311
    %v1317 = vmul.f32 %v1313, 0.5
    %v1318 = vtanh.pop %v1317
    %v1319 = vmul.f32 %v1318, 0.5
    %v1320 = vadd.f32 %v1319, 0.5
    %v1321 = vmul.f32 %v1314, 0.5
    %v1322 = vtanh.pop %v1321
    %v1323 = vmul.f32 %v1322, 0.5
    %v1324 = vadd.f32 %v1323, 0.5
    %v1325 = vtanh.pop %v1315
    %v1326 = vmul.f32 %v1316, 0.5
    %v1327 = vtanh.pop %v1326
    %v1328 = vmul.f32 %v1327, 0.5
    %v1329 = vadd.f32 %v1328, 0.5
    %v1330 = vmul.f32 %v1324, %v1163
    %v1331 = vmul.f32 %v1320, %v1325
    %v1332 = vadd.f32 %v1330, %v1331
    %v1333 = vtanh.pop %v1332
    %v1334 = vmul.f32 %v1329, %v1333
    %1335 = vst [vmem:[#allocation3 + $0x28] sm:$0x3] %v1334
    %v1336 = vld [vmem:[#allocation2 + $0xc0] sm:$0x3]
    %v1337 = vld [vmem:[#allocation2 + $0xc8] sm:$0x3]
    %v1338 = vld [vmem:[#allocation2 + $0xd0] sm:$0x3]
    %v1339 = vld [vmem:[#allocation2 + $0xd8] sm:$0x3]
    %1340 = vmatprep.subr.mxu0 %v130
    %1341 = vmatpush1.msra.mxu0 %v129
    %1342 = vmatprep.subr.mxu0 %v126
    %1343 = vmatpush1.msra.mxu0 %v125
    %1344 = vmatprep.subr.mxu0 %v122
    %1345 = vmatpush1.msra.mxu0 %v121
    %1346 = vmatprep.subr.mxu0 %v118
    %1347 = vmatpush1.msra.mxu0 %v117
    %1348 = vmatprep.subr.mxu0 %v114
    %1349 = vmatpush1.msra.mxu0 %v113
    %1350 = vmatprep.subr.mxu0 %v110
    %1351 = vmatpush1.msra.mxu0 %v109
    %1352 = vmatprep.subr.mxu0 %v106
    %1353 = vmatpush1.msra.mxu0 %v105
    %1354 = vmatprep.subr.mxu0 %v102
    %1355 = vmatpush1.msra.mxu0 %v101
    %1356 = vmatprep.subr.mxu0 %v98
    %1357 = vmatpush1.msra.mxu0 %v97
    %1358 = vmatprep.subr.mxu0 %v94
    %1359 = vmatpush1.msra.mxu0 %v93
    %1360 = vmatprep.subr.mxu0 %v90
    %1361 = vmatpush1.msra.mxu0 %v89
    %1362 = vmatprep.subr.mxu0 %v86
    %1363 = vmatpush1.msra.mxu0 %v85
    %1364 = vmatprep.subr.mxu0 %v82
    %1365 = vmatpush1.msra.mxu0 %v81
    %1366 = vmatprep.subr.mxu0 %v78
    %1367 = vmatpush1.msra.mxu0 %v77
    %1368 = vmatprep.subr.mxu0 %v74
    %1369 = vmatpush1.msra.mxu0 %v73
    %1370 = vmatprep.subr.mxu0 %v70
    %1371 = vmatpush1.msra.mxu0 %v69
    %1372 = vmatprep.subr.mxu0 0.0
    %1373 = vmatpush2.msra.mxu0 0.0
    %1374 = vmatprep.subr.mxu0 0.0
    %1375 = vmatpush2.msra.mxu0 0.0
    %1376 = vmatprep.subr.mxu0 0.0
    %1377 = vmatpush2.msra.mxu0 0.0
    %1378 = vmatprep.subr.mxu0 0.0
    %1379 = vmatpush2.msra.mxu0 0.0
    %1380 = vmatprep.subr.mxu0 0.0
    %1381 = vmatpush2.msra.mxu0 0.0
    %1382 = vmatprep.subr.mxu0 0.0
    %1383 = vmatpush2.msra.mxu0 0.0
    %1384 = vmatprep.subr.mxu0 0.0
    %1385 = vmatpush2.msra.mxu0 0.0
    %1386 = vmatprep.subr.mxu0 0.0
    %1387 = vmatpush2.msra.mxu0 0.0
    %1388 = vmatprep.subr.mxu0 0.0
    %1389 = vmatpush2.msra.mxu0 0.0
    %1390 = vmatprep.subr.mxu0 0.0
    %1391 = vmatpush2.msra.mxu0 0.0
    %1392 = vmatprep.subr.mxu0 0.0
    %1393 = vmatpush2.msra.mxu0 0.0
    %1394 = vmatprep.subr.mxu0 0.0
    %1395 = vmatpush2.msra.mxu0 0.0
    %1396 = vmatprep.subr.mxu0 0.0
    %1397 = vmatpush2.msra.mxu0 0.0
    %1398 = vmatprep.subr.mxu0 0.0
    %1399 = vmatpush2.msra.mxu0 0.0
    %1400 = vmatprep.subr.mxu0 0.0
    %1401 = vmatpush2.msra.mxu0 0.0
    %1402 = vmatprep.subr.mxu0 0.0
    %1403 = vmatpush2.msra.mxu0 0.0
    %1404 = vmatprep.mubr.f32.mxu0 0.0
    %1405 = vmatmul.mubr.f32.gmra.mxu0 %v1334
    %v1406 = vpop.f32.mrf.mxu0
    %v1407 = vadd.f32 0.0, %v1406
    %v1408 = vpop.f32.mrf.mxu0
    %v1409 = vadd.f32 0.0, %v1408
    %1410 = vdwg.mxu0
    %1411 = vmatprep.subr.mxu0 %v132
    %1412 = vmatpush1.msra.mxu0 %v131
    %1413 = vmatprep.subr.mxu0 %v128
    %1414 = vmatpush1.msra.mxu0 %v127
    %1415 = vmatprep.subr.mxu0 %v124
    %1416 = vmatpush1.msra.mxu0 %v123
    %1417 = vmatprep.subr.mxu0 %v120
    %1418 = vmatpush1.msra.mxu0 %v119
    %1419 = vmatprep.subr.mxu0 %v116
    %1420 = vmatpush1.msra.mxu0 %v115
    %1421 = vmatprep.subr.mxu0 %v112
    %1422 = vmatpush1.msra.mxu0 %v111
    %1423 = vmatprep.subr.mxu0 %v108
    %1424 = vmatpush1.msra.mxu0 %v107
    %1425 = vmatprep.subr.mxu0 %v104
    %1426 = vmatpush1.msra.mxu0 %v103
    %1427 = vmatprep.subr.mxu0 %v100
    %1428 = vmatpush1.msra.mxu0 %v99
    %1429 = vmatprep.subr.mxu0 %v96
    %1430 = vmatpush1.msra.mxu0 %v95
    %1431 = vmatprep.subr.mxu0 %v92
    %1432 = vmatpush1.msra.mxu0 %v91
    %1433 = vmatprep.subr.mxu0 %v88
    %1434 = vmatpush1.msra.mxu0 %v87
    %1435 = vmatprep.subr.mxu0 %v84
    %1436 = vmatpush1.msra.mxu0 %v83
    %1437 = vmatprep.subr.mxu0 %v80
    %1438 = vmatpush1.msra.mxu0 %v79
    %1439 = vmatprep.subr.mxu0 %v76
    %1440 = vmatpush1.msra.mxu0 %v75
    %1441 = vmatprep.subr.mxu0 %v72
    %1442 = vmatpush1.msra.mxu0 %v71
    %1443 = vmatprep.subr.mxu0 0.0
    %1444 = vmatpush2.msra.mxu0 0.0
    %1445 = vmatprep.subr.mxu0 0.0
    %1446 = vmatpush2.msra.mxu0 0.0
    %1447 = vmatprep.subr.mxu0 0.0
    %1448 = vmatpush2.msra.mxu0 0.0
    %1449 = vmatprep.subr.mxu0 0.0
    %1450 = vmatpush2.msra.mxu0 0.0
    %1451 = vmatprep.subr.mxu0 0.0
    %1452 = vmatpush2.msra.mxu0 0.0
    %1453 = vmatprep.subr.mxu0 0.0
    %1454 = vmatpush2.msra.mxu0 0.0
    %1455 = vmatprep.subr.mxu0 0.0
    %1456 = vmatpush2.msra.mxu0 0.0
    %1457 = vmatprep.subr.mxu0 0.0
    %1458 = vmatpush2.msra.mxu0 0.0
    %1459 = vmatprep.subr.mxu0 0.0
    %1460 = vmatpush2.msra.mxu0 0.0
    %1461 = vmatprep.subr.mxu0 0.0
    %1462 = vmatpush2.msra.mxu0 0.0
    %1463 = vmatprep.subr.mxu0 0.0
    %1464 = vmatpush2.msra.mxu0 0.0
    %1465 = vmatprep.subr.mxu0 0.0
    %1466 = vmatpush2.msra.mxu0 0.0
    %1467 = vmatprep.subr.mxu0 0.0
    %1468 = vmatpush2.msra.mxu0 0.0
    %1469 = vmatprep.subr.mxu0 0.0
    %1470 = vmatpush2.msra.mxu0 0.0
    %1471 = vmatprep.subr.mxu0 0.0
    %1472 = vmatpush2.msra.mxu0 0.0
    %1473 = vmatprep.subr.mxu0 0.0
    %1474 = vmatpush2.msra.mxu0 0.0
    %1475 = vmatprep.mubr.f32.mxu0 0.0
    %1476 = vmatmul.mubr.f32.gmra.mxu0 %v1334
    %v1477 = vpop.f32.mrf.mxu0
    %v1478 = vadd.f32 0.0, %v1477
    %v1479 = vpop.f32.mrf.mxu0
    %v1480 = vadd.f32 0.0, %v1479
    %1481 = vdwg.mxu0
    %v1482 = vadd.f32 %v1336, %v1407
    %v1483 = vadd.f32 %v1337, %v1409
    %v1484 = vadd.f32 %v1338, %v1478
    %v1485 = vadd.f32 %v1339, %v1480
    %v1486 = vmul.f32 %v1482, 0.5
    %v1487 = vtanh.pop %v1486
    %v1488 = vmul.f32 %v1487, 0.5
    %v1489 = vadd.f32 %v1488, 0.5
    %v1490 = vmul.f32 %v1483, 0.5
    %v1491 = vtanh.pop %v1490
    %v1492 = vmul.f32 %v1491, 0.5
    %v1493 = vadd.f32 %v1492, 0.5
    %v1494 = vtanh.pop %v1484
    %v1495 = vmul.f32 %v1485, 0.5
    %v1496 = vtanh.pop %v1495
    %v1497 = vmul.f32 %v1496, 0.5
    %v1498 = vadd.f32 %v1497, 0.5
    %v1499 = vmul.f32 %v1493, %v1332
    %v1500 = vmul.f32 %v1489, %v1494
    %v1501 = vadd.f32 %v1499, %v1500
    %v1502 = vtanh.pop %v1501
    %v1503 = vmul.f32 %v1498, %v1502
    %1504 = vst [vmem:[#allocation3 + $0x30] sm:$0x3] %v1503
    %v1505 = vld [vmem:[#allocation2 + $0xe0] sm:$0x3]
    %v1506 = vld [vmem:[#allocation2 + $0xe8] sm:$0x3]
    %v1507 = vld [vmem:[#allocation2 + $0xf0] sm:$0x3]
    %v1508 = vld [vmem:[#allocation2 + $0xf8] sm:$0x3]
    %1509 = vmatprep.subr.mxu0 %v130
    %1510 = vmatpush1.msra.mxu0 %v129
    %1511 = vmatprep.subr.mxu0 %v126
    %1512 = vmatpush1.msra.mxu0 %v125
    %1513 = vmatprep.subr.mxu0 %v122
    %1514 = vmatpush1.msra.mxu0 %v121
    %1515 = vmatprep.subr.mxu0 %v118
    %1516 = vmatpush1.msra.mxu0 %v117
    %1517 = vmatprep.subr.mxu0 %v114
    %1518 = vmatpush1.msra.mxu0 %v113
    %1519 = vmatprep.subr.mxu0 %v110
    %1520 = vmatpush1.msra.mxu0 %v109
    %1521 = vmatprep.subr.mxu0 %v106
    %1522 = vmatpush1.msra.mxu0 %v105
    %1523 = vmatprep.subr.mxu0 %v102
    %1524 = vmatpush1.msra.mxu0 %v101
    %1525 = vmatprep.subr.mxu0 %v98
    %1526 = vmatpush1.msra.mxu0 %v97
    %1527 = vmatprep.subr.mxu0 %v94
    %1528 = vmatpush1.msra.mxu0 %v93
    %1529 = vmatprep.subr.mxu0 %v90
    %1530 = vmatpush1.msra.mxu0 %v89
    %1531 = vmatprep.subr.mxu0 %v86
    %1532 = vmatpush1.msra.mxu0 %v85
    %1533 = vmatprep.subr.mxu0 %v82
    %1534 = vmatpush1.msra.mxu0 %v81
    %1535 = vmatprep.subr.mxu0 %v78
    %1536 = vmatpush1.msra.mxu0 %v77
    %1537 = vmatprep.subr.mxu0 %v74
    %1538 = vmatpush1.msra.mxu0 %v73
    %1539 = vmatprep.subr.mxu0 %v70
    %1540 = vmatpush1.msra.mxu0 %v69
    %1541 = vmatprep.subr.mxu0 0.0
    %1542 = vmatpush2.msra.mxu0 0.0
    %1543 = vmatprep.subr.mxu0 0.0
    %1544 = vmatpush2.msra.mxu0 0.0
    %1545 = vmatprep.subr.mxu0 0.0
    %1546 = vmatpush2.msra.mxu0 0.0
    %1547 = vmatprep.subr.mxu0 0.0
    %1548 = vmatpush2.msra.mxu0 0.0
    %1549 = vmatprep.subr.mxu0 0.0
    %1550 = vmatpush2.msra.mxu0 0.0
    %1551 = vmatprep.subr.mxu0 0.0
    %1552 = vmatpush2.msra.mxu0 0.0
    %1553 = vmatprep.subr.mxu0 0.0
    %1554 = vmatpush2.msra.mxu0 0.0
    %1555 = vmatprep.subr.mxu0 0.0
    %1556 = vmatpush2.msra.mxu0 0.0
    %1557 = vmatprep.subr.mxu0 0.0
    %1558 = vmatpush2.msra.mxu0 0.0
    %1559 = vmatprep.subr.mxu0 0.0
    %1560 = vmatpush2.msra.mxu0 0.0
    %1561 = vmatprep.subr.mxu0 0.0
    %1562 = vmatpush2.msra.mxu0 0.0
    %1563 = vmatprep.subr.mxu0 0.0
    %1564 = vmatpush2.msra.mxu0 0.0
    %1565 = vmatprep.subr.mxu0 0.0
    %1566 = vmatpush2.msra.mxu0 0.0
    %1567 = vmatprep.subr.mxu0 0.0
    %1568 = vmatpush2.msra.mxu0 0.0
    %1569 = vmatprep.subr.mxu0 0.0
    %1570 = vmatpush2.msra.mxu0 0.0
    %1571 = vmatprep.subr.mxu0 0.0
    %1572 = vmatpush2.msra.mxu0 0.0
    %1573 = vmatprep.mubr.f32.mxu0 0.0
    %1574 = vmatmul.mubr.f32.gmra.mxu0 %v1503
    %v1575 = vpop.f32.mrf.mxu0
    %v1576 = vadd.f32 0.0, %v1575
    %v1577 = vpop.f32.mrf.mxu0
    %v1578 = vadd.f32 0.0, %v1577
    %1579 = vdwg.mxu0
    %1580 = vmatprep.subr.mxu0 %v132
    %1581 = vmatpush1.msra.mxu0 %v131
    %1582 = vmatprep.subr.mxu0 %v128
    %1583 = vmatpush1.msra.mxu0 %v127
    %1584 = vmatprep.subr.mxu0 %v124
    %1585 = vmatpush1.msra.mxu0 %v123
    %1586 = vmatprep.subr.mxu0 %v120
    %1587 = vmatpush1.msra.mxu0 %v119
    %1588 = vmatprep.subr.mxu0 %v116
    %1589 = vmatpush1.msra.mxu0 %v115
    %1590 = vmatprep.subr.mxu0 %v112
    %1591 = vmatpush1.msra.mxu0 %v111
    %1592 = vmatprep.subr.mxu0 %v108
    %1593 = vmatpush1.msra.mxu0 %v107
    %1594 = vmatprep.subr.mxu0 %v104
    %1595 = vmatpush1.msra.mxu0 %v103
    %1596 = vmatprep.subr.mxu0 %v100
    %1597 = vmatpush1.msra.mxu0 %v99
    %1598 = vmatprep.subr.mxu0 %v96
    %1599 = vmatpush1.msra.mxu0 %v95
    %1600 = vmatprep.subr.mxu0 %v92
    %1601 = vmatpush1.msra.mxu0 %v91
    %1602 = vmatprep.subr.mxu0 %v88
    %1603 = vmatpush1.msra.mxu0 %v87
    %1604 = vmatprep.subr.mxu0 %v84
    %1605 = vmatpush1.msra.mxu0 %v83
    %1606 = vmatprep.subr.mxu0 %v80
    %1607 = vmatpush1.msra.mxu0 %v79
    %1608 = vmatprep.subr.mxu0 %v76
    %1609 = vmatpush1.msra.mxu0 %v75
    %1610 = vmatprep.subr.mxu0 %v72
    %1611 = vmatpush1.msra.mxu0 %v71
    %1612 = vmatprep.subr.mxu0 0.0
    %1613 = vmatpush2.msra.mxu0 0.0
    %1614 = vmatprep.subr.mxu0 0.0
    %1615 = vmatpush2.msra.mxu0 0.0
    %1616 = vmatprep.subr.mxu0 0.0
    %1617 = vmatpush2.msra.mxu0 0.0
    %1618 = vmatprep.subr.mxu0 0.0
    %1619 = vmatpush2.msra.mxu0 0.0
    %1620 = vmatprep.subr.mxu0 0.0
    %1621 = vmatpush2.msra.mxu0 0.0
    %1622 = vmatprep.subr.mxu0 0.0
    %1623 = vmatpush2.msra.mxu0 0.0
    %1624 = vmatprep.subr.mxu0 0.0
    %1625 = vmatpush2.msra.mxu0 0.0
    %1626 = vmatprep.subr.mxu0 0.0
    %1627 = vmatpush2.msra.mxu0 0.0
    %1628 = vmatprep.subr.mxu0 0.0
    %1629 = vmatpush2.msra.mxu0 0.0
    %1630 = vmatprep.subr.mxu0 0.0
    %1631 = vmatpush2.msra.mxu0 0.0
    %1632 = vmatprep.subr.mxu0 0.0
    %1633 = vmatpush2.msra.mxu0 0.0
    %1634 = vmatprep.subr.mxu0 0.0
    %1635 = vmatpush2.msra.mxu0 0.0
    %1636 = vmatprep.subr.mxu0 0.0
    %1637 = vmatpush2.msra.mxu0 0.0
    %1638 = vmatprep.subr.mxu0 0.0
    %1639 = vmatpush2.msra.mxu0 0.0
    %1640 = vmatprep.subr.mxu0 0.0
    %1641 = vmatpush2.msra.mxu0 0.0
    %1642 = vmatprep.subr.mxu0 0.0
    %1643 = vmatpush2.msra.mxu0 0.0
    %1644 = vmatprep.mubr.f32.mxu0 0.0
    %1645 = vmatmul.mubr.f32.gmra.mxu0 %v1503
    %v1646 = vpop.f32.mrf.mxu0
    %v1647 = vadd.f32 0.0, %v1646
    %v1648 = vpop.f32.mrf.mxu0
    %v1649 = vadd.f32 0.0, %v1648
    %1650 = vdwg.mxu0
    %v1651 = vadd.f32 %v1505, %v1576
    %v1652 = vadd.f32 %v1506, %v1578
    %v1653 = vadd.f32 %v1507, %v1647
    %v1654 = vadd.f32 %v1508, %v1649
    %v1655 = vmul.f32 %v1651, 0.5
    %v1656 = vtanh.pop %v1655
    %v1657 = vmul.f32 %v1656, 0.5
    %v1658 = vadd.f32 %v1657, 0.5
    %v1659 = vmul.f32 %v1652, 0.5
    %v1660 = vtanh.pop %v1659
    %v1661 = vmul.f32 %v1660, 0.5
    %v1662 = vadd.f32 %v1661, 0.5
    %v1663 = vtanh.pop %v1653
    %v1664 = vmul.f32 %v1654, 0.5
    %v1665 = vtanh.pop %v1664
    %v1666 = vmul.f32 %v1665, 0.5
    %v1667 = vadd.f32 %v1666, 0.5
    %v1668 = vmul.f32 %v1662, %v1501
    %v1669 = vmul.f32 %v1658, %v1663
    %v1670 = vadd.f32 %v1668, %v1669
    %v1671 = vtanh.pop %v1670
    %v1672 = vmul.f32 %v1667, %v1671
    %1673 = vst [vmem:[#allocation3 + $0x38] sm:$0x3] %v1672
    %1674 = vst [vmem:[#allocation4] sm:$0x3] %v1672
    %1675 = vst [vmem:[#allocation6] sm:$0x3] %v1670
    %v1676 = vld [vmem:[%s6] sm:$0xff]
    %v1677 = vld [vmem:[%s6 + $0x8] sm:$0xff]
    %v1678 = vld [vmem:[%s6 + $0x10] sm:$0xff]
    %v1679 = vld [vmem:[%s6 + $0x18] sm:$0xff]
    %v1680 = vld [vmem:[%s6 + $0x20] sm:$0xff]
    %v1681 = vld [vmem:[%s6 + $0x28] sm:$0xff]
    %v1682 = vld [vmem:[%s6 + $0x30] sm:$0xff]
    %v1683 = vld [vmem:[%s6 + $0x38] sm:$0xff]
    %v1684 = vld [vmem:[%s6 + $0x40] sm:$0xff]
    %v1685 = vld [vmem:[%s6 + $0x48] sm:$0xff]
    %v1686 = vld [vmem:[%s6 + $0x50] sm:$0xff]
    %v1687 = vld [vmem:[%s6 + $0x58] sm:$0xff]
    %v1688 = vld [vmem:[%s6 + $0x60] sm:$0xff]
    %v1689 = vld [vmem:[%s6 + $0x68] sm:$0xff]
    %v1690 = vld [vmem:[%s6 + $0x70] sm:$0xff]
    %v1691 = vld [vmem:[%s6 + $0x78] sm:$0xff]
    %v1692 = vld [vmem:[%s6 + $0x80] sm:$0xff]
    %v1693 = vld [vmem:[%s6 + $0x88] sm:$0xff]
    %v1694 = vld [vmem:[%s6 + $0x90] sm:$0xff]
    %v1695 = vld [vmem:[%s6 + $0x98] sm:$0xff]
    %v1696 = vld [vmem:[%s6 + $0xa0] sm:$0xff]
    %v1697 = vld [vmem:[%s6 + $0xa8] sm:$0xff]
    %v1698 = vld [vmem:[%s6 + $0xb0] sm:$0xff]
    %v1699 = vld [vmem:[%s6 + $0xb8] sm:$0xff]
    %v1700 = vld [vmem:[%s6 + $0xc0] sm:$0xff]
    %v1701 = vld [vmem:[%s6 + $0xc8] sm:$0xff]
    %v1702 = vld [vmem:[%s6 + $0xd0] sm:$0xff]
    %v1703 = vld [vmem:[%s6 + $0xd8] sm:$0xff]
    %v1704 = vld [vmem:[%s6 + $0xe0] sm:$0xff]
    %v1705 = vld [vmem:[%s6 + $0xe8] sm:$0xff]
    %v1706 = vld [vmem:[%s6 + $0xf0] sm:$0xff]
    %v1707 = vld [vmem:[%s6 + $0xf8] sm:$0xff]
    %v1708 = vld [vmem:[%s6 + $0x100] sm:$0xff]
    %v1709 = vld [vmem:[%s6 + $0x108] sm:$0xff]
    %v1710 = vld [vmem:[%s6 + $0x110] sm:$0xff]
    %v1711 = vld [vmem:[%s6 + $0x118] sm:$0xff]
    %v1712 = vld [vmem:[%s6 + $0x120] sm:$0xff]
    %v1713 = vld [vmem:[%s6 + $0x128] sm:$0xff]
    %v1714 = vld [vmem:[%s6 + $0x130] sm:$0xff]
    %v1715 = vld [vmem:[%s6 + $0x138] sm:$0xff]
    %v1716 = vld [vmem:[%s6 + $0x140] sm:$0xff]
    %v1717 = vld [vmem:[%s6 + $0x148] sm:$0xff]
    %v1718 = vld [vmem:[%s6 + $0x150] sm:$0xff]
    %v1719 = vld [vmem:[%s6 + $0x158] sm:$0xff]
    %v1720 = vld [vmem:[%s6 + $0x160] sm:$0xff]
    %v1721 = vld [vmem:[%s6 + $0x168] sm:$0xff]
    %v1722 = vld [vmem:[%s6 + $0x170] sm:$0xff]
    %v1723 = vld [vmem:[%s6 + $0x178] sm:$0xff]
    %v1724 = vld [vmem:[%s6 + $0x180] sm:$0xff]
    %v1725 = vld [vmem:[%s6 + $0x188] sm:$0xff]
    %v1726 = vld [vmem:[%s6 + $0x190] sm:$0xff]
    %v1727 = vld [vmem:[%s6 + $0x198] sm:$0xff]
    %v1728 = vld [vmem:[%s6 + $0x1a0] sm:$0xff]
    %v1729 = vld [vmem:[%s6 + $0x1a8] sm:$0xff]
    %v1730 = vld [vmem:[%s6 + $0x1b0] sm:$0xff]
    %v1731 = vld [vmem:[%s6 + $0x1b8] sm:$0xff]
    %v1732 = vld [vmem:[%s6 + $0x1c0] sm:$0xff]
    %v1733 = vld [vmem:[%s6 + $0x1c8] sm:$0xff]
    %v1734 = vld [vmem:[%s6 + $0x1d0] sm:$0xff]
    %v1735 = vld [vmem:[%s6 + $0x1d8] sm:$0xff]
    %v1736 = vld [vmem:[%s6 + $0x1e0] sm:$0xff]
    %v1737 = vld [vmem:[%s6 + $0x1e8] sm:$0xff]
    %v1738 = vld [vmem:[%s6 + $0x1f0] sm:$0xff]
    %v1739 = vld [vmem:[%s6 + $0x1f8] sm:$0xff]
    %v1740 = vld [vmem:[%s7] sm:$0xff]
    %v1741 = vld [vmem:[%s7 + $0x8] sm:$0xff]
    %v1742 = vld [vmem:[%s7 + $0x10] sm:$0xff]
    %v1743 = vld [vmem:[%s7 + $0x18] sm:$0xff]
    %v1744 = vld [vmem:[%s7 + $0x20] sm:$0xff]
    %v1745 = vld [vmem:[%s7 + $0x28] sm:$0xff]
    %v1746 = vld [vmem:[%s7 + $0x30] sm:$0xff]
    %v1747 = vld [vmem:[%s7 + $0x38] sm:$0xff]
    %v1748 = vld [vmem:[%s7 + $0x40] sm:$0xff]
    %v1749 = vld [vmem:[%s7 + $0x48] sm:$0xff]
    %v1750 = vld [vmem:[%s7 + $0x50] sm:$0xff]
    %v1751 = vld [vmem:[%s7 + $0x58] sm:$0xff]
    %v1752 = vld [vmem:[%s7 + $0x60] sm:$0xff]
    %v1753 = vld [vmem:[%s7 + $0x68] sm:$0xff]
    %v1754 = vld [vmem:[%s7 + $0x70] sm:$0xff]
    %v1755 = vld [vmem:[%s7 + $0x78] sm:$0xff]
    %v1756 = vld [vmem:[%s7 + $0x80] sm:$0xff]
    %v1757 = vld [vmem:[%s7 + $0x88] sm:$0xff]
    %v1758 = vld [vmem:[%s7 + $0x90] sm:$0xff]
    %v1759 = vld [vmem:[%s7 + $0x98] sm:$0xff]
    %v1760 = vld [vmem:[%s7 + $0xa0] sm:$0xff]
    %v1761 = vld [vmem:[%s7 + $0xa8] sm:$0xff]
    %v1762 = vld [vmem:[%s7 + $0xb0] sm:$0xff]
    %v1763 = vld [vmem:[%s7 + $0xb8] sm:$0xff]
    %v1764 = vld [vmem:[%s7 + $0xc0] sm:$0xff]
    %v1765 = vld [vmem:[%s7 + $0xc8] sm:$0xff]
    %v1766 = vld [vmem:[%s7 + $0xd0] sm:$0xff]
    %v1767 = vld [vmem:[%s7 + $0xd8] sm:$0xff]
    %v1768 = vld [vmem:[%s7 + $0xe0] sm:$0xff]
    %v1769 = vld [vmem:[%s7 + $0xe8] sm:$0xff]
    %v1770 = vld [vmem:[%s7 + $0xf0] sm:$0xff]
    %v1771 = vld [vmem:[%s7 + $0xf8] sm:$0xff]
    %v1772 = vld [vmem:[%s7 + $0x100] sm:$0xff]
    %v1773 = vld [vmem:[%s7 + $0x108] sm:$0xff]
    %v1774 = vld [vmem:[%s7 + $0x110] sm:$0xff]
    %v1775 = vld [vmem:[%s7 + $0x118] sm:$0xff]
    %v1776 = vld [vmem:[%s7 + $0x120] sm:$0xff]
    %v1777 = vld [vmem:[%s7 + $0x128] sm:$0xff]
    %v1778 = vld [vmem:[%s7 + $0x130] sm:$0xff]
    %v1779 = vld [vmem:[%s7 + $0x138] sm:$0xff]
    %v1780 = vld [vmem:[%s7 + $0x140] sm:$0xff]
    %v1781 = vld [vmem:[%s7 + $0x148] sm:$0xff]
    %v1782 = vld [vmem:[%s7 + $0x150] sm:$0xff]
    %v1783 = vld [vmem:[%s7 + $0x158] sm:$0xff]
    %v1784 = vld [vmem:[%s7 + $0x160] sm:$0xff]
    %v1785 = vld [vmem:[%s7 + $0x168] sm:$0xff]
    %v1786 = vld [vmem:[%s7 + $0x170] sm:$0xff]
    %v1787 = vld [vmem:[%s7 + $0x178] sm:$0xff]
    %v1788 = vld [vmem:[%s7 + $0x180] sm:$0xff]
    %v1789 = vld [vmem:[%s7 + $0x188] sm:$0xff]
    %v1790 = vld [vmem:[%s7 + $0x190] sm:$0xff]
    %v1791 = vld [vmem:[%s7 + $0x198] sm:$0xff]
    %v1792 = vld [vmem:[%s7 + $0x1a0] sm:$0xff]
    %v1793 = vld [vmem:[%s7 + $0x1a8] sm:$0xff]
    %v1794 = vld [vmem:[%s7 + $0x1b0] sm:$0xff]
    %v1795 = vld [vmem:[%s7 + $0x1b8] sm:$0xff]
    %v1796 = vld [vmem:[%s7 + $0x1c0] sm:$0xff]
    %v1797 = vld [vmem:[%s7 + $0x1c8] sm:$0xff]
    %v1798 = vld [vmem:[%s7 + $0x1d0] sm:$0xff]
    %v1799 = vld [vmem:[%s7 + $0x1d8] sm:$0xff]
    %v1800 = vld [vmem:[%s7 + $0x1e0] sm:$0xff]
    %v1801 = vld [vmem:[%s7 + $0x1e8] sm:$0xff]
    %v1802 = vld [vmem:[%s7 + $0x1f0] sm:$0xff]
    %v1803 = vld [vmem:[%s7 + $0x1f8] sm:$0xff]
    %v1804 = vld [vmem:[%s8] sm:$0xf]
    %v1805 = vld [vmem:[#allocation3] sm:$0xff]
    %v1806 = vld [vmem:[#allocation3 + $0x8] sm:$0xff]
    %v1807 = vld [vmem:[#allocation3 + $0x10] sm:$0xff]
    %v1808 = vld [vmem:[#allocation3 + $0x18] sm:$0xff]
    %v1809 = vld [vmem:[#allocation3 + $0x20] sm:$0xff]
    %v1810 = vld [vmem:[#allocation3 + $0x28] sm:$0xff]
    %v1811 = vld [vmem:[#allocation3 + $0x30] sm:$0xff]
    %v1812 = vld [vmem:[#allocation3 + $0x38] sm:$0xff]
    %v1814 = vlaneseq
    %v1815 = vshrl.u32 %v1814, 7
    %v1816 = vsub.s32 0, %v1815
    %v1817 = vrot.slane %v1804, %v1816
    %v1818 = vlaneseq
    %v1819 = vshrl.u32 %v1818, 7
    %v1820 = vsub.s32 1, %v1819
    %v1821 = vrot.slane %v1804, %v1820
    %v1822 = vlaneseq
    %v1823 = vshrl.u32 %v1822, 7
    %v1824 = vsub.s32 2, %v1823
    %v1825 = vrot.slane %v1804, %v1824
    %v1826 = vlaneseq
    %v1827 = vshrl.u32 %v1826, 7
    %v1828 = vsub.s32 3, %v1827
    %v1829 = vrot.slane %v1804, %v1828
    %1834 = vmatprep.subr.mxu0 %v1737
    %1835 = vmatpush1.msra.mxu0 %v1736
    %1836 = vmatprep.subr.mxu0 %v1733
    %1837 = vmatpush1.msra.mxu0 %v1732
    %1838 = vmatprep.subr.mxu0 %v1729
    %1839 = vmatpush1.msra.mxu0 %v1728
    %1840 = vmatprep.subr.mxu0 %v1725
    %1841 = vmatpush1.msra.mxu0 %v1724
    %1842 = vmatprep.subr.mxu0 %v1721
    %1843 = vmatpush1.msra.mxu0 %v1720
    %1844 = vmatprep.subr.mxu0 %v1717
    %1845 = vmatpush1.msra.mxu0 %v1716
    %1846 = vmatprep.subr.mxu0 %v1713
    %1847 = vmatpush1.msra.mxu0 %v1712
    %1848 = vmatprep.subr.mxu0 %v1709
    %1849 = vmatpush1.msra.mxu0 %v1708
    %1850 = vmatprep.subr.mxu0 %v1705
    %1851 = vmatpush1.msra.mxu0 %v1704
    %1852 = vmatprep.subr.mxu0 %v1701
    %1853 = vmatpush1.msra.mxu0 %v1700
    %1854 = vmatprep.subr.mxu0 %v1697
    %1855 = vmatpush1.msra.mxu0 %v1696
    %1856 = vmatprep.subr.mxu0 %v1693
    %1857 = vmatpush1.msra.mxu0 %v1692
    %1858 = vmatprep.subr.mxu0 %v1689
    %1859 = vmatpush1.msra.mxu0 %v1688
    %1860 = vmatprep.subr.mxu0 %v1685
    %1861 = vmatpush1.msra.mxu0 %v1684
    %1862 = vmatprep.subr.mxu0 %v1681
    %1863 = vmatpush1.msra.mxu0 %v1680
    %1864 = vmatprep.subr.mxu0 %v1677
    %1865 = vmatpush1.msra.mxu0 %v1676
    %1866 = vmatprep.subr.mxu0 0.0
    %1867 = vmatpush2.msra.mxu0 0.0
    %1868 = vmatprep.subr.mxu0 0.0
    %1869 = vmatpush2.msra.mxu0 0.0
    %1870 = vmatprep.subr.mxu0 0.0
    %1871 = vmatpush2.msra.mxu0 0.0
    %1872 = vmatprep.subr.mxu0 0.0
    %1873 = vmatpush2.msra.mxu0 0.0
    %1874 = vmatprep.subr.mxu0 0.0
    %1875 = vmatpush2.msra.mxu0 0.0
    %1876 = vmatprep.subr.mxu0 0.0
    %1877 = vmatpush2.msra.mxu0 0.0
    %1878 = vmatprep.subr.mxu0 0.0
    %1879 = vmatpush2.msra.mxu0 0.0
    %1880 = vmatprep.subr.mxu0 0.0
    %1881 = vmatpush2.msra.mxu0 0.0
    %1882 = vmatprep.subr.mxu0 0.0
    %1883 = vmatpush2.msra.mxu0 0.0
    %1884 = vmatprep.subr.mxu0 0.0
    %1885 = vmatpush2.msra.mxu0 0.0
    %1886 = vmatprep.subr.mxu0 0.0
    %1887 = vmatpush2.msra.mxu0 0.0
    %1888 = vmatprep.subr.mxu0 0.0
    %1889 = vmatpush2.msra.mxu0 0.0
    %1890 = vmatprep.subr.mxu0 0.0
    %1891 = vmatpush2.msra.mxu0 0.0
    %1892 = vmatprep.subr.mxu0 0.0
    %1893 = vmatpush2.msra.mxu0 0.0
    %1894 = vmatprep.subr.mxu0 0.0
    %1895 = vmatpush2.msra.mxu0 0.0
    %1896 = vmatprep.subr.mxu0 0.0
    %1897 = vmatpush2.msra.mxu0 0.0
    %1898 = vmatprep.mubr.f32.mxu0 0.0
    %1899 = vmatmul.mubr.f32.gmra.mxu0 %v1805
    %v1900 = vpop.f32.mrf.mxu0
    %v1901 = vadd.f32 %v1817, %v1900
    %v1902 = vpop.f32.mrf.mxu0
    %v1903 = vadd.f32 %v1821, %v1902
    %1904 = vmatprep.mubr.f32.mxu0 0.0
    %1905 = vmatmul.mubr.f32.gmra.mxu0 %v1806
    %v1906 = vpop.f32.mrf.mxu0
    %v1907 = vadd.f32 %v1817, %v1906
    %v1908 = vpop.f32.mrf.mxu0
    %v1909 = vadd.f32 %v1821, %v1908
    %1910 = vmatprep.mubr.f32.mxu0 0.0
    %1911 = vmatmul.mubr.f32.gmra.mxu0 %v1807
    %v1912 = vpop.f32.mrf.mxu0
    %v1913 = vadd.f32 %v1817, %v1912
    %v1914 = vpop.f32.mrf.mxu0
    %v1915 = vadd.f32 %v1821, %v1914
    %1916 = vmatprep.mubr.f32.mxu0 0.0
    %1917 = vmatmul.mubr.f32.gmra.mxu0 %v1808
    %v1918 = vpop.f32.mrf.mxu0
    %v1919 = vadd.f32 %v1817, %v1918
    %v1920 = vpop.f32.mrf.mxu0
    %v1921 = vadd.f32 %v1821, %v1920
    %1922 = vmatprep.mubr.f32.mxu0 0.0
    %1923 = vmatmul.mubr.f32.gmra.mxu0 %v1809
    %v1924 = vpop.f32.mrf.mxu0
    %v1925 = vadd.f32 %v1817, %v1924
    %v1926 = vpop.f32.mrf.mxu0
    %v1927 = vadd.f32 %v1821, %v1926
    %1928 = vmatprep.mubr.f32.mxu0 0.0
    %1929 = vmatmul.mubr.f32.gmra.mxu0 %v1810
    %v1930 = vpop.f32.mrf.mxu0
    %v1931 = vadd.f32 %v1817, %v1930
    %v1932 = vpop.f32.mrf.mxu0
    %v1933 = vadd.f32 %v1821, %v1932
    %1934 = vmatprep.mubr.f32.mxu0 0.0
    %1935 = vmatmul.mubr.f32.gmra.mxu0 %v1811
    %v1936 = vpop.f32.mrf.mxu0
    %v1937 = vadd.f32 %v1817, %v1936
    %v1938 = vpop.f32.mrf.mxu0
    %v1939 = vadd.f32 %v1821, %v1938
    %1940 = vmatprep.mubr.f32.mxu0 0.0
    %1941 = vmatmul.mubr.f32.gmra.mxu0 %v1812
    %v1942 = vpop.f32.mrf.mxu0
    %v1943 = vadd.f32 %v1817, %v1942
    %v1944 = vpop.f32.mrf.mxu0
    %v1945 = vadd.f32 %v1821, %v1944
    %1946 = vdwg.mxu0
    %1947 = vmatprep.subr.mxu0 %v1739
    %1948 = vmatpush1.msra.mxu0 %v1738
    %1949 = vmatprep.subr.mxu0 %v1735
    %1950 = vmatpush1.msra.mxu0 %v1734
    %1951 = vmatprep.subr.mxu0 %v1731
    %1952 = vmatpush1.msra.mxu0 %v1730
    %1953 = vmatprep.subr.mxu0 %v1727
    %1954 = vmatpush1.msra.mxu0 %v1726
    %1955 = vmatprep.subr.mxu0 %v1723
    %1956 = vmatpush1.msra.mxu0 %v1722
    %1957 = vmatprep.subr.mxu0 %v1719
    %1958 = vmatpush1.msra.mxu0 %v1718
    %1959 = vmatprep.subr.mxu0 %v1715
    %1960 = vmatpush1.msra.mxu0 %v1714
    %1961 = vmatprep.subr.mxu0 %v1711
    %1962 = vmatpush1.msra.mxu0 %v1710
    %1963 = vmatprep.subr.mxu0 %v1707
    %1964 = vmatpush1.msra.mxu0 %v1706
    %1965 = vmatprep.subr.mxu0 %v1703
    %1966 = vmatpush1.msra.mxu0 %v1702
    %1967 = vmatprep.subr.mxu0 %v1699
    %1968 = vmatpush1.msra.mxu0 %v1698
    %1969 = vmatprep.subr.mxu0 %v1695
    %1970 = vmatpush1.msra.mxu0 %v1694
    %1971 = vmatprep.subr.mxu0 %v1691
    %1972 = vmatpush1.msra.mxu0 %v1690
    %1973 = vmatprep.subr.mxu0 %v1687
    %1974 = vmatpush1.msra.mxu0 %v1686
    %1975 = vmatprep.subr.mxu0 %v1683
    %1976 = vmatpush1.msra.mxu0 %v1682
    %1977 = vmatprep.subr.mxu0 %v1679
    %1978 = vmatpush1.msra.mxu0 %v1678
    %1979 = vmatprep.subr.mxu0 0.0
    %1980 = vmatpush2.msra.mxu0 0.0
    %1981 = vmatprep.subr.mxu0 0.0
    %1982 = vmatpush2.msra.mxu0 0.0
    %1983 = vmatprep.subr.mxu0 0.0
    %1984 = vmatpush2.msra.mxu0 0.0
    %1985 = vmatprep.subr.mxu0 0.0
    %1986 = vmatpush2.msra.mxu0 0.0
    %1987 = vmatprep.subr.mxu0 0.0
    %1988 = vmatpush2.msra.mxu0 0.0
    %1989 = vmatprep.subr.mxu0 0.0
    %1990 = vmatpush2.msra.mxu0 0.0
    %1991 = vmatprep.subr.mxu0 0.0
    %1992 = vmatpush2.msra.mxu0 0.0
    %1993 = vmatprep.subr.mxu0 0.0
    %1994 = vmatpush2.msra.mxu0 0.0
    %1995 = vmatprep.subr.mxu0 0.0
    %1996 = vmatpush2.msra.mxu0 0.0
    %1997 = vmatprep.subr.mxu0 0.0
    %1998 = vmatpush2.msra.mxu0 0.0
    %1999 = vmatprep.subr.mxu0 0.0
    %2000 = vmatpush2.msra.mxu0 0.0
    %2001 = vmatprep.subr.mxu0 0.0
    %2002 = vmatpush2.msra.mxu0 0.0
    %2003 = vmatprep.subr.mxu0 0.0
    %2004 = vmatpush2.msra.mxu0 0.0
    %2005 = vmatprep.subr.mxu0 0.0
    %2006 = vmatpush2.msra.mxu0 0.0
    %2007 = vmatprep.subr.mxu0 0.0
    %2008 = vmatpush2.msra.mxu0 0.0
    %2009 = vmatprep.subr.mxu0 0.0
    %2010 = vmatpush2.msra.mxu0 0.0
    %2011 = vmatprep.mubr.f32.mxu0 0.0
    %2012 = vmatmul.mubr.f32.gmra.mxu0 %v1805
    %v2013 = vpop.f32.mrf.mxu0
    %v2014 = vadd.f32 %v1825, %v2013
    %v2015 = vpop.f32.mrf.mxu0
    %v2016 = vadd.f32 %v1829, %v2015
    %2017 = vmatprep.mubr.f32.mxu0 0.0
    %2018 = vmatmul.mubr.f32.gmra.mxu0 %v1806
    %v2019 = vpop.f32.mrf.mxu0
    %v2020 = vadd.f32 %v1825, %v2019
    %v2021 = vpop.f32.mrf.mxu0
    %v2022 = vadd.f32 %v1829, %v2021
    %2023 = vmatprep.mubr.f32.mxu0 0.0
    %2024 = vmatmul.mubr.f32.gmra.mxu0 %v1807
    %v2025 = vpop.f32.mrf.mxu0
    %v2026 = vadd.f32 %v1825, %v2025
    %v2027 = vpop.f32.mrf.mxu0
    %v2028 = vadd.f32 %v1829, %v2027
    %2029 = vmatprep.mubr.f32.mxu0 0.0
    %2030 = vmatmul.mubr.f32.gmra.mxu0 %v1808
    %v2031 = vpop.f32.mrf.mxu0
    %v2032 = vadd.f32 %v1825, %v2031
    %v2033 = vpop.f32.mrf.mxu0
    %v2034 = vadd.f32 %v1829, %v2033
    %2035 = vmatprep.mubr.f32.mxu0 0.0
    %2036 = vmatmul.mubr.f32.gmra.mxu0 %v1809
    %v2037 = vpop.f32.mrf.mxu0
    %v2038 = vadd.f32 %v1825, %v2037
    %v2039 = vpop.f32.mrf.mxu0
    %v2040 = vadd.f32 %v1829, %v2039
    %2041 = vmatprep.mubr.f32.mxu0 0.0
    %2042 = vmatmul.mubr.f32.gmra.mxu0 %v1810
    %v2043 = vpop.f32.mrf.mxu0
    %v2044 = vadd.f32 %v1825, %v2043
    %v2045 = vpop.f32.mrf.mxu0
    %v2046 = vadd.f32 %v1829, %v2045
    %2047 = vmatprep.mubr.f32.mxu0 0.0
    %2048 = vmatmul.mubr.f32.gmra.mxu0 %v1811
    %v2049 = vpop.f32.mrf.mxu0
    %v2050 = vadd.f32 %v1825, %v2049
    %v2051 = vpop.f32.mrf.mxu0
    %v2052 = vadd.f32 %v1829, %v2051
    %2053 = vmatprep.mubr.f32.mxu0 0.0
    %2054 = vmatmul.mubr.f32.gmra.mxu0 %v1812
    %v2055 = vpop.f32.mrf.mxu0
    %v2056 = vadd.f32 %v1825, %v2055
    %v2057 = vpop.f32.mrf.mxu0
    %v2058 = vadd.f32 %v1829, %v2057
    %2059 = vdwg.mxu0
    %2060 = vst [vmem:[#allocation2] sm:$0xff] %v1901
    %2061 = vst [vmem:[#allocation2 + $0x8] sm:$0xff] %v1903
    %2062 = vst [vmem:[#allocation2 + $0x10] sm:$0xff] %v2014
    %2063 = vst [vmem:[#allocation2 + $0x18] sm:$0xff] %v2016
    %2064 = vst [vmem:[#allocation2 + $0x20] sm:$0xff] %v1907
    %2065 = vst [vmem:[#allocation2 + $0x28] sm:$0xff] %v1909
    %2066 = vst [vmem:[#allocation2 + $0x30] sm:$0xff] %v2020
    %2067 = vst [vmem:[#allocation2 + $0x38] sm:$0xff] %v2022
    %2068 = vst [vmem:[#allocation2 + $0x40] sm:$0xff] %v1913
    %2069 = vst [vmem:[#allocation2 + $0x48] sm:$0xff] %v1915
    %2070 = vst [vmem:[#allocation2 + $0x50] sm:$0xff] %v2026
    %2071 = vst [vmem:[#allocation2 + $0x58] sm:$0xff] %v2028
    %2072 = vst [vmem:[#allocation2 + $0x60] sm:$0xff] %v1919
    %2073 = vst [vmem:[#allocation2 + $0x68] sm:$0xff] %v1921
    %2074 = vst [vmem:[#allocation2 + $0x70] sm:$0xff] %v2032
    %2075 = vst [vmem:[#allocation2 + $0x78] sm:$0xff] %v2034
    %2076 = vst [vmem:[#allocation2 + $0x80] sm:$0xff] %v1925
    %2077 = vst [vmem:[#allocation2 + $0x88] sm:$0xff] %v1927
    %2078 = vst [vmem:[#allocation2 + $0x90] sm:$0xff] %v2038
    %2079 = vst [vmem:[#allocation2 + $0x98] sm:$0xff] %v2040
    %2080 = vst [vmem:[#allocation2 + $0xa0] sm:$0xff] %v1931
    %2081 = vst [vmem:[#allocation2 + $0xa8] sm:$0xff] %v1933
    %2082 = vst [vmem:[#allocation2 + $0xb0] sm:$0xff] %v2044
    %2083 = vst [vmem:[#allocation2 + $0xb8] sm:$0xff] %v2046
    %2084 = vst [vmem:[#allocation2 + $0xc0] sm:$0xff] %v1937
    %2085 = vst [vmem:[#allocation2 + $0xc8] sm:$0xff] %v1939
    %2086 = vst [vmem:[#allocation2 + $0xd0] sm:$0xff] %v2050
    %2087 = vst [vmem:[#allocation2 + $0xd8] sm:$0xff] %v2052
    %2088 = vst [vmem:[#allocation2 + $0xe0] sm:$0xff] %v1943
    %2089 = vst [vmem:[#allocation2 + $0xe8] sm:$0xff] %v1945
    %2090 = vst [vmem:[#allocation2 + $0xf0] sm:$0xff] %v2056
    %2091 = vst [vmem:[#allocation2 + $0xf8] sm:$0xff] %v2058
    %s2092 = scalar_lea.vmem %s1, 2
    %v2093 = vld [vmem:[%s2092] sm:$0x3]
    %s2094 = scalar_lea.vmem %s2, 2
    %v2095 = vld [vmem:[%s2094] sm:$0x3]
    %v2096 = vld [vmem:[#allocation2] sm:$0x3]
    %v2097 = vld [vmem:[#allocation2 + $0x8] sm:$0x3]
    %v2098 = vld [vmem:[#allocation2 + $0x10] sm:$0x3]
    %v2099 = vld [vmem:[#allocation2 + $0x18] sm:$0x3]
    %2100 = vmatprep.subr.mxu0 %v1801
    %2101 = vmatpush1.msra.mxu0 %v1800
    %2102 = vmatprep.subr.mxu0 %v1797
    %2103 = vmatpush1.msra.mxu0 %v1796
    %2104 = vmatprep.subr.mxu0 %v1793
    %2105 = vmatpush1.msra.mxu0 %v1792
    %2106 = vmatprep.subr.mxu0 %v1789
    %2107 = vmatpush1.msra.mxu0 %v1788
    %2108 = vmatprep.subr.mxu0 %v1785
    %2109 = vmatpush1.msra.mxu0 %v1784
    %2110 = vmatprep.subr.mxu0 %v1781
    %2111 = vmatpush1.msra.mxu0 %v1780
    %2112 = vmatprep.subr.mxu0 %v1777
    %2113 = vmatpush1.msra.mxu0 %v1776
    %2114 = vmatprep.subr.mxu0 %v1773
    %2115 = vmatpush1.msra.mxu0 %v1772
    %2116 = vmatprep.subr.mxu0 %v1769
    %2117 = vmatpush1.msra.mxu0 %v1768
    %2118 = vmatprep.subr.mxu0 %v1765
    %2119 = vmatpush1.msra.mxu0 %v1764
    %2120 = vmatprep.subr.mxu0 %v1761
    %2121 = vmatpush1.msra.mxu0 %v1760
    %2122 = vmatprep.subr.mxu0 %v1757
    %2123 = vmatpush1.msra.mxu0 %v1756
    %2124 = vmatprep.subr.mxu0 %v1753
    %2125 = vmatpush1.msra.mxu0 %v1752
    %2126 = vmatprep.subr.mxu0 %v1749
    %2127 = vmatpush1.msra.mxu0 %v1748
    %2128 = vmatprep.subr.mxu0 %v1745
    %2129 = vmatpush1.msra.mxu0 %v1744
    %2130 = vmatprep.subr.mxu0 %v1741
    %2131 = vmatpush1.msra.mxu0 %v1740
    %2132 = vmatprep.subr.mxu0 0.0
    %2133 = vmatpush2.msra.mxu0 0.0
    %2134 = vmatprep.subr.mxu0 0.0
    %2135 = vmatpush2.msra.mxu0 0.0
    %2136 = vmatprep.subr.mxu0 0.0
    %2137 = vmatpush2.msra.mxu0 0.0
    %2138 = vmatprep.subr.mxu0 0.0
    %2139 = vmatpush2.msra.mxu0 0.0
    %2140 = vmatprep.subr.mxu0 0.0
    %2141 = vmatpush2.msra.mxu0 0.0
    %2142 = vmatprep.subr.mxu0 0.0
    %2143 = vmatpush2.msra.mxu0 0.0
    %2144 = vmatprep.subr.mxu0 0.0
    %2145 = vmatpush2.msra.mxu0 0.0
    %2146 = vmatprep.subr.mxu0 0.0
    %2147 = vmatpush2.msra.mxu0 0.0
    %2148 = vmatprep.subr.mxu0 0.0
    %2149 = vmatpush2.msra.mxu0 0.0
    %2150 = vmatprep.subr.mxu0 0.0
    %2151 = vmatpush2.msra.mxu0 0.0
    %2152 = vmatprep.subr.mxu0 0.0
    %2153 = vmatpush2.msra.mxu0 0.0
    %2154 = vmatprep.subr.mxu0 0.0
    %2155 = vmatpush2.msra.mxu0 0.0
    %2156 = vmatprep.subr.mxu0 0.0
    %2157 = vmatpush2.msra.mxu0 0.0
    %2158 = vmatprep.subr.mxu0 0.0
    %2159 = vmatpush2.msra.mxu0 0.0
    %2160 = vmatprep.subr.mxu0 0.0
    %2161 = vmatpush2.msra.mxu0 0.0
    %2162 = vmatprep.subr.mxu0 0.0
    %2163 = vmatpush2.msra.mxu0 0.0
    %2164 = vmatprep.mubr.f32.mxu0 0.0
    %2165 = vmatmul.mubr.f32.gmra.mxu0 %v2093
    %v2166 = vpop.f32.mrf.mxu0
    %v2167 = vadd.f32 0.0, %v2166
    %v2168 = vpop.f32.mrf.mxu0
    %v2169 = vadd.f32 0.0, %v2168
    %2170 = vdwg.mxu0
    %2171 = vmatprep.subr.mxu0 %v1803
    %2172 = vmatpush1.msra.mxu0 %v1802
    %2173 = vmatprep.subr.mxu0 %v1799
    %2174 = vmatpush1.msra.mxu0 %v1798
    %2175 = vmatprep.subr.mxu0 %v1795
    %2176 = vmatpush1.msra.mxu0 %v1794
    %2177 = vmatprep.subr.mxu0 %v1791
    %2178 = vmatpush1.msra.mxu0 %v1790
    %2179 = vmatprep.subr.mxu0 %v1787
    %2180 = vmatpush1.msra.mxu0 %v1786
    %2181 = vmatprep.subr.mxu0 %v1783
    %2182 = vmatpush1.msra.mxu0 %v1782
    %2183 = vmatprep.subr.mxu0 %v1779
    %2184 = vmatpush1.msra.mxu0 %v1778
    %2185 = vmatprep.subr.mxu0 %v1775
    %2186 = vmatpush1.msra.mxu0 %v1774
    %2187 = vmatprep.subr.mxu0 %v1771
    %2188 = vmatpush1.msra.mxu0 %v1770
    %2189 = vmatprep.subr.mxu0 %v1767
    %2190 = vmatpush1.msra.mxu0 %v1766
    %2191 = vmatprep.subr.mxu0 %v1763
    %2192 = vmatpush1.msra.mxu0 %v1762
    %2193 = vmatprep.subr.mxu0 %v1759
    %2194 = vmatpush1.msra.mxu0 %v1758
    %2195 = vmatprep.subr.mxu0 %v1755
    %2196 = vmatpush1.msra.mxu0 %v1754
    %2197 = vmatprep.subr.mxu0 %v1751
    %2198 = vmatpush1.msra.mxu0 %v1750
    %2199 = vmatprep.subr.mxu0 %v1747
    %2200 = vmatpush1.msra.mxu0 %v1746
    %2201 = vmatprep.subr.mxu0 %v1743
    %2202 = vmatpush1.msra.mxu0 %v1742
    %2203 = vmatprep.subr.mxu0 0.0
    %2204 = vmatpush2.msra.mxu0 0.0
    %2205 = vmatprep.subr.mxu0 0.0
    %2206 = vmatpush2.msra.mxu0 0.0
    %2207 = vmatprep.subr.mxu0 0.0
    %2208 = vmatpush2.msra.mxu0 0.0
    %2209 = vmatprep.subr.mxu0 0.0
    %2210 = vmatpush2.msra.mxu0 0.0
    %2211 = vmatprep.subr.mxu0 0.0
    %2212 = vmatpush2.msra.mxu0 0.0
    %2213 = vmatprep.subr.mxu0 0.0
    %2214 = vmatpush2.msra.mxu0 0.0
    %2215 = vmatprep.subr.mxu0 0.0
    %2216 = vmatpush2.msra.mxu0 0.0
    %2217 = vmatprep.subr.mxu0 0.0
    %2218 = vmatpush2.msra.mxu0 0.0
    %2219 = vmatprep.subr.mxu0 0.0
    %2220 = vmatpush2.msra.mxu0 0.0
    %2221 = vmatprep.subr.mxu0 0.0
    %2222 = vmatpush2.msra.mxu0 0.0
    %2223 = vmatprep.subr.mxu0 0.0
    %2224 = vmatpush2.msra.mxu0 0.0
    %2225 = vmatprep.subr.mxu0 0.0
    %2226 = vmatpush2.msra.mxu0 0.0
    %2227 = vmatprep.subr.mxu0 0.0
    %2228 = vmatpush2.msra.mxu0 0.0
    %2229 = vmatprep.subr.mxu0 0.0
    %2230 = vmatpush2.msra.mxu0 0.0
    %2231 = vmatprep.subr.mxu0 0.0
    %2232 = vmatpush2.msra.mxu0 0.0
    %2233 = vmatprep.subr.mxu0 0.0
    %2234 = vmatpush2.msra.mxu0 0.0
    %2235 = vmatprep.mubr.f32.mxu0 0.0
    %2236 = vmatmul.mubr.f32.gmra.mxu0 %v2093
    %v2237 = vpop.f32.mrf.mxu0
    %v2238 = vadd.f32 0.0, %v2237
    %v2239 = vpop.f32.mrf.mxu0
    %v2240 = vadd.f32 0.0, %v2239
    %2241 = vdwg.mxu0
    %v2242 = vadd.f32 %v2096, %v2167
    %v2243 = vadd.f32 %v2097, %v2169
    %v2244 = vadd.f32 %v2098, %v2238
    %v2245 = vadd.f32 %v2099, %v2240
    %v2246 = vmul.f32 %v2242, 0.5
    %v2247 = vtanh.pop %v2246
    %v2248 = vmul.f32 %v2247, 0.5
    %v2249 = vadd.f32 %v2248, 0.5
    %v2250 = vmul.f32 %v2243, 0.5
    %v2251 = vtanh.pop %v2250
    %v2252 = vmul.f32 %v2251, 0.5
    %v2253 = vadd.f32 %v2252, 0.5
    %v2254 = vtanh.pop %v2244
    %v2255 = vmul.f32 %v2245, 0.5
    %v2256 = vtanh.pop %v2255
    %v2257 = vmul.f32 %v2256, 0.5
    %v2258 = vadd.f32 %v2257, 0.5
    %v2259 = vmul.f32 %v2253, %v2095
    %v2260 = vmul.f32 %v2249, %v2254
    %v2261 = vadd.f32 %v2259, %v2260
    %v2262 = vtanh.pop %v2261
    %v2263 = vmul.f32 %v2258, %v2262
    %v2264 = vld [vmem:[#allocation2 + $0x20] sm:$0x3]
    %v2265 = vld [vmem:[#allocation2 + $0x28] sm:$0x3]
    %v2266 = vld [vmem:[#allocation2 + $0x30] sm:$0x3]
    %v2267 = vld [vmem:[#allocation2 + $0x38] sm:$0x3]
    %2268 = vmatprep.subr.mxu0 %v1801
    %2269 = vmatpush1.msra.mxu0 %v1800
    %2270 = vmatprep.subr.mxu0 %v1797
    %2271 = vmatpush1.msra.mxu0 %v1796
    %2272 = vmatprep.subr.mxu0 %v1793
    %2273 = vmatpush1.msra.mxu0 %v1792
    %2274 = vmatprep.subr.mxu0 %v1789
    %2275 = vmatpush1.msra.mxu0 %v1788
    %2276 = vmatprep.subr.mxu0 %v1785
    %2277 = vmatpush1.msra.mxu0 %v1784
    %2278 = vmatprep.subr.mxu0 %v1781
    %2279 = vmatpush1.msra.mxu0 %v1780
    %2280 = vmatprep.subr.mxu0 %v1777
    %2281 = vmatpush1.msra.mxu0 %v1776
    %2282 = vmatprep.subr.mxu0 %v1773
    %2283 = vmatpush1.msra.mxu0 %v1772
    %2284 = vmatprep.subr.mxu0 %v1769
    %2285 = vmatpush1.msra.mxu0 %v1768
    %2286 = vmatprep.subr.mxu0 %v1765
    %2287 = vmatpush1.msra.mxu0 %v1764
    %2288 = vmatprep.subr.mxu0 %v1761
    %2289 = vmatpush1.msra.mxu0 %v1760
    %2290 = vmatprep.subr.mxu0 %v1757
    %2291 = vmatpush1.msra.mxu0 %v1756
    %2292 = vmatprep.subr.mxu0 %v1753
    %2293 = vmatpush1.msra.mxu0 %v1752
    %2294 = vmatprep.subr.mxu0 %v1749
    %2295 = vmatpush1.msra.mxu0 %v1748
    %2296 = vmatprep.subr.mxu0 %v1745
    %2297 = vmatpush1.msra.mxu0 %v1744
    %2298 = vmatprep.subr.mxu0 %v1741
    %2299 = vmatpush1.msra.mxu0 %v1740
    %2300 = vmatprep.subr.mxu0 0.0
    %2301 = vmatpush2.msra.mxu0 0.0
    %2302 = vmatprep.subr.mxu0 0.0
    %2303 = vmatpush2.msra.mxu0 0.0
    %2304 = vmatprep.subr.mxu0 0.0
    %2305 = vmatpush2.msra.mxu0 0.0
    %2306 = vmatprep.subr.mxu0 0.0
    %2307 = vmatpush2.msra.mxu0 0.0
    %2308 = vmatprep.subr.mxu0 0.0
    %2309 = vmatpush2.msra.mxu0 0.0
    %2310 = vmatprep.subr.mxu0 0.0
    %2311 = vmatpush2.msra.mxu0 0.0
    %2312 = vmatprep.subr.mxu0 0.0
    %2313 = vmatpush2.msra.mxu0 0.0
    %2314 = vmatprep.subr.mxu0 0.0
    %2315 = vmatpush2.msra.mxu0 0.0
    %2316 = vmatprep.subr.mxu0 0.0
    %2317 = vmatpush2.msra.mxu0 0.0
    %2318 = vmatprep.subr.mxu0 0.0
    %2319 = vmatpush2.msra.mxu0 0.0
    %2320 = vmatprep.subr.mxu0 0.0
    %2321 = vmatpush2.msra.mxu0 0.0
    %2322 = vmatprep.subr.mxu0 0.0
    %2323 = vmatpush2.msra.mxu0 0.0
    %2324 = vmatprep.subr.mxu0 0.0
    %2325 = vmatpush2.msra.mxu0 0.0
    %2326 = vmatprep.subr.mxu0 0.0
    %2327 = vmatpush2.msra.mxu0 0.0
    %2328 = vmatprep.subr.mxu0 0.0
    %2329 = vmatpush2.msra.mxu0 0.0
    %2330 = vmatprep.subr.mxu0 0.0
    %2331 = vmatpush2.msra.mxu0 0.0
    %2332 = vmatprep.mubr.f32.mxu0 0.0
    %2333 = vmatmul.mubr.f32.gmra.mxu0 %v2263
    %v2334 = vpop.f32.mrf.mxu0
    %v2335 = vadd.f32 0.0, %v2334
    %v2336 = vpop.f32.mrf.mxu0
    %v2337 = vadd.f32 0.0, %v2336
    %2338 = vdwg.mxu0
    %2339 = vmatprep.subr.mxu0 %v1803
    %2340 = vmatpush1.msra.mxu0 %v1802
    %2341 = vmatprep.subr.mxu0 %v1799
    %2342 = vmatpush1.msra.mxu0 %v1798
    %2343 = vmatprep.subr.mxu0 %v1795
    %2344 = vmatpush1.msra.mxu0 %v1794
    %2345 = vmatprep.subr.mxu0 %v1791
    %2346 = vmatpush1.msra.mxu0 %v1790
    %2347 = vmatprep.subr.mxu0 %v1787
    %2348 = vmatpush1.msra.mxu0 %v1786
    %2349 = vmatprep.subr.mxu0 %v1783
    %2350 = vmatpush1.msra.mxu0 %v1782
    %2351 = vmatprep.subr.mxu0 %v1779
    %2352 = vmatpush1.msra.mxu0 %v1778
    %2353 = vmatprep.subr.mxu0 %v1775
    %2354 = vmatpush1.msra.mxu0 %v1774
    %2355 = vmatprep.subr.mxu0 %v1771
    %2356 = vmatpush1.msra.mxu0 %v1770
    %2357 = vmatprep.subr.mxu0 %v1767
    %2358 = vmatpush1.msra.mxu0 %v1766
    %2359 = vmatprep.subr.mxu0 %v1763
    %2360 = vmatpush1.msra.mxu0 %v1762
    %2361 = vmatprep.subr.mxu0 %v1759
    %2362 = vmatpush1.msra.mxu0 %v1758
    %2363 = vmatprep.subr.mxu0 %v1755
    %2364 = vmatpush1.msra.mxu0 %v1754
    %2365 = vmatprep.subr.mxu0 %v1751
    %2366 = vmatpush1.msra.mxu0 %v1750
    %2367 = vmatprep.subr.mxu0 %v1747
    %2368 = vmatpush1.msra.mxu0 %v1746
    %2369 = vmatprep.subr.mxu0 %v1743
    %2370 = vmatpush1.msra.mxu0 %v1742
    %2371 = vmatprep.subr.mxu0 0.0
    %2372 = vmatpush2.msra.mxu0 0.0
    %2373 = vmatprep.subr.mxu0 0.0
    %2374 = vmatpush2.msra.mxu0 0.0
    %2375 = vmatprep.subr.mxu0 0.0
    %2376 = vmatpush2.msra.mxu0 0.0
    %2377 = vmatprep.subr.mxu0 0.0
    %2378 = vmatpush2.msra.mxu0 0.0
    %2379 = vmatprep.subr.mxu0 0.0
    %2380 = vmatpush2.msra.mxu0 0.0
    %2381 = vmatprep.subr.mxu0 0.0
    %2382 = vmatpush2.msra.mxu0 0.0
    %2383 = vmatprep.subr.mxu0 0.0
    %2384 = vmatpush2.msra.mxu0 0.0
    %2385 = vmatprep.subr.mxu0 0.0
    %2386 = vmatpush2.msra.mxu0 0.0
    %2387 = vmatprep.subr.mxu0 0.0
    %2388 = vmatpush2.msra.mxu0 0.0
    %2389 = vmatprep.subr.mxu0 0.0
    %2390 = vmatpush2.msra.mxu0 0.0
    %2391 = vmatprep.subr.mxu0 0.0
    %2392 = vmatpush2.msra.mxu0 0.0
    %2393 = vmatprep.subr.mxu0 0.0
    %2394 = vmatpush2.msra.mxu0 0.0
    %2395 = vmatprep.subr.mxu0 0.0
    %2396 = vmatpush2.msra.mxu0 0.0
    %2397 = vmatprep.subr.mxu0 0.0
    %2398 = vmatpush2.msra.mxu0 0.0
    %2399 = vmatprep.subr.mxu0 0.0
    %2400 = vmatpush2.msra.mxu0 0.0
    %2401 = vmatprep.subr.mxu0 0.0
    %2402 = vmatpush2.msra.mxu0 0.0
    %2403 = vmatprep.mubr.f32.mxu0 0.0
    %2404 = vmatmul.mubr.f32.gmra.mxu0 %v2263
    %v2405 = vpop.f32.mrf.mxu0
    %v2406 = vadd.f32 0.0, %v2405
    %v2407 = vpop.f32.mrf.mxu0
    %v2408 = vadd.f32 0.0, %v2407
    %2409 = vdwg.mxu0
    %v2410 = vadd.f32 %v2264, %v2335
    %v2411 = vadd.f32 %v2265, %v2337
    %v2412 = vadd.f32 %v2266, %v2406
    %v2413 = vadd.f32 %v2267, %v2408
    %v2414 = vmul.f32 %v2410, 0.5
    %v2415 = vtanh.pop %v2414
    %v2416 = vmul.f32 %v2415, 0.5
    %v2417 = vadd.f32 %v2416, 0.5
    %v2418 = vmul.f32 %v2411, 0.5
    %v2419 = vtanh.pop %v2418
    %v2420 = vmul.f32 %v2419, 0.5
    %v2421 = vadd.f32 %v2420, 0.5
    %v2422 = vtanh.pop %v2412
    %v2423 = vmul.f32 %v2413, 0.5
    %v2424 = vtanh.pop %v2423
    %v2425 = vmul.f32 %v2424, 0.5
    %v2426 = vadd.f32 %v2425, 0.5
    %v2427 = vmul.f32 %v2421, %v2261
    %v2428 = vmul.f32 %v2417, %v2422
    %v2429 = vadd.f32 %v2427, %v2428
    %v2430 = vtanh.pop %v2429
    %v2431 = vmul.f32 %v2426, %v2430
    %v2432 = vld [vmem:[#allocation2 + $0x40] sm:$0x3]
    %v2433 = vld [vmem:[#allocation2 + $0x48] sm:$0x3]
    %v2434 = vld [vmem:[#allocation2 + $0x50] sm:$0x3]
    %v2435 = vld [vmem:[#allocation2 + $0x58] sm:$0x3]
    %2436 = vmatprep.subr.mxu0 %v1801
    %2437 = vmatpush1.msra.mxu0 %v1800
    %2438 = vmatprep.subr.mxu0 %v1797
    %2439 = vmatpush1.msra.mxu0 %v1796
    %2440 = vmatprep.subr.mxu0 %v1793
    %2441 = vmatpush1.msra.mxu0 %v1792
    %2442 = vmatprep.subr.mxu0 %v1789
    %2443 = vmatpush1.msra.mxu0 %v1788
    %2444 = vmatprep.subr.mxu0 %v1785
    %2445 = vmatpush1.msra.mxu0 %v1784
    %2446 = vmatprep.subr.mxu0 %v1781
    %2447 = vmatpush1.msra.mxu0 %v1780
    %2448 = vmatprep.subr.mxu0 %v1777
    %2449 = vmatpush1.msra.mxu0 %v1776
    %2450 = vmatprep.subr.mxu0 %v1773
    %2451 = vmatpush1.msra.mxu0 %v1772
    %2452 = vmatprep.subr.mxu0 %v1769
    %2453 = vmatpush1.msra.mxu0 %v1768
    %2454 = vmatprep.subr.mxu0 %v1765
    %2455 = vmatpush1.msra.mxu0 %v1764
    %2456 = vmatprep.subr.mxu0 %v1761
    %2457 = vmatpush1.msra.mxu0 %v1760
    %2458 = vmatprep.subr.mxu0 %v1757
    %2459 = vmatpush1.msra.mxu0 %v1756
    %2460 = vmatprep.subr.mxu0 %v1753
    %2461 = vmatpush1.msra.mxu0 %v1752
    %2462 = vmatprep.subr.mxu0 %v1749
    %2463 = vmatpush1.msra.mxu0 %v1748
    %2464 = vmatprep.subr.mxu0 %v1745
    %2465 = vmatpush1.msra.mxu0 %v1744
    %2466 = vmatprep.subr.mxu0 %v1741
    %2467 = vmatpush1.msra.mxu0 %v1740
    %2468 = vmatprep.subr.mxu0 0.0
    %2469 = vmatpush2.msra.mxu0 0.0
    %2470 = vmatprep.subr.mxu0 0.0
    %2471 = vmatpush2.msra.mxu0 0.0
    %2472 = vmatprep.subr.mxu0 0.0
    %2473 = vmatpush2.msra.mxu0 0.0
    %2474 = vmatprep.subr.mxu0 0.0
    %2475 = vmatpush2.msra.mxu0 0.0
    %2476 = vmatprep.subr.mxu0 0.0
    %2477 = vmatpush2.msra.mxu0 0.0
    %2478 = vmatprep.subr.mxu0 0.0
    %2479 = vmatpush2.msra.mxu0 0.0
    %2480 = vmatprep.subr.mxu0 0.0
    %2481 = vmatpush2.msra.mxu0 0.0
    %2482 = vmatprep.subr.mxu0 0.0
    %2483 = vmatpush2.msra.mxu0 0.0
    %2484 = vmatprep.subr.mxu0 0.0
    %2485 = vmatpush2.msra.mxu0 0.0
    %2486 = vmatprep.subr.mxu0 0.0
    %2487 = vmatpush2.msra.mxu0 0.0
    %2488 = vmatprep.subr.mxu0 0.0
    %2489 = vmatpush2.msra.mxu0 0.0
    %2490 = vmatprep.subr.mxu0 0.0
    %2491 = vmatpush2.msra.mxu0 0.0
    %2492 = vmatprep.subr.mxu0 0.0
    %2493 = vmatpush2.msra.mxu0 0.0
    %2494 = vmatprep.subr.mxu0 0.0
    %2495 = vmatpush2.msra.mxu0 0.0
    %2496 = vmatprep.subr.mxu0 0.0
    %2497 = vmatpush2.msra.mxu0 0.0
    %2498 = vmatprep.subr.mxu0 0.0
    %2499 = vmatpush2.msra.mxu0 0.0
    %2500 = vmatprep.mubr.f32.mxu0 0.0
    %2501 = vmatmul.mubr.f32.gmra.mxu0 %v2431
    %v2502 = vpop.f32.mrf.mxu0
    %v2503 = vadd.f32 0.0, %v2502
    %v2504 = vpop.f32.mrf.mxu0
    %v2505 = vadd.f32 0.0, %v2504
    %2506 = vdwg.mxu0
    %2507 = vmatprep.subr.mxu0 %v1803
    %2508 = vmatpush1.msra.mxu0 %v1802
    %2509 = vmatprep.subr.mxu0 %v1799
    %2510 = vmatpush1.msra.mxu0 %v1798
    %2511 = vmatprep.subr.mxu0 %v1795
    %2512 = vmatpush1.msra.mxu0 %v1794
    %2513 = vmatprep.subr.mxu0 %v1791
    %2514 = vmatpush1.msra.mxu0 %v1790
    %2515 = vmatprep.subr.mxu0 %v1787
    %2516 = vmatpush1.msra.mxu0 %v1786
    %2517 = vmatprep.subr.mxu0 %v1783
    %2518 = vmatpush1.msra.mxu0 %v1782
    %2519 = vmatprep.subr.mxu0 %v1779
    %2520 = vmatpush1.msra.mxu0 %v1778
    %2521 = vmatprep.subr.mxu0 %v1775
    %2522 = vmatpush1.msra.mxu0 %v1774
    %2523 = vmatprep.subr.mxu0 %v1771
    %2524 = vmatpush1.msra.mxu0 %v1770
    %2525 = vmatprep.subr.mxu0 %v1767
    %2526 = vmatpush1.msra.mxu0 %v1766
    %2527 = vmatprep.subr.mxu0 %v1763
    %2528 = vmatpush1.msra.mxu0 %v1762
    %2529 = vmatprep.subr.mxu0 %v1759
    %2530 = vmatpush1.msra.mxu0 %v1758
    %2531 = vmatprep.subr.mxu0 %v1755
    %2532 = vmatpush1.msra.mxu0 %v1754
    %2533 = vmatprep.subr.mxu0 %v1751
    %2534 = vmatpush1.msra.mxu0 %v1750
    %2535 = vmatprep.subr.mxu0 %v1747
    %2536 = vmatpush1.msra.mxu0 %v1746
    %2537 = vmatprep.subr.mxu0 %v1743
    %2538 = vmatpush1.msra.mxu0 %v1742
    %2539 = vmatprep.subr.mxu0 0.0
    %2540 = vmatpush2.msra.mxu0 0.0
    %2541 = vmatprep.subr.mxu0 0.0
    %2542 = vmatpush2.msra.mxu0 0.0
    %2543 = vmatprep.subr.mxu0 0.0
    %2544 = vmatpush2.msra.mxu0 0.0
    %2545 = vmatprep.subr.mxu0 0.0
    %2546 = vmatpush2.msra.mxu0 0.0
    %2547 = vmatprep.subr.mxu0 0.0
    %2548 = vmatpush2.msra.mxu0 0.0
    %2549 = vmatprep.subr.mxu0 0.0
    %2550 = vmatpush2.msra.mxu0 0.0
    %2551 = vmatprep.subr.mxu0 0.0
    %2552 = vmatpush2.msra.mxu0 0.0
    %2553 = vmatprep.subr.mxu0 0.0
    %2554 = vmatpush2.msra.mxu0 0.0
    %2555 = vmatprep.subr.mxu0 0.0
    %2556 = vmatpush2.msra.mxu0 0.0
    %2557 = vmatprep.subr.mxu0 0.0
    %2558 = vmatpush2.msra.mxu0 0.0
    %2559 = vmatprep.subr.mxu0 0.0
    %2560 = vmatpush2.msra.mxu0 0.0
    %2561 = vmatprep.subr.mxu0 0.0
    %2562 = vmatpush2.msra.mxu0 0.0
    %2563 = vmatprep.subr.mxu0 0.0
    %2564 = vmatpush2.msra.mxu0 0.0
    %2565 = vmatprep.subr.mxu0 0.0
    %2566 = vmatpush2.msra.mxu0 0.0
    %2567 = vmatprep.subr.mxu0 0.0
    %2568 = vmatpush2.msra.mxu0 0.0
    %2569 = vmatprep.subr.mxu0 0.0
    %2570 = vmatpush2.msra.mxu0 0.0
    %2571 = vmatprep.mubr.f32.mxu0 0.0
    %2572 = vmatmul.mubr.f32.gmra.mxu0 %v2431
    %v2573 = vpop.f32.mrf.mxu0
    %v2574 = vadd.f32 0.0, %v2573
    %v2575 = vpop.f32.mrf.mxu0
    %v2576 = vadd.f32 0.0, %v2575
    %2577 = vdwg.mxu0
    %v2578 = vadd.f32 %v2432, %v2503
    %v2579 = vadd.f32 %v2433, %v2505
    %v2580 = vadd.f32 %v2434, %v2574
    %v2581 = vadd.f32 %v2435, %v2576
    %v2582 = vmul.f32 %v2578, 0.5
    %v2583 = vtanh.pop %v2582
    %v2584 = vmul.f32 %v2583, 0.5
    %v2585 = vadd.f32 %v2584, 0.5
    %v2586 = vmul.f32 %v2579, 0.5
    %v2587 = vtanh.pop %v2586
    %v2588 = vmul.f32 %v2587, 0.5
    %v2589 = vadd.f32 %v2588, 0.5
    %v2590 = vtanh.pop %v2580
    %v2591 = vmul.f32 %v2581, 0.5
    %v2592 = vtanh.pop %v2591
    %v2593 = vmul.f32 %v2592, 0.5
    %v2594 = vadd.f32 %v2593, 0.5
    %v2595 = vmul.f32 %v2589, %v2429
    %v2596 = vmul.f32 %v2585, %v2590
    %v2597 = vadd.f32 %v2595, %v2596
    %v2598 = vtanh.pop %v2597
    %v2599 = vmul.f32 %v2594, %v2598
    %v2600 = vld [vmem:[#allocation2 + $0x60] sm:$0x3]
    %v2601 = vld [vmem:[#allocation2 + $0x68] sm:$0x3]
    %v2602 = vld [vmem:[#allocation2 + $0x70] sm:$0x3]
    %v2603 = vld [vmem:[#allocation2 + $0x78] sm:$0x3]
    %2604 = vmatprep.subr.mxu0 %v1801
    %2605 = vmatpush1.msra.mxu0 %v1800
    %2606 = vmatprep.subr.mxu0 %v1797
    %2607 = vmatpush1.msra.mxu0 %v1796
    %2608 = vmatprep.subr.mxu0 %v1793
    %2609 = vmatpush1.msra.mxu0 %v1792
    %2610 = vmatprep.subr.mxu0 %v1789
    %2611 = vmatpush1.msra.mxu0 %v1788
    %2612 = vmatprep.subr.mxu0 %v1785
    %2613 = vmatpush1.msra.mxu0 %v1784
    %2614 = vmatprep.subr.mxu0 %v1781
    %2615 = vmatpush1.msra.mxu0 %v1780
    %2616 = vmatprep.subr.mxu0 %v1777
    %2617 = vmatpush1.msra.mxu0 %v1776
    %2618 = vmatprep.subr.mxu0 %v1773
    %2619 = vmatpush1.msra.mxu0 %v1772
    %2620 = vmatprep.subr.mxu0 %v1769
    %2621 = vmatpush1.msra.mxu0 %v1768
    %2622 = vmatprep.subr.mxu0 %v1765
    %2623 = vmatpush1.msra.mxu0 %v1764
    %2624 = vmatprep.subr.mxu0 %v1761
    %2625 = vmatpush1.msra.mxu0 %v1760
    %2626 = vmatprep.subr.mxu0 %v1757
    %2627 = vmatpush1.msra.mxu0 %v1756
    %2628 = vmatprep.subr.mxu0 %v1753
    %2629 = vmatpush1.msra.mxu0 %v1752
    %2630 = vmatprep.subr.mxu0 %v1749
    %2631 = vmatpush1.msra.mxu0 %v1748
    %2632 = vmatprep.subr.mxu0 %v1745
    %2633 = vmatpush1.msra.mxu0 %v1744
    %2634 = vmatprep.subr.mxu0 %v1741
    %2635 = vmatpush1.msra.mxu0 %v1740
    %2636 = vmatprep.subr.mxu0 0.0
    %2637 = vmatpush2.msra.mxu0 0.0
    %2638 = vmatprep.subr.mxu0 0.0
    %2639 = vmatpush2.msra.mxu0 0.0
    %2640 = vmatprep.subr.mxu0 0.0
    %2641 = vmatpush2.msra.mxu0 0.0
    %2642 = vmatprep.subr.mxu0 0.0
    %2643 = vmatpush2.msra.mxu0 0.0
    %2644 = vmatprep.subr.mxu0 0.0
    %2645 = vmatpush2.msra.mxu0 0.0
    %2646 = vmatprep.subr.mxu0 0.0
    %2647 = vmatpush2.msra.mxu0 0.0
    %2648 = vmatprep.subr.mxu0 0.0
    %2649 = vmatpush2.msra.mxu0 0.0
    %2650 = vmatprep.subr.mxu0 0.0
    %2651 = vmatpush2.msra.mxu0 0.0
    %2652 = vmatprep.subr.mxu0 0.0
    %2653 = vmatpush2.msra.mxu0 0.0
    %2654 = vmatprep.subr.mxu0 0.0
    %2655 = vmatpush2.msra.mxu0 0.0
    %2656 = vmatprep.subr.mxu0 0.0
    %2657 = vmatpush2.msra.mxu0 0.0
    %2658 = vmatprep.subr.mxu0 0.0
    %2659 = vmatpush2.msra.mxu0 0.0
    %2660 = vmatprep.subr.mxu0 0.0
    %2661 = vmatpush2.msra.mxu0 0.0
    %2662 = vmatprep.subr.mxu0 0.0
    %2663 = vmatpush2.msra.mxu0 0.0
    %2664 = vmatprep.subr.mxu0 0.0
    %2665 = vmatpush2.msra.mxu0 0.0
    %2666 = vmatprep.subr.mxu0 0.0
    %2667 = vmatpush2.msra.mxu0 0.0
    %2668 = vmatprep.mubr.f32.mxu0 0.0
    %2669 = vmatmul.mubr.f32.gmra.mxu0 %v2599
    %v2670 = vpop.f32.mrf.mxu0
    %v2671 = vadd.f32 0.0, %v2670
    %v2672 = vpop.f32.mrf.mxu0
    %v2673 = vadd.f32 0.0, %v2672
    %2674 = vdwg.mxu0
    %2675 = vmatprep.subr.mxu0 %v1803
    %2676 = vmatpush1.msra.mxu0 %v1802
    %2677 = vmatprep.subr.mxu0 %v1799
    %2678 = vmatpush1.msra.mxu0 %v1798
    %2679 = vmatprep.subr.mxu0 %v1795
    %2680 = vmatpush1.msra.mxu0 %v1794
    %2681 = vmatprep.subr.mxu0 %v1791
    %2682 = vmatpush1.msra.mxu0 %v1790
    %2683 = vmatprep.subr.mxu0 %v1787
    %2684 = vmatpush1.msra.mxu0 %v1786
    %2685 = vmatprep.subr.mxu0 %v1783
    %2686 = vmatpush1.msra.mxu0 %v1782
    %2687 = vmatprep.subr.mxu0 %v1779
    %2688 = vmatpush1.msra.mxu0 %v1778
    %2689 = vmatprep.subr.mxu0 %v1775
    %2690 = vmatpush1.msra.mxu0 %v1774
    %2691 = vmatprep.subr.mxu0 %v1771
    %2692 = vmatpush1.msra.mxu0 %v1770
    %2693 = vmatprep.subr.mxu0 %v1767
    %2694 = vmatpush1.msra.mxu0 %v1766
    %2695 = vmatprep.subr.mxu0 %v1763
    %2696 = vmatpush1.msra.mxu0 %v1762
    %2697 = vmatprep.subr.mxu0 %v1759
    %2698 = vmatpush1.msra.mxu0 %v1758
    %2699 = vmatprep.subr.mxu0 %v1755
    %2700 = vmatpush1.msra.mxu0 %v1754
    %2701 = vmatprep.subr.mxu0 %v1751
    %2702 = vmatpush1.msra.mxu0 %v1750
    %2703 = vmatprep.subr.mxu0 %v1747
    %2704 = vmatpush1.msra.mxu0 %v1746
    %2705 = vmatprep.subr.mxu0 %v1743
    %2706 = vmatpush1.msra.mxu0 %v1742
    %2707 = vmatprep.subr.mxu0 0.0
    %2708 = vmatpush2.msra.mxu0 0.0
    %2709 = vmatprep.subr.mxu0 0.0
    %2710 = vmatpush2.msra.mxu0 0.0
    %2711 = vmatprep.subr.mxu0 0.0
    %2712 = vmatpush2.msra.mxu0 0.0
    %2713 = vmatprep.subr.mxu0 0.0
    %2714 = vmatpush2.msra.mxu0 0.0
    %2715 = vmatprep.subr.mxu0 0.0
    %2716 = vmatpush2.msra.mxu0 0.0
    %2717 = vmatprep.subr.mxu0 0.0
    %2718 = vmatpush2.msra.mxu0 0.0
    %2719 = vmatprep.subr.mxu0 0.0
    %2720 = vmatpush2.msra.mxu0 0.0
    %2721 = vmatprep.subr.mxu0 0.0
    %2722 = vmatpush2.msra.mxu0 0.0
    %2723 = vmatprep.subr.mxu0 0.0
    %2724 = vmatpush2.msra.mxu0 0.0
    %2725 = vmatprep.subr.mxu0 0.0
    %2726 = vmatpush2.msra.mxu0 0.0
    %2727 = vmatprep.subr.mxu0 0.0
    %2728 = vmatpush2.msra.mxu0 0.0
    %2729 = vmatprep.subr.mxu0 0.0
    %2730 = vmatpush2.msra.mxu0 0.0
    %2731 = vmatprep.subr.mxu0 0.0
    %2732 = vmatpush2.msra.mxu0 0.0
    %2733 = vmatprep.subr.mxu0 0.0
    %2734 = vmatpush2.msra.mxu0 0.0
    %2735 = vmatprep.subr.mxu0 0.0
    %2736 = vmatpush2.msra.mxu0 0.0
    %2737 = vmatprep.subr.mxu0 0.0
    %2738 = vmatpush2.msra.mxu0 0.0
    %2739 = vmatprep.mubr.f32.mxu0 0.0
    %2740 = vmatmul.mubr.f32.gmra.mxu0 %v2599
    %v2741 = vpop.f32.mrf.mxu0
    %v2742 = vadd.f32 0.0, %v2741
    %v2743 = vpop.f32.mrf.mxu0
    %v2744 = vadd.f32 0.0, %v2743
    %2745 = vdwg.mxu0
    %v2746 = vadd.f32 %v2600, %v2671
    %v2747 = vadd.f32 %v2601, %v2673
    %v2748 = vadd.f32 %v2602, %v2742
    %v2749 = vadd.f32 %v2603, %v2744
    %v2750 = vmul.f32 %v2746, 0.5
    %v2751 = vtanh.pop %v2750
    %v2752 = vmul.f32 %v2751, 0.5
    %v2753 = vadd.f32 %v2752, 0.5
    %v2754 = vmul.f32 %v2747, 0.5
    %v2755 = vtanh.pop %v2754
    %v2756 = vmul.f32 %v2755, 0.5
    %v2757 = vadd.f32 %v2756, 0.5
    %v2758 = vtanh.pop %v2748
    %v2759 = vmul.f32 %v2749, 0.5
    %v2760 = vtanh.pop %v2759
    %v2761 = vmul.f32 %v2760, 0.5
    %v2762 = vadd.f32 %v2761, 0.5
    %v2763 = vmul.f32 %v2757, %v2597
    %v2764 = vmul.f32 %v2753, %v2758
    %v2765 = vadd.f32 %v2763, %v2764
    %v2766 = vtanh.pop %v2765
    %v2767 = vmul.f32 %v2762, %v2766
    %v2768 = vld [vmem:[#allocation2 + $0x80] sm:$0x3]
    %v2769 = vld [vmem:[#allocation2 + $0x88] sm:$0x3]
    %v2770 = vld [vmem:[#allocation2 + $0x90] sm:$0x3]
    %v2771 = vld [vmem:[#allocation2 + $0x98] sm:$0x3]
    %2772 = vmatprep.subr.mxu0 %v1801
    %2773 = vmatpush1.msra.mxu0 %v1800
    %2774 = vmatprep.subr.mxu0 %v1797
    %2775 = vmatpush1.msra.mxu0 %v1796
    %2776 = vmatprep.subr.mxu0 %v1793
    %2777 = vmatpush1.msra.mxu0 %v1792
    %2778 = vmatprep.subr.mxu0 %v1789
    %2779 = vmatpush1.msra.mxu0 %v1788
    %2780 = vmatprep.subr.mxu0 %v1785
    %2781 = vmatpush1.msra.mxu0 %v1784
    %2782 = vmatprep.subr.mxu0 %v1781
    %2783 = vmatpush1.msra.mxu0 %v1780
    %2784 = vmatprep.subr.mxu0 %v1777
    %2785 = vmatpush1.msra.mxu0 %v1776
    %2786 = vmatprep.subr.mxu0 %v1773
    %2787 = vmatpush1.msra.mxu0 %v1772
    %2788 = vmatprep.subr.mxu0 %v1769
    %2789 = vmatpush1.msra.mxu0 %v1768
    %2790 = vmatprep.subr.mxu0 %v1765
    %2791 = vmatpush1.msra.mxu0 %v1764
    %2792 = vmatprep.subr.mxu0 %v1761
    %2793 = vmatpush1.msra.mxu0 %v1760
    %2794 = vmatprep.subr.mxu0 %v1757
    %2795 = vmatpush1.msra.mxu0 %v1756
    %2796 = vmatprep.subr.mxu0 %v1753
    %2797 = vmatpush1.msra.mxu0 %v1752
    %2798 = vmatprep.subr.mxu0 %v1749
    %2799 = vmatpush1.msra.mxu0 %v1748
    %2800 = vmatprep.subr.mxu0 %v1745
    %2801 = vmatpush1.msra.mxu0 %v1744
    %2802 = vmatprep.subr.mxu0 %v1741
    %2803 = vmatpush1.msra.mxu0 %v1740
    %2804 = vmatprep.subr.mxu0 0.0
    %2805 = vmatpush2.msra.mxu0 0.0
    %2806 = vmatprep.subr.mxu0 0.0
    %2807 = vmatpush2.msra.mxu0 0.0
    %2808 = vmatprep.subr.mxu0 0.0
    %2809 = vmatpush2.msra.mxu0 0.0
    %2810 = vmatprep.subr.mxu0 0.0
    %2811 = vmatpush2.msra.mxu0 0.0
    %2812 = vmatprep.subr.mxu0 0.0
    %2813 = vmatpush2.msra.mxu0 0.0
    %2814 = vmatprep.subr.mxu0 0.0
    %2815 = vmatpush2.msra.mxu0 0.0
    %2816 = vmatprep.subr.mxu0 0.0
    %2817 = vmatpush2.msra.mxu0 0.0
    %2818 = vmatprep.subr.mxu0 0.0
    %2819 = vmatpush2.msra.mxu0 0.0
    %2820 = vmatprep.subr.mxu0 0.0
    %2821 = vmatpush2.msra.mxu0 0.0
    %2822 = vmatprep.subr.mxu0 0.0
    %2823 = vmatpush2.msra.mxu0 0.0
    %2824 = vmatprep.subr.mxu0 0.0
    %2825 = vmatpush2.msra.mxu0 0.0
    %2826 = vmatprep.subr.mxu0 0.0
    %2827 = vmatpush2.msra.mxu0 0.0
    %2828 = vmatprep.subr.mxu0 0.0
    %2829 = vmatpush2.msra.mxu0 0.0
    %2830 = vmatprep.subr.mxu0 0.0
    %2831 = vmatpush2.msra.mxu0 0.0
    %2832 = vmatprep.subr.mxu0 0.0
    %2833 = vmatpush2.msra.mxu0 0.0
    %2834 = vmatprep.subr.mxu0 0.0
    %2835 = vmatpush2.msra.mxu0 0.0
    %2836 = vmatprep.mubr.f32.mxu0 0.0
    %2837 = vmatmul.mubr.f32.gmra.mxu0 %v2767
    %v2838 = vpop.f32.mrf.mxu0
    %v2839 = vadd.f32 0.0, %v2838
    %v2840 = vpop.f32.mrf.mxu0
    %v2841 = vadd.f32 0.0, %v2840
    %2842 = vdwg.mxu0
    %2843 = vmatprep.subr.mxu0 %v1803
    %2844 = vmatpush1.msra.mxu0 %v1802
    %2845 = vmatprep.subr.mxu0 %v1799
    %2846 = vmatpush1.msra.mxu0 %v1798
    %2847 = vmatprep.subr.mxu0 %v1795
    %2848 = vmatpush1.msra.mxu0 %v1794
    %2849 = vmatprep.subr.mxu0 %v1791
    %2850 = vmatpush1.msra.mxu0 %v1790
    %2851 = vmatprep.subr.mxu0 %v1787
    %2852 = vmatpush1.msra.mxu0 %v1786
    %2853 = vmatprep.subr.mxu0 %v1783
    %2854 = vmatpush1.msra.mxu0 %v1782
    %2855 = vmatprep.subr.mxu0 %v1779
    %2856 = vmatpush1.msra.mxu0 %v1778
    %2857 = vmatprep.subr.mxu0 %v1775
    %2858 = vmatpush1.msra.mxu0 %v1774
    %2859 = vmatprep.subr.mxu0 %v1771
    %2860 = vmatpush1.msra.mxu0 %v1770
    %2861 = vmatprep.subr.mxu0 %v1767
    %2862 = vmatpush1.msra.mxu0 %v1766
    %2863 = vmatprep.subr.mxu0 %v1763
    %2864 = vmatpush1.msra.mxu0 %v1762
    %2865 = vmatprep.subr.mxu0 %v1759
    %2866 = vmatpush1.msra.mxu0 %v1758
    %2867 = vmatprep.subr.mxu0 %v1755
    %2868 = vmatpush1.msra.mxu0 %v1754
    %2869 = vmatprep.subr.mxu0 %v1751
    %2870 = vmatpush1.msra.mxu0 %v1750
    %2871 = vmatprep.subr.mxu0 %v1747
    %2872 = vmatpush1.msra.mxu0 %v1746
    %2873 = vmatprep.subr.mxu0 %v1743
    %2874 = vmatpush1.msra.mxu0 %v1742
    %2875 = vmatprep.subr.mxu0 0.0
    %2876 = vmatpush2.msra.mxu0 0.0
    %2877 = vmatprep.subr.mxu0 0.0
    %2878 = vmatpush2.msra.mxu0 0.0
    %2879 = vmatprep.subr.mxu0 0.0
    %2880 = vmatpush2.msra.mxu0 0.0
    %2881 = vmatprep.subr.mxu0 0.0
    %2882 = vmatpush2.msra.mxu0 0.0
    %2883 = vmatprep.subr.mxu0 0.0
    %2884 = vmatpush2.msra.mxu0 0.0
    %2885 = vmatprep.subr.mxu0 0.0
    %2886 = vmatpush2.msra.mxu0 0.0
    %2887 = vmatprep.subr.mxu0 0.0
    %2888 = vmatpush2.msra.mxu0 0.0
    %2889 = vmatprep.subr.mxu0 0.0
    %2890 = vmatpush2.msra.mxu0 0.0
    %2891 = vmatprep.subr.mxu0 0.0
    %2892 = vmatpush2.msra.mxu0 0.0
    %2893 = vmatprep.subr.mxu0 0.0
    %2894 = vmatpush2.msra.mxu0 0.0
    %2895 = vmatprep.subr.mxu0 0.0
    %2896 = vmatpush2.msra.mxu0 0.0
    %2897 = vmatprep.subr.mxu0 0.0
    %2898 = vmatpush2.msra.mxu0 0.0
    %2899 = vmatprep.subr.mxu0 0.0
    %2900 = vmatpush2.msra.mxu0 0.0
    %2901 = vmatprep.subr.mxu0 0.0
    %2902 = vmatpush2.msra.mxu0 0.0
    %2903 = vmatprep.subr.mxu0 0.0
    %2904 = vmatpush2.msra.mxu0 0.0
    %2905 = vmatprep.subr.mxu0 0.0
    %2906 = vmatpush2.msra.mxu0 0.0
    %2907 = vmatprep.mubr.f32.mxu0 0.0
    %2908 = vmatmul.mubr.f32.gmra.mxu0 %v2767
    %v2909 = vpop.f32.mrf.mxu0
    %v2910 = vadd.f32 0.0, %v2909
    %v2911 = vpop.f32.mrf.mxu0
    %v2912 = vadd.f32 0.0, %v2911
    %2913 = vdwg.mxu0
    %v2914 = vadd.f32 %v2768, %v2839
    %v2915 = vadd.f32 %v2769, %v2841
    %v2916 = vadd.f32 %v2770, %v2910
    %v2917 = vadd.f32 %v2771, %v2912
    %v2918 = vmul.f32 %v2914, 0.5
    %v2919 = vtanh.pop %v2918
    %v2920 = vmul.f32 %v2919, 0.5
    %v2921 = vadd.f32 %v2920, 0.5
    %v2922 = vmul.f32 %v2915, 0.5
    %v2923 = vtanh.pop %v2922
    %v2924 = vmul.f32 %v2923, 0.5
    %v2925 = vadd.f32 %v2924, 0.5
    %v2926 = vtanh.pop %v2916
    %v2927 = vmul.f32 %v2917, 0.5
    %v2928 = vtanh.pop %v2927
    %v2929 = vmul.f32 %v2928, 0.5
    %v2930 = vadd.f32 %v2929, 0.5
    %v2931 = vmul.f32 %v2925, %v2765
    %v2932 = vmul.f32 %v2921, %v2926
    %v2933 = vadd.f32 %v2931, %v2932
    %v2934 = vtanh.pop %v2933
    %v2935 = vmul.f32 %v2930, %v2934
    %v2936 = vld [vmem:[#allocation2 + $0xa0] sm:$0x3]
    %v2937 = vld [vmem:[#allocation2 + $0xa8] sm:$0x3]
    %v2938 = vld [vmem:[#allocation2 + $0xb0] sm:$0x3]
    %v2939 = vld [vmem:[#allocation2 + $0xb8] sm:$0x3]
    %2940 = vmatprep.subr.mxu0 %v1801
    %2941 = vmatpush1.msra.mxu0 %v1800
    %2942 = vmatprep.subr.mxu0 %v1797
    %2943 = vmatpush1.msra.mxu0 %v1796
    %2944 = vmatprep.subr.mxu0 %v1793
    %2945 = vmatpush1.msra.mxu0 %v1792
    %2946 = vmatprep.subr.mxu0 %v1789
    %2947 = vmatpush1.msra.mxu0 %v1788
    %2948 = vmatprep.subr.mxu0 %v1785
    %2949 = vmatpush1.msra.mxu0 %v1784
    %2950 = vmatprep.subr.mxu0 %v1781
    %2951 = vmatpush1.msra.mxu0 %v1780
    %2952 = vmatprep.subr.mxu0 %v1777
    %2953 = vmatpush1.msra.mxu0 %v1776
    %2954 = vmatprep.subr.mxu0 %v1773
    %2955 = vmatpush1.msra.mxu0 %v1772
    %2956 = vmatprep.subr.mxu0 %v1769
    %2957 = vmatpush1.msra.mxu0 %v1768
    %2958 = vmatprep.subr.mxu0 %v1765
    %2959 = vmatpush1.msra.mxu0 %v1764
    %2960 = vmatprep.subr.mxu0 %v1761
    %2961 = vmatpush1.msra.mxu0 %v1760
    %2962 = vmatprep.subr.mxu0 %v1757
    %2963 = vmatpush1.msra.mxu0 %v1756
    %2964 = vmatprep.subr.mxu0 %v1753
    %2965 = vmatpush1.msra.mxu0 %v1752
    %2966 = vmatprep.subr.mxu0 %v1749
    %2967 = vmatpush1.msra.mxu0 %v1748
    %2968 = vmatprep.subr.mxu0 %v1745
    %2969 = vmatpush1.msra.mxu0 %v1744
    %2970 = vmatprep.subr.mxu0 %v1741
    %2971 = vmatpush1.msra.mxu0 %v1740
    %2972 = vmatprep.subr.mxu0 0.0
    %2973 = vmatpush2.msra.mxu0 0.0
    %2974 = vmatprep.subr.mxu0 0.0
    %2975 = vmatpush2.msra.mxu0 0.0
    %2976 = vmatprep.subr.mxu0 0.0
    %2977 = vmatpush2.msra.mxu0 0.0
    %2978 = vmatprep.subr.mxu0 0.0
    %2979 = vmatpush2.msra.mxu0 0.0
    %2980 = vmatprep.subr.mxu0 0.0
    %2981 = vmatpush2.msra.mxu0 0.0
    %2982 = vmatprep.subr.mxu0 0.0
    %2983 = vmatpush2.msra.mxu0 0.0
    %2984 = vmatprep.subr.mxu0 0.0
    %2985 = vmatpush2.msra.mxu0 0.0
    %2986 = vmatprep.subr.mxu0 0.0
    %2987 = vmatpush2.msra.mxu0 0.0
    %2988 = vmatprep.subr.mxu0 0.0
    %2989 = vmatpush2.msra.mxu0 0.0
    %2990 = vmatprep.subr.mxu0 0.0
    %2991 = vmatpush2.msra.mxu0 0.0
    %2992 = vmatprep.subr.mxu0 0.0
    %2993 = vmatpush2.msra.mxu0 0.0
    %2994 = vmatprep.subr.mxu0 0.0
    %2995 = vmatpush2.msra.mxu0 0.0
    %2996 = vmatprep.subr.mxu0 0.0
    %2997 = vmatpush2.msra.mxu0 0.0
    %2998 = vmatprep.subr.mxu0 0.0
    %2999 = vmatpush2.msra.mxu0 0.0
    %3000 = vmatprep.subr.mxu0 0.0
    %3001 = vmatpush2.msra.mxu0 0.0
    %3002 = vmatprep.subr.mxu0 0.0
    %3003 = vmatpush2.msra.mxu0 0.0
    %3004 = vmatprep.mubr.f32.mxu0 0.0
    %3005 = vmatmul.mubr.f32.gmra.mxu0 %v2935
    %v3006 = vpop.f32.mrf.mxu0
    %v3007 = vadd.f32 0.0, %v3006
    %v3008 = vpop.f32.mrf.mxu0
    %v3009 = vadd.f32 0.0, %v3008
    %3010 = vdwg.mxu0
    %3011 = vmatprep.subr.mxu0 %v1803
    %3012 = vmatpush1.msra.mxu0 %v1802
    %3013 = vmatprep.subr.mxu0 %v1799
    %3014 = vmatpush1.msra.mxu0 %v1798
    %3015 = vmatprep.subr.mxu0 %v1795
    %3016 = vmatpush1.msra.mxu0 %v1794
    %3017 = vmatprep.subr.mxu0 %v1791
    %3018 = vmatpush1.msra.mxu0 %v1790
    %3019 = vmatprep.subr.mxu0 %v1787
    %3020 = vmatpush1.msra.mxu0 %v1786
    %3021 = vmatprep.subr.mxu0 %v1783
    %3022 = vmatpush1.msra.mxu0 %v1782
    %3023 = vmatprep.subr.mxu0 %v1779
    %3024 = vmatpush1.msra.mxu0 %v1778
    %3025 = vmatprep.subr.mxu0 %v1775
    %3026 = vmatpush1.msra.mxu0 %v1774
    %3027 = vmatprep.subr.mxu0 %v1771
    %3028 = vmatpush1.msra.mxu0 %v1770
    %3029 = vmatprep.subr.mxu0 %v1767
    %3030 = vmatpush1.msra.mxu0 %v1766
    %3031 = vmatprep.subr.mxu0 %v1763
    %3032 = vmatpush1.msra.mxu0 %v1762
    %3033 = vmatprep.subr.mxu0 %v1759
    %3034 = vmatpush1.msra.mxu0 %v1758
    %3035 = vmatprep.subr.mxu0 %v1755
    %3036 = vmatpush1.msra.mxu0 %v1754
    %3037 = vmatprep.subr.mxu0 %v1751
    %3038 = vmatpush1.msra.mxu0 %v1750
    %3039 = vmatprep.subr.mxu0 %v1747
    %3040 = vmatpush1.msra.mxu0 %v1746
    %3041 = vmatprep.subr.mxu0 %v1743
    %3042 = vmatpush1.msra.mxu0 %v1742
    %3043 = vmatprep.subr.mxu0 0.0
    %3044 = vmatpush2.msra.mxu0 0.0
    %3045 = vmatprep.subr.mxu0 0.0
    %3046 = vmatpush2.msra.mxu0 0.0
    %3047 = vmatprep.subr.mxu0 0.0
    %3048 = vmatpush2.msra.mxu0 0.0
    %3049 = vmatprep.subr.mxu0 0.0
    %3050 = vmatpush2.msra.mxu0 0.0
    %3051 = vmatprep.subr.mxu0 0.0
    %3052 = vmatpush2.msra.mxu0 0.0
    %3053 = vmatprep.subr.mxu0 0.0
    %3054 = vmatpush2.msra.mxu0 0.0
    %3055 = vmatprep.subr.mxu0 0.0
    %3056 = vmatpush2.msra.mxu0 0.0
    %3057 = vmatprep.subr.mxu0 0.0
    %3058 = vmatpush2.msra.mxu0 0.0
    %3059 = vmatprep.subr.mxu0 0.0
    %3060 = vmatpush2.msra.mxu0 0.0
    %3061 = vmatprep.subr.mxu0 0.0
    %3062 = vmatpush2.msra.mxu0 0.0
    %3063 = vmatprep.subr.mxu0 0.0
    %3064 = vmatpush2.msra.mxu0 0.0
    %3065 = vmatprep.subr.mxu0 0.0
    %3066 = vmatpush2.msra.mxu0 0.0
    %3067 = vmatprep.subr.mxu0 0.0
    %3068 = vmatpush2.msra.mxu0 0.0
    %3069 = vmatprep.subr.mxu0 0.0
    %3070 = vmatpush2.msra.mxu0 0.0
    %3071 = vmatprep.subr.mxu0 0.0
    %3072 = vmatpush2.msra.mxu0 0.0
    %3073 = vmatprep.subr.mxu0 0.0
    %3074 = vmatpush2.msra.mxu0 0.0
    %3075 = vmatprep.mubr.f32.mxu0 0.0
    %3076 = vmatmul.mubr.f32.gmra.mxu0 %v2935
    %v3077 = vpop.f32.mrf.mxu0
    %v3078 = vadd.f32 0.0, %v3077
    %v3079 = vpop.f32.mrf.mxu0
    %v3080 = vadd.f32 0.0, %v3079
    %3081 = vdwg.mxu0
    %v3082 = vadd.f32 %v2936, %v3007
    %v3083 = vadd.f32 %v2937, %v3009
    %v3084 = vadd.f32 %v2938, %v3078
    %v3085 = vadd.f32 %v2939, %v3080
    %v3086 = vmul.f32 %v3082, 0.5
    %v3087 = vtanh.pop %v3086
    %v3088 = vmul.f32 %v3087, 0.5
    %v3089 = vadd.f32 %v3088, 0.5
    %v3090 = vmul.f32 %v3083, 0.5
    %v3091 = vtanh.pop %v3090
    %v3092 = vmul.f32 %v3091, 0.5
    %v3093 = vadd.f32 %v3092, 0.5
    %v3094 = vtanh.pop %v3084
    %v3095 = vmul.f32 %v3085, 0.5
    %v3096 = vtanh.pop %v3095
    %v3097 = vmul.f32 %v3096, 0.5
    %v3098 = vadd.f32 %v3097, 0.5
    %v3099 = vmul.f32 %v3093, %v2933
    %v3100 = vmul.f32 %v3089, %v3094
    %v3101 = vadd.f32 %v3099, %v3100
    %v3102 = vtanh.pop %v3101
    %v3103 = vmul.f32 %v3098, %v3102
    %v3104 = vld [vmem:[#allocation2 + $0xc0] sm:$0x3]
    %v3105 = vld [vmem:[#allocation2 + $0xc8] sm:$0x3]
    %v3106 = vld [vmem:[#allocation2 + $0xd0] sm:$0x3]
    %v3107 = vld [vmem:[#allocation2 + $0xd8] sm:$0x3]
    %3108 = vmatprep.subr.mxu0 %v1801
    %3109 = vmatpush1.msra.mxu0 %v1800
    %3110 = vmatprep.subr.mxu0 %v1797
    %3111 = vmatpush1.msra.mxu0 %v1796
    %3112 = vmatprep.subr.mxu0 %v1793
    %3113 = vmatpush1.msra.mxu0 %v1792
    %3114 = vmatprep.subr.mxu0 %v1789
    %3115 = vmatpush1.msra.mxu0 %v1788
    %3116 = vmatprep.subr.mxu0 %v1785
    %3117 = vmatpush1.msra.mxu0 %v1784
    %3118 = vmatprep.subr.mxu0 %v1781
    %3119 = vmatpush1.msra.mxu0 %v1780
    %3120 = vmatprep.subr.mxu0 %v1777
    %3121 = vmatpush1.msra.mxu0 %v1776
    %3122 = vmatprep.subr.mxu0 %v1773
    %3123 = vmatpush1.msra.mxu0 %v1772
    %3124 = vmatprep.subr.mxu0 %v1769
    %3125 = vmatpush1.msra.mxu0 %v1768
    %3126 = vmatprep.subr.mxu0 %v1765
    %3127 = vmatpush1.msra.mxu0 %v1764
    %3128 = vmatprep.subr.mxu0 %v1761
    %3129 = vmatpush1.msra.mxu0 %v1760
    %3130 = vmatprep.subr.mxu0 %v1757
    %3131 = vmatpush1.msra.mxu0 %v1756
    %3132 = vmatprep.subr.mxu0 %v1753
    %3133 = vmatpush1.msra.mxu0 %v1752
    %3134 = vmatprep.subr.mxu0 %v1749
    %3135 = vmatpush1.msra.mxu0 %v1748
    %3136 = vmatprep.subr.mxu0 %v1745
    %3137 = vmatpush1.msra.mxu0 %v1744
    %3138 = vmatprep.subr.mxu0 %v1741
    %3139 = vmatpush1.msra.mxu0 %v1740
    %3140 = vmatprep.subr.mxu0 0.0
    %3141 = vmatpush2.msra.mxu0 0.0
    %3142 = vmatprep.subr.mxu0 0.0
    %3143 = vmatpush2.msra.mxu0 0.0
    %3144 = vmatprep.subr.mxu0 0.0
    %3145 = vmatpush2.msra.mxu0 0.0
    %3146 = vmatprep.subr.mxu0 0.0
    %3147 = vmatpush2.msra.mxu0 0.0
    %3148 = vmatprep.subr.mxu0 0.0
    %3149 = vmatpush2.msra.mxu0 0.0
    %3150 = vmatprep.subr.mxu0 0.0
    %3151 = vmatpush2.msra.mxu0 0.0
    %3152 = vmatprep.subr.mxu0 0.0
    %3153 = vmatpush2.msra.mxu0 0.0
    %3154 = vmatprep.subr.mxu0 0.0
    %3155 = vmatpush2.msra.mxu0 0.0
    %3156 = vmatprep.subr.mxu0 0.0
    %3157 = vmatpush2.msra.mxu0 0.0
    %3158 = vmatprep.subr.mxu0 0.0
    %3159 = vmatpush2.msra.mxu0 0.0
    %3160 = vmatprep.subr.mxu0 0.0
    %3161 = vmatpush2.msra.mxu0 0.0
    %3162 = vmatprep.subr.mxu0 0.0
    %3163 = vmatpush2.msra.mxu0 0.0
    %3164 = vmatprep.subr.mxu0 0.0
    %3165 = vmatpush2.msra.mxu0 0.0
    %3166 = vmatprep.subr.mxu0 0.0
    %3167 = vmatpush2.msra.mxu0 0.0
    %3168 = vmatprep.subr.mxu0 0.0
    %3169 = vmatpush2.msra.mxu0 0.0
    %3170 = vmatprep.subr.mxu0 0.0
    %3171 = vmatpush2.msra.mxu0 0.0
    %3172 = vmatprep.mubr.f32.mxu0 0.0
    %3173 = vmatmul.mubr.f32.gmra.mxu0 %v3103
    %v3174 = vpop.f32.mrf.mxu0
    %v3175 = vadd.f32 0.0, %v3174
    %v3176 = vpop.f32.mrf.mxu0
    %v3177 = vadd.f32 0.0, %v3176
    %3178 = vdwg.mxu0
    %3179 = vmatprep.subr.mxu0 %v1803
    %3180 = vmatpush1.msra.mxu0 %v1802
    %3181 = vmatprep.subr.mxu0 %v1799
    %3182 = vmatpush1.msra.mxu0 %v1798
    %3183 = vmatprep.subr.mxu0 %v1795
    %3184 = vmatpush1.msra.mxu0 %v1794
    %3185 = vmatprep.subr.mxu0 %v1791
    %3186 = vmatpush1.msra.mxu0 %v1790
    %3187 = vmatprep.subr.mxu0 %v1787
    %3188 = vmatpush1.msra.mxu0 %v1786
    %3189 = vmatprep.subr.mxu0 %v1783
    %3190 = vmatpush1.msra.mxu0 %v1782
    %3191 = vmatprep.subr.mxu0 %v1779
    %3192 = vmatpush1.msra.mxu0 %v1778
    %3193 = vmatprep.subr.mxu0 %v1775
    %3194 = vmatpush1.msra.mxu0 %v1774
    %3195 = vmatprep.subr.mxu0 %v1771
    %3196 = vmatpush1.msra.mxu0 %v1770
    %3197 = vmatprep.subr.mxu0 %v1767
    %3198 = vmatpush1.msra.mxu0 %v1766
    %3199 = vmatprep.subr.mxu0 %v1763
    %3200 = vmatpush1.msra.mxu0 %v1762
    %3201 = vmatprep.subr.mxu0 %v1759
    %3202 = vmatpush1.msra.mxu0 %v1758
    %3203 = vmatprep.subr.mxu0 %v1755
    %3204 = vmatpush1.msra.mxu0 %v1754
    %3205 = vmatprep.subr.mxu0 %v1751
    %3206 = vmatpush1.msra.mxu0 %v1750
    %3207 = vmatprep.subr.mxu0 %v1747
    %3208 = vmatpush1.msra.mxu0 %v1746
    %3209 = vmatprep.subr.mxu0 %v1743
    %3210 = vmatpush1.msra.mxu0 %v1742
    %3211 = vmatprep.subr.mxu0 0.0
    %3212 = vmatpush2.msra.mxu0 0.0
    %3213 = vmatprep.subr.mxu0 0.0
    %3214 = vmatpush2.msra.mxu0 0.0
    %3215 = vmatprep.subr.mxu0 0.0
    %3216 = vmatpush2.msra.mxu0 0.0
    %3217 = vmatprep.subr.mxu0 0.0
    %3218 = vmatpush2.msra.mxu0 0.0
    %3219 = vmatprep.subr.mxu0 0.0
    %3220 = vmatpush2.msra.mxu0 0.0
    %3221 = vmatprep.subr.mxu0 0.0
    %3222 = vmatpush2.msra.mxu0 0.0
    %3223 = vmatprep.subr.mxu0 0.0
    %3224 = vmatpush2.msra.mxu0 0.0
    %3225 = vmatprep.subr.mxu0 0.0
    %3226 = vmatpush2.msra.mxu0 0.0
    %3227 = vmatprep.subr.mxu0 0.0
    %3228 = vmatpush2.msra.mxu0 0.0
    %3229 = vmatprep.subr.mxu0 0.0
    %3230 = vmatpush2.msra.mxu0 0.0
    %3231 = vmatprep.subr.mxu0 0.0
    %3232 = vmatpush2.msra.mxu0 0.0
    %3233 = vmatprep.subr.mxu0 0.0
    %3234 = vmatpush2.msra.mxu0 0.0
    %3235 = vmatprep.subr.mxu0 0.0
    %3236 = vmatpush2.msra.mxu0 0.0
    %3237 = vmatprep.subr.mxu0 0.0
    %3238 = vmatpush2.msra.mxu0 0.0
    %3239 = vmatprep.subr.mxu0 0.0
    %3240 = vmatpush2.msra.mxu0 0.0
    %3241 = vmatprep.subr.mxu0 0.0
    %3242 = vmatpush2.msra.mxu0 0.0
    %3243 = vmatprep.mubr.f32.mxu0 0.0
    %3244 = vmatmul.mubr.f32.gmra.mxu0 %v3103
    %v3245 = vpop.f32.mrf.mxu0
    %v3246 = vadd.f32 0.0, %v3245
    %v3247 = vpop.f32.mrf.mxu0
    %v3248 = vadd.f32 0.0, %v3247
    %3249 = vdwg.mxu0
    %v3250 = vadd.f32 %v3104, %v3175
    %v3251 = vadd.f32 %v3105, %v3177
    %v3252 = vadd.f32 %v3106, %v3246
    %v3253 = vadd.f32 %v3107, %v3248
    %v3254 = vmul.f32 %v3250, 0.5
    %v3255 = vtanh.pop %v3254
    %v3256 = vmul.f32 %v3255, 0.5
    %v3257 = vadd.f32 %v3256, 0.5
    %v3258 = vmul.f32 %v3251, 0.5
    %v3259 = vtanh.pop %v3258
    %v3260 = vmul.f32 %v3259, 0.5
    %v3261 = vadd.f32 %v3260, 0.5
    %v3262 = vtanh.pop %v3252
    %v3263 = vmul.f32 %v3253, 0.5
    %v3264 = vtanh.pop %v3263
    %v3265 = vmul.f32 %v3264, 0.5
    %v3266 = vadd.f32 %v3265, 0.5
    %v3267 = vmul.f32 %v3261, %v3101
    %v3268 = vmul.f32 %v3257, %v3262
    %v3269 = vadd.f32 %v3267, %v3268
    %v3270 = vtanh.pop %v3269
    %v3271 = vmul.f32 %v3266, %v3270
    %v3272 = vld [vmem:[#allocation2 + $0xe0] sm:$0x3]
    %v3273 = vld [vmem:[#allocation2 + $0xe8] sm:$0x3]
    %v3274 = vld [vmem:[#allocation2 + $0xf0] sm:$0x3]
    %v3275 = vld [vmem:[#allocation2 + $0xf8] sm:$0x3]
    %3276 = vmatprep.subr.mxu0 %v1801
    %3277 = vmatpush1.msra.mxu0 %v1800
    %3278 = vmatprep.subr.mxu0 %v1797
    %3279 = vmatpush1.msra.mxu0 %v1796
    %3280 = vmatprep.subr.mxu0 %v1793
    %3281 = vmatpush1.msra.mxu0 %v1792
    %3282 = vmatprep.subr.mxu0 %v1789
    %3283 = vmatpush1.msra.mxu0 %v1788
    %3284 = vmatprep.subr.mxu0 %v1785
    %3285 = vmatpush1.msra.mxu0 %v1784
    %3286 = vmatprep.subr.mxu0 %v1781
    %3287 = vmatpush1.msra.mxu0 %v1780
    %3288 = vmatprep.subr.mxu0 %v1777
    %3289 = vmatpush1.msra.mxu0 %v1776
    %3290 = vmatprep.subr.mxu0 %v1773
    %3291 = vmatpush1.msra.mxu0 %v1772
    %3292 = vmatprep.subr.mxu0 %v1769
    %3293 = vmatpush1.msra.mxu0 %v1768
    %3294 = vmatprep.subr.mxu0 %v1765
    %3295 = vmatpush1.msra.mxu0 %v1764
    %3296 = vmatprep.subr.mxu0 %v1761
    %3297 = vmatpush1.msra.mxu0 %v1760
    %3298 = vmatprep.subr.mxu0 %v1757
    %3299 = vmatpush1.msra.mxu0 %v1756
    %3300 = vmatprep.subr.mxu0 %v1753
    %3301 = vmatpush1.msra.mxu0 %v1752
    %3302 = vmatprep.subr.mxu0 %v1749
    %3303 = vmatpush1.msra.mxu0 %v1748
    %3304 = vmatprep.subr.mxu0 %v1745
    %3305 = vmatpush1.msra.mxu0 %v1744
    %3306 = vmatprep.subr.mxu0 %v1741
    %3307 = vmatpush1.msra.mxu0 %v1740
    %3308 = vmatprep.subr.mxu0 0.0
    %3309 = vmatpush2.msra.mxu0 0.0
    %3310 = vmatprep.subr.mxu0 0.0
    %3311 = vmatpush2.msra.mxu0 0.0
    %3312 = vmatprep.subr.mxu0 0.0
    %3313 = vmatpush2.msra.mxu0 0.0
    %3314 = vmatprep.subr.mxu0 0.0
    %3315 = vmatpush2.msra.mxu0 0.0
    %3316 = vmatprep.subr.mxu0 0.0
    %3317 = vmatpush2.msra.mxu0 0.0
    %3318 = vmatprep.subr.mxu0 0.0
    %3319 = vmatpush2.msra.mxu0 0.0
    %3320 = vmatprep.subr.mxu0 0.0
    %3321 = vmatpush2.msra.mxu0 0.0
    %3322 = vmatprep.subr.mxu0 0.0
    %3323 = vmatpush2.msra.mxu0 0.0
    %3324 = vmatprep.subr.mxu0 0.0
    %3325 = vmatpush2.msra.mxu0 0.0
    %3326 = vmatprep.subr.mxu0 0.0
    %3327 = vmatpush2.msra.mxu0 0.0
    %3328 = vmatprep.subr.mxu0 0.0
    %3329 = vmatpush2.msra.mxu0 0.0
    %3330 = vmatprep.subr.mxu0 0.0
    %3331 = vmatpush2.msra.mxu0 0.0
    %3332 = vmatprep.subr.mxu0 0.0
    %3333 = vmatpush2.msra.mxu0 0.0
    %3334 = vmatprep.subr.mxu0 0.0
    %3335 = vmatpush2.msra.mxu0 0.0
    %3336 = vmatprep.subr.mxu0 0.0
    %3337 = vmatpush2.msra.mxu0 0.0
    %3338 = vmatprep.subr.mxu0 0.0
    %3339 = vmatpush2.msra.mxu0 0.0
    %3340 = vmatprep.mubr.f32.mxu0 0.0
    %3341 = vmatmul.mubr.f32.gmra.mxu0 %v3271
    %v3342 = vpop.f32.mrf.mxu0
    %v3343 = vadd.f32 0.0, %v3342
    %v3344 = vpop.f32.mrf.mxu0
    %v3345 = vadd.f32 0.0, %v3344
    %3346 = vdwg.mxu0
    %3347 = vmatprep.subr.mxu0 %v1803
    %3348 = vmatpush1.msra.mxu0 %v1802
    %3349 = vmatprep.subr.mxu0 %v1799
    %3350 = vmatpush1.msra.mxu0 %v1798
    %3351 = vmatprep.subr.mxu0 %v1795
    %3352 = vmatpush1.msra.mxu0 %v1794
    %3353 = vmatprep.subr.mxu0 %v1791
    %3354 = vmatpush1.msra.mxu0 %v1790
    %3355 = vmatprep.subr.mxu0 %v1787
    %3356 = vmatpush1.msra.mxu0 %v1786
    %3357 = vmatprep.subr.mxu0 %v1783
    %3358 = vmatpush1.msra.mxu0 %v1782
    %3359 = vmatprep.subr.mxu0 %v1779
    %3360 = vmatpush1.msra.mxu0 %v1778
    %3361 = vmatprep.subr.mxu0 %v1775
    %3362 = vmatpush1.msra.mxu0 %v1774
    %3363 = vmatprep.subr.mxu0 %v1771
    %3364 = vmatpush1.msra.mxu0 %v1770
    %3365 = vmatprep.subr.mxu0 %v1767
    %3366 = vmatpush1.msra.mxu0 %v1766
    %3367 = vmatprep.subr.mxu0 %v1763
    %3368 = vmatpush1.msra.mxu0 %v1762
    %3369 = vmatprep.subr.mxu0 %v1759
    %3370 = vmatpush1.msra.mxu0 %v1758
    %3371 = vmatprep.subr.mxu0 %v1755
    %3372 = vmatpush1.msra.mxu0 %v1754
    %3373 = vmatprep.subr.mxu0 %v1751
    %3374 = vmatpush1.msra.mxu0 %v1750
    %3375 = vmatprep.subr.mxu0 %v1747
    %3376 = vmatpush1.msra.mxu0 %v1746
    %3377 = vmatprep.subr.mxu0 %v1743
    %3378 = vmatpush1.msra.mxu0 %v1742
    %3379 = vmatprep.subr.mxu0 0.0
    %3380 = vmatpush2.msra.mxu0 0.0
    %3381 = vmatprep.subr.mxu0 0.0
    %3382 = vmatpush2.msra.mxu0 0.0
    %3383 = vmatprep.subr.mxu0 0.0
    %3384 = vmatpush2.msra.mxu0 0.0
    %3385 = vmatprep.subr.mxu0 0.0
    %3386 = vmatpush2.msra.mxu0 0.0
    %3387 = vmatprep.subr.mxu0 0.0
    %3388 = vmatpush2.msra.mxu0 0.0
    %3389 = vmatprep.subr.mxu0 0.0
    %3390 = vmatpush2.msra.mxu0 0.0
    %3391 = vmatprep.subr.mxu0 0.0
    %3392 = vmatpush2.msra.mxu0 0.0
    %3393 = vmatprep.subr.mxu0 0.0
    %3394 = vmatpush2.msra.mxu0 0.0
    %3395 = vmatprep.subr.mxu0 0.0
    %3396 = vmatpush2.msra.mxu0 0.0
    %3397 = vmatprep.subr.mxu0 0.0
    %3398 = vmatpush2.msra.mxu0 0.0
    %3399 = vmatprep.subr.mxu0 0.0
    %3400 = vmatpush2.msra.mxu0 0.0
    %3401 = vmatprep.subr.mxu0 0.0
    %3402 = vmatpush2.msra.mxu0 0.0
    %3403 = vmatprep.subr.mxu0 0.0
    %3404 = vmatpush2.msra.mxu0 0.0
    %3405 = vmatprep.subr.mxu0 0.0
    %3406 = vmatpush2.msra.mxu0 0.0
    %3407 = vmatprep.subr.mxu0 0.0
    %3408 = vmatpush2.msra.mxu0 0.0
    %3409 = vmatprep.subr.mxu0 0.0
    %3410 = vmatpush2.msra.mxu0 0.0
    %3411 = vmatprep.mubr.f32.mxu0 0.0
    %3412 = vmatmul.mubr.f32.gmra.mxu0 %v3271
    %v3413 = vpop.f32.mrf.mxu0
    %v3414 = vadd.f32 0.0, %v3413
    %v3415 = vpop.f32.mrf.mxu0
    %v3416 = vadd.f32 0.0, %v3415
    %3417 = vdwg.mxu0
    %v3418 = vadd.f32 %v3272, %v3343
    %v3419 = vadd.f32 %v3273, %v3345
    %v3420 = vadd.f32 %v3274, %v3414
    %v3421 = vadd.f32 %v3275, %v3416
    %v3422 = vmul.f32 %v3418, 0.5
    %v3423 = vtanh.pop %v3422
    %v3424 = vmul.f32 %v3423, 0.5
    %v3425 = vadd.f32 %v3424, 0.5
    %v3426 = vmul.f32 %v3419, 0.5
    %v3427 = vtanh.pop %v3426
    %v3428 = vmul.f32 %v3427, 0.5
    %v3429 = vadd.f32 %v3428, 0.5
    %v3430 = vtanh.pop %v3420
    %v3431 = vmul.f32 %v3421, 0.5
    %v3432 = vtanh.pop %v3431
    %v3433 = vmul.f32 %v3432, 0.5
    %v3434 = vadd.f32 %v3433, 0.5
    %v3435 = vmul.f32 %v3429, %v3269
    %v3436 = vmul.f32 %v3425, %v3430
    %v3437 = vadd.f32 %v3435, %v3436
    %v3438 = vtanh.pop %v3437
    %v3439 = vmul.f32 %v3434, %v3438
    %s3440 = scalar_lea.vmem [#allocation4], 2
    %3441 = vst [vmem:[%s3440] sm:$0x3] %v3439
    %s3442 = scalar_lea.vmem [#allocation6], 2
    %3443 = vst [vmem:[%s3442] sm:$0x3] %v3437
    %v3445 = vlaneseq
    %v3446 = vshrl.u32 %v3445, 7
    %v3447 = vsub.s32 0, %v3446
    %v3448 = vrot.slane %v59, %v3447
    %3450 = vmatprep.subr.mxu0 0.0
    %3451 = vmatpush1.msra.mxu0 %v58
    %3452 = vmatprep.subr.mxu0 0.0
    %3453 = vmatpush1.msra.mxu0 %v57
    %3454 = vmatprep.subr.mxu0 0.0
    %3455 = vmatpush1.msra.mxu0 %v56
    %3456 = vmatprep.subr.mxu0 0.0
    %3457 = vmatpush1.msra.mxu0 %v55
    %3458 = vmatprep.subr.mxu0 0.0
    %3459 = vmatpush1.msra.mxu0 %v54
    %3460 = vmatprep.subr.mxu0 0.0
    %3461 = vmatpush1.msra.mxu0 %v53
    %3462 = vmatprep.subr.mxu0 0.0
    %3463 = vmatpush1.msra.mxu0 %v52
    %3464 = vmatprep.subr.mxu0 0.0
    %3465 = vmatpush1.msra.mxu0 %v51
    %3466 = vmatprep.subr.mxu0 0.0
    %3467 = vmatpush1.msra.mxu0 %v50
    %3468 = vmatprep.subr.mxu0 0.0
    %3469 = vmatpush1.msra.mxu0 %v49
    %3470 = vmatprep.subr.mxu0 0.0
    %3471 = vmatpush1.msra.mxu0 %v48
    %3472 = vmatprep.subr.mxu0 0.0
    %3473 = vmatpush1.msra.mxu0 %v47
    %3474 = vmatprep.subr.mxu0 0.0
    %3475 = vmatpush1.msra.mxu0 %v46
    %3476 = vmatprep.subr.mxu0 0.0
    %3477 = vmatpush1.msra.mxu0 %v45
    %3478 = vmatprep.subr.mxu0 0.0
    %3479 = vmatpush1.msra.mxu0 %v44
    %3480 = vmatprep.subr.mxu0 0.0
    %3481 = vmatpush1.msra.mxu0 %v43
    %3482 = vmatprep.subr.mxu0 0.0
    %3483 = vmatpush2.msra.mxu0 0.0
    %3484 = vmatprep.subr.mxu0 0.0
    %3485 = vmatpush2.msra.mxu0 0.0
    %3486 = vmatprep.subr.mxu0 0.0
    %3487 = vmatpush2.msra.mxu0 0.0
    %3488 = vmatprep.subr.mxu0 0.0
    %3489 = vmatpush2.msra.mxu0 0.0
    %3490 = vmatprep.subr.mxu0 0.0
    %3491 = vmatpush2.msra.mxu0 0.0
    %3492 = vmatprep.subr.mxu0 0.0
    %3493 = vmatpush2.msra.mxu0 0.0
    %3494 = vmatprep.subr.mxu0 0.0
    %3495 = vmatpush2.msra.mxu0 0.0
    %3496 = vmatprep.subr.mxu0 0.0
    %3497 = vmatpush2.msra.mxu0 0.0
    %3498 = vmatprep.subr.mxu0 0.0
    %3499 = vmatpush2.msra.mxu0 0.0
    %3500 = vmatprep.subr.mxu0 0.0
    %3501 = vmatpush2.msra.mxu0 0.0
    %3502 = vmatprep.subr.mxu0 0.0
    %3503 = vmatpush2.msra.mxu0 0.0
    %3504 = vmatprep.subr.mxu0 0.0
    %3505 = vmatpush2.msra.mxu0 0.0
    %3506 = vmatprep.subr.mxu0 0.0
    %3507 = vmatpush2.msra.mxu0 0.0
    %3508 = vmatprep.subr.mxu0 0.0
    %3509 = vmatpush2.msra.mxu0 0.0
    %3510 = vmatprep.subr.mxu0 0.0
    %3511 = vmatpush2.msra.mxu0 0.0
    %3512 = vmatprep.subr.mxu0 0.0
    %3513 = vmatpush2.msra.mxu0 0.0
    %3514 = vmatprep.mubr.f32.mxu0 0.0
    %3515 = vmatmul.mubr.f32.gmra.mxu0 %v3439
    %v3516 = vpop.f32.mrf.mxu0
    %v3517 = vadd.f32 %v3448, %v3516
    %v3518 = vpop.f32.mrf.mxu0
    %3519 = vdwg.mxu0
    %3520 = vst [vmem:[%s11] sm:$0x3] %v3517
    // Predicated region
    $region46: #{lstm_model_forward.1} parent=1 // pred_check
      _
    $region47: #{lstm_model_forward.1} parent=1 // pred_check_branch
      %3522 = sbr.rel (0) target = $region49
    $region48: #{lstm_model_forward.1} parent=1 // pred_region
      _
    $region49: #{lstm_model_forward.1} parent=1 // pred_fallthru
      _
    // Predicated region
    $region50: #{lstm_model_forward.1} parent=1 // pred_check
      _
    $region51: #{lstm_model_forward.1} parent=1 // pred_check_branch
      %3524 = sbr.rel (0) target = $region53
    $region52: #{lstm_model_forward.1} parent=1 // pred_region
      %s3526 = ssub.s32 64, 64
      %3527 = vsyncadd [#allocation5], %s3526
      %s3528 = sshll.u32 [#allocation4], 4
      %s3529 = int_to_ptr.vmem [resolvable:$true] %s3528
      %3534 = dma.vmem_to_hbm [thread:$0]  %s3529, 64, %s12, [#allocation5], 32, 32, 2
    $region53: #{lstm_model_forward.1} parent=1 // pred_fallthru
      _
    // Predicated region
    $region54: #{lstm_model_forward.1} parent=1 // pred_check
      _
    $region55: #{lstm_model_forward.1} parent=1 // pred_check_branch
      %3536 = sbr.rel (0) target = $region57
    $region56: #{lstm_model_forward.1} parent=1 // pred_region
      %s3538 = ssub.s32 64, 64
      %3539 = vsyncadd [#allocation7], %s3538
      %s3540 = sshll.u32 [#allocation6], 4
      %s3541 = int_to_ptr.vmem [resolvable:$true] %s3540
      %3546 = dma.vmem_to_hbm [thread:$0]  %s3541, 64, %s13, [#allocation7], 32, 32, 2
    $region57: #{lstm_model_forward.1} parent=1 // pred_fallthru
      _
    // Predicated region
    $region58: #{lstm_model_forward.1} parent=1 // pred_check
      _
    $region59: #{lstm_model_forward.1} parent=1 // pred_check_branch
      %3548 = sbr.rel (0) target = $region61
    $region60: #{lstm_model_forward.1} parent=1 // pred_region
      _
    $region61: #{lstm_model_forward.1} parent=1 // pred_fallthru
      _
    // Predicated region
    $region62: #{lstm_model_forward.1} parent=1 // pred_check
      _
    $region63: #{lstm_model_forward.1} parent=1 // pred_check_branch
      %3550 = sbr.rel (0) target = $region65
    $region64: #{lstm_model_forward.1} parent=1 // pred_region
      %3551 = dma.done [#allocation5], 64
    $region65: #{lstm_model_forward.1} parent=1 // pred_fallthru
      _
    // Predicated region
    $region66: #{lstm_model_forward.1} parent=1 // pred_check
      _
    $region67: #{lstm_model_forward.1} parent=1 // pred_check_branch
      %3553 = sbr.rel (0) target = $region69
    $region68: #{lstm_model_forward.1} parent=1 // pred_region
      %3554 = dma.done [#allocation7], 64
    $region69: #{lstm_model_forward.1} parent=1 // pred_fallthru
      _
    %3555 = vsyncpa [#allocation5], 1
    %3556 = vsyncpa [#allocation7], 1

</llo_original>
